<compile_context>
chip_gen: v6e
topology: v6e:2x2x1
jax: 0.10.0
libtpu: 0.0.40
codegen_flags: <defaults>
</compile_context>

<pallas_src>
import functools

import jax
import jax.numpy as jnp
import numpy as np
from jax import lax
from jax.experimental import pallas as pl
from jax.experimental.pallas import tpu as pltpu

EPS = 1e-5

# Matmul-operand dtype.  Set to jnp.bfloat16 on v6e/v7x for ~2x MXU rate and
# half the DMA bytes on the weight/patch streams (accumulation stays f32 via
# preferred_element_type); relax the test tolerance to ~5e-2 when doing so.
MXU_DTYPE = jnp.float32

# Explicit scoped-VMEM budget (v7x-safe: well under its 64 MiB physical VMEM).
_VMEM_LIMIT_BYTES = 32 * 1024 * 1024


def _compiler_params(dimension_semantics):
    return pltpu.CompilerParams(dimension_semantics=dimension_semantics,
                                vmem_limit_bytes=_VMEM_LIMIT_BYTES)


def _pick_row_tile(rows, target=512):
    """Largest multiple of 8 that divides `rows` and is <= target (else rows)."""
    t = min(target, rows)
    t -= t % 8
    for cand in range(t, 0, -8):
        if rows % cand == 0:
            return cand
    return rows


# --------------------------------------------------------------------------
# Stage 1: Conv3d(k=2, s=2) as matmul + bias, with fused partial BN statistics
# --------------------------------------------------------------------------

def _conv_k2s2_kernel(p_ref, w_ref, b_ref, y_ref, st_ref):
    y = jnp.dot(p_ref[...], w_ref[...],
                preferred_element_type=jnp.float32) + b_ref[...]
    y_ref[...] = y
    st = jnp.concatenate([jnp.sum(y, axis=0, keepdims=True),
                          jnp.sum(y * y, axis=0, keepdims=True)], axis=0)
    st_ref[...] = st[None]                       # (1, 2, Cout)


def conv_k2s2_fused(patches, w_mat, bias):
    """(M, K) @ (K, Cout) + b.  Returns raw conv output and (2, Cout) stats."""
    M, K = patches.shape
    Cout = w_mat.shape[1]
    tm = _pick_row_tile(M)                       # large M tiles (<= 512 rows)
    G = M // tm
    # TODO(synk): for large K (= 8*Cin) add a K reduction grid axis with a VMEM
    # accumulator (pattern P3); at these channel counts full-K blocks are tiny.
    y, st = pl.pallas_call(
        _conv_k2s2_kernel,
        out_shape=(jax.ShapeDtypeStruct((M, Cout), jnp.float32),
                   jax.ShapeDtypeStruct((G, 2, Cout), jnp.float32)),
        grid_spec=pltpu.PrefetchScalarGridSpec(
            num_scalar_prefetch=0,
            grid=(G,),
            in_specs=[
                pl.BlockSpec((tm, K), lambda i: (i, 0)),
                pl.BlockSpec((K, Cout), lambda i: (0, 0)),
                pl.BlockSpec((1, Cout), lambda i: (0, 0)),
            ],
            out_specs=[
                pl.BlockSpec((tm, Cout), lambda i: (i, 0)),
                pl.BlockSpec((1, 2, Cout), lambda i: (i, 0, 0)),
            ],
        ),
        compiler_params=_compiler_params(("parallel",)),
    )(patches.astype(MXU_DTYPE), w_mat.astype(MXU_DTYPE),
      bias.reshape(1, Cout).astype(jnp.float32))
    return y, jnp.sum(st, axis=0)                # (M, Cout), (2, Cout)


# --------------------------------------------------------------------------
# Stage 2/3: Conv3d(k=3, p=1) direct conv with fused input BN-apply + ReLU,
# bias, and partial output statistics.  Lane-fused (W*C) layout, no im2col.
# --------------------------------------------------------------------------

def _conv_k3p1_kernel(D, C, Cout, H, W,
                      yp0_ref, yp1_ref, yp2_ref, sc_ref, sh_ref, m_ref,
                      w_ref, b_ref, y_ref, st_ref):
    d = pl.program_id(1)
    scale = sc_ref[...]                          # (1, (W+2)*C)  prev-layer BN scale (tiled)
    shift = sh_ref[...]
    hw_mask = m_ref[...]                         # (H+2, (W+2)*C) interior mask

    acc = jnp.zeros((H, W * Cout), jnp.float32)
    slabs = (yp0_ref, yp1_ref, yp2_ref)
    for kd in range(3):
        raw = slabs[kd][0, 0]                    # (H+2, (W+2)*C) raw prev conv output
        # Apply previous layer's BN + ReLU on the fly, then zero the padding
        # halo (H/W via mask, depth via the scalar validity factor).
        dvalid = jnp.logical_and(d + kd >= 1, d + kd <= D).astype(jnp.float32)
        a = jnp.maximum(raw * scale + shift, 0.0) * (hw_mask * dvalid)
        a = a.astype(w_ref.dtype)
        for kh in range(3):
            for kw in range(3):
                patch = a[kh:kh + H, kw * C:(kw + W) * C]       # (H, W*C)
                acc = acc + jnp.dot(patch, w_ref[kd, kh, kw],
                                    preferred_element_type=jnp.float32)
    y = acc + b_ref[...]                         # (H, W*Cout) f32
    y_ref[...] = y[None, None]

    # Per-channel partial stats of THIS conv's output (sum, sum of squares):
    # fold the W replicas in the lane direction, then reduce over H rows.
    s = jnp.zeros((H, Cout), jnp.float32)
    ss = jnp.zeros((H, Cout), jnp.float32)
    for x in range(W):
        blk = y[:, x * Cout:(x + 1) * Cout]
        s = s + blk
        ss = ss + blk * blk
    st = jnp.concatenate([jnp.sum(s, axis=0, keepdims=True),
                          jnp.sum(ss, axis=0, keepdims=True)], axis=0)
    st_ref[...] = st[None, None]                 # (1, 1, 2, Cout)


def conv_k3p1_fused(y_prev, scale_prev, shift_prev, w_torch, bias, *, shape5d):
    """Conv3d(k=3, p=1) applied to relu(y_prev*scale_prev + shift_prev).

    y_prev      : (M, C) raw output of the previous conv (pre-BN).
    returns     : (M, Cout) raw conv output and (2, Cout) [sum, sumsq] stats.
    """
    N, D, H, W, C = shape5d
    Cout = w_torch.shape[0]
    Hp, Wp = H + 2, W + 2

    # Zero-pad the RAW previous output (halo values are masked in-kernel after
    # the BN-apply, so the pad value itself does not matter).
    ypad = jnp.pad(y_prev.reshape(N, D, H, W, C),
                   ((0, 0), (1, 1), (1, 1), (1, 1), (0, 0)))
    ypad2d = ypad.reshape(N, D + 2, Hp, Wp * C)          # lane-fused (W, C)

    # Per-channel affine of the previous BN, tiled to the fused lane layout.
    sc_t = jnp.tile(scale_prev.reshape(1, C), (1, Wp))   # (1, Wp*C)
    sh_t = jnp.tile(shift_prev.reshape(1, C), (1, Wp))

    # Static interior mask over the padded (H, W) plane.
    hmask = ((np.arange(Hp) >= 1) & (np.arange(Hp) <= H)).astype(np.float32)
    wmask = ((np.arange(Wp) >= 1) & (np.arange(Wp) <= W)).astype(np.float32)
    mask_np = (hmask[:, None, None] * wmask[None, :, None]
               * np.ones((1, 1, C), np.float32)).reshape(Hp, Wp * C)
    mask = jnp.asarray(mask_np)

    # torch weight (Cout, C, 3, 3, 3) -> (3, 3, 3, C, Cout), then expand to
    # block-diagonal (over the W output positions) so that the tap matmul runs
    # directly on the lane-fused (W*C) patches: (3,3,3, W*C, W*Cout).
    w5 = jnp.transpose(w_torch, (2, 3, 4, 1, 0))
    eye_w = jnp.eye(W, dtype=w5.dtype)
    wblk = jnp.einsum('wx,pqrio->pqrwixo', eye_w, w5).reshape(
        3, 3, 3, W * C, W * Cout)

    b_t = jnp.tile(bias.reshape(1, Cout), (1, W)).astype(jnp.float32)  # (1, W*Cout)

    kernel = functools.partial(_conv_k3p1_kernel, D, C, Cout, H, W)
    y, st = pl.pallas_call(
        kernel,
        out_shape=(jax.ShapeDtypeStruct((N, D, H, W * Cout), jnp.float32),
                   jax.ShapeDtypeStruct((N, D, 2, Cout), jnp.float32)),
        grid_spec=pltpu.PrefetchScalarGridSpec(
            num_scalar_prefetch=0,
            grid=(N, D),
            in_specs=[
                # three overlapping padded-depth slabs (halo in D)
                pl.BlockSpec((1, 1, Hp, Wp * C), lambda n, d: (n, d, 0, 0)),
                pl.BlockSpec((1, 1, Hp, Wp * C), lambda n, d: (n, d + 1, 0, 0)),
                pl.BlockSpec((1, 1, Hp, Wp * C), lambda n, d: (n, d + 2, 0, 0)),
                pl.BlockSpec((1, Wp * C), lambda n, d: (0, 0)),
                pl.BlockSpec((1, Wp * C), lambda n, d: (0, 0)),
                pl.BlockSpec((Hp, Wp * C), lambda n, d: (0, 0)),
                pl.BlockSpec((3, 3, 3, W * C, W * Cout),
                             lambda n, d: (0, 0, 0, 0, 0)),
                pl.BlockSpec((1, W * Cout), lambda n, d: (0, 0)),
            ],
            out_specs=[
                pl.BlockSpec((1, 1, H, W * Cout), lambda n, d: (n, d, 0, 0)),
                pl.BlockSpec((1, 1, 2, Cout), lambda n, d: (n, d, 0, 0)),
            ],
        ),
        compiler_params=_compiler_params(("parallel", "parallel")),
    )(ypad2d, ypad2d, ypad2d, sc_t, sh_t, mask,
      wblk.astype(MXU_DTYPE), b_t)
    return y.reshape(N * D * H * W, Cout), jnp.sum(st, axis=(0, 1))


# --------------------------------------------------------------------------
# Stage 4: fused BN3-apply + ReLU + residual (ReLU(BN1)), lane-dense layout
# --------------------------------------------------------------------------

def _bn_relu_add_kernel(y3_ref, y1_ref, s3_ref, h3_ref, s1_ref, h1_ref, o_ref):
    a3 = jnp.maximum(y3_ref[...] * s3_ref[...] + h3_ref[...], 0.0)
    a1 = jnp.maximum(y1_ref[...] * s1_ref[...] + h1_ref[...], 0.0)
    o_ref[...] = a3 + a1


def bn_relu_residual(y3, y1, scale3, shift3, scale1, shift1):
    M, C = y3.shape
    total = M * C
    # lane-dense view: fold spatial voxels into the lane dim (128 wide) when possible
    L = 128 if (total % 128 == 0 and 128 % C == 0) else C
    rep = L // C
    R = total // L
    y3v, y1v = y3.reshape(R, L), y1.reshape(R, L)
    s3 = jnp.tile(scale3.reshape(1, C), (1, rep))
    h3 = jnp.tile(shift3.reshape(1, C), (1, rep))
    s1 = jnp.tile(scale1.reshape(1, C), (1, rep))
    h1 = jnp.tile(shift1.reshape(1, C), (1, rep))
    tr = _pick_row_tile(R)
    out = pl.pallas_call(
        _bn_relu_add_kernel,
        out_shape=jax.ShapeDtypeStruct((R, L), jnp.float32),
        grid_spec=pltpu.PrefetchScalarGridSpec(
            num_scalar_prefetch=0,
            grid=(R // tr,),
            in_specs=[
                pl.BlockSpec((tr, L), lambda i: (i, 0)),
                pl.BlockSpec((tr, L), lambda i: (i, 0)),
                pl.BlockSpec((1, L), lambda i: (0, 0)),
                pl.BlockSpec((1, L), lambda i: (0, 0)),
                pl.BlockSpec((1, L), lambda i: (0, 0)),
                pl.BlockSpec((1, L), lambda i: (0, 0)),
            ],
            out_specs=pl.BlockSpec((tr, L), lambda i: (i, 0)),
        ),
        compiler_params=_compiler_params(("parallel",)),
    )(y3v, y1v, s3, h3, s1, h1)
    return out.reshape(M, C)


# --------------------------- glue (plain JAX) -------------------------------

def _patches_k2s2_from_ncdhw(x):
    """NCDHW input -> (M, 8*Cin) patches for Conv3d(k=2, s=2) in one transpose."""
    N, C, D, H, W = x.shape
    x = x.reshape(N, C, D // 2, 2, H // 2, 2, W // 2, 2)
    x = x.transpose(0, 2, 4, 6, 3, 5, 7, 1)        # (N,Do,Ho,Wo,kd,kh,kw,C)
    return x.reshape(N * (D // 2) * (H // 2) * (W // 2), 8 * C)


def _w_to_mat(w):
    """torch Conv3d weight (Cout, Cin, kd, kh, kw) -> (kd*kh*kw*Cin, Cout)."""
    Cout = w.shape[0]
    return jnp.transpose(w, (2, 3, 4, 1, 0)).reshape(-1, Cout)


def _bn_affine(stats, gamma, beta, count):
    """Training-mode BN (biased variance) folded into per-channel scale/shift."""
    mean = stats[0] / count
    # TODO(synk): E[x^2]-mean^2 is fine in f32 at these magnitudes; switch to a
    # centered/Welford accumulation for very large M.
    var = jnp.maximum(stats[1] / count - mean * mean, 0.0)
    scale = gamma * lax.rsqrt(var + EPS)
    shift = beta - mean * scale
    return scale, shift


def encoder_block(x_ncdhw, p):
    N, Cin, D, H, W = x_ncdhw.shape
    Cout = p["w1"].shape[0]
    Do, Ho, Wo = D // 2, H // 2, W // 2
    M = N * Do * Ho * Wo

    # encode1: Conv3d(k=2,s=2)+bias with fused BN statistics
    pat1 = _patches_k2s2_from_ncdhw(x_ncdhw.astype(jnp.float32))
    y1, st1 = conv_k2s2_fused(pat1, _w_to_mat(p["w1"]), p["b1"])
    scale1, shift1 = _bn_affine(st1, p["g1"], p["be1"], M)

    # encode2 conv a: BN1+ReLU applied on the fly inside the conv kernel
    y2, st2 = conv_k3p1_fused(y1, scale1, shift1, p["w2"], p["b2"],
                              shape5d=(N, Do, Ho, Wo, Cout))
    scale2, shift2 = _bn_affine(st2, p["g2"], p["be2"], M)

    # encode2 conv b: BN2+ReLU applied on the fly
    y3, st3 = conv_k3p1_fused(y2, scale2, shift2, p["w3"], p["b3"],
                              shape5d=(N, Do, Ho, Wo, Cout))
    scale3, shift3 = _bn_affine(st3, p["g3"], p["be3"], M)

    # final: relu(BN3(y3)) + relu(BN1(y1))   (residual of x1)
    out = bn_relu_residual(y3, y1, scale3, shift3, scale1, shift1)
    out = out.reshape(N, Do, Ho, Wo, Cout)
    return jnp.transpose(out, (0, 4, 1, 2, 3))      # back to NCDHW


# ------------------------- pure-JAX reference -------------------------------

def _conv3d_ref(x_ndhwc, w_torch, b, stride, pad):
    w = jnp.transpose(w_torch, (2, 3, 4, 1, 0))  # DHWIO
    y = lax.conv_general_dilated(
        x_ndhwc, w, window_strides=(stride,) * 3,
        padding=[(pad, pad)] * 3,
        dimension_numbers=("NDHWC", "DHWIO", "NDHWC"))
    return y + b.reshape(1, 1, 1, 1, -1)


def _bn_relu_ref(x, g, be):
    mean = jnp.mean(x, axis=(0, 1, 2, 3), keepdims=True)
    var = jnp.mean(jnp.square(x - mean), axis=(0, 1, 2, 3), keepdims=True)
    y = (x - mean) * lax.rsqrt(var + EPS) * g.reshape(1, 1, 1, 1, -1) \
        + be.reshape(1, 1, 1, 1, -1)
    return jnp.maximum(y, 0.0)


def encoder_block_ref(x_ncdhw, p):
    x = jnp.transpose(x_ncdhw, (0, 2, 3, 4, 1)).astype(jnp.float32)
    x1 = _bn_relu_ref(_conv3d_ref(x, p["w1"], p["b1"], 2, 0), p["g1"], p["be1"])
    xa = _bn_relu_ref(_conv3d_ref(x1, p["w2"], p["b2"], 1, 1), p["g2"], p["be2"])
    y = _bn_relu_ref(_conv3d_ref(xa, p["w3"], p["b3"], 1, 1), p["g3"], p["be3"]) + x1
    return jnp.transpose(y, (0, 4, 1, 2, 3))


# ------------------------------ parameters ----------------------------------

def init_params(key, in_channels, out_channels):
    ks = jax.random.split(key, 12)

    def conv_init(kw, kb, cout, cin, k):
        fan_in = cin * k ** 3
        bound = 1.0 / np.sqrt(fan_in)
        w = jax.random.uniform(kw, (cout, cin, k, k, k), jnp.float32, -bound, bound)
        b = jax.random.uniform(kb, (cout,), jnp.float32, -bound, bound)
        return w, b

    w1, b1 = conv_init(ks[0], ks[1], out_channels, in_channels, 2)
    w2, b2 = conv_init(ks[2], ks[3], out_channels, out_channels, 3)
    w3, b3 = conv_init(ks[4], ks[5], out_channels, out_channels, 3)
    g1 = jax.random.uniform(ks[6], (out_channels,), jnp.float32, 0.5, 1.5)
    g2 = jax.random.uniform(ks[7], (out_channels,), jnp.float32, 0.5, 1.5)
    g3 = jax.random.uniform(ks[8], (out_channels,), jnp.float32, 0.5, 1.5)
    be1 = jax.random.uniform(ks[9], (out_channels,), jnp.float32, -0.1, 0.1)
    be2 = jax.random.uniform(ks[10], (out_channels,), jnp.float32, -0.1, 0.1)
    be3 = jax.random.uniform(ks[11], (out_channels,), jnp.float32, -0.1, 0.1)
    return dict(w1=w1, b1=b1, w2=w2, b2=b2, w3=w3, b3=b3,
                g1=g1, g2=g2, g3=g3, be1=be1, be2=be2, be3=be3)


# --------------------------------- main --------------------------------------

if __name__ == "__main__":
    # TODO(synk): SynchronizedBatchNorm3d cross-device stat sync is not modeled;
    # single-device training-mode batch statistics are used (identical on 1 device).
    key = jax.random.PRNGKey(0)
    k_x, k_p = jax.random.split(key)

    N, Cin, Cout, D = 2, 4, 8, 8          # input NCDHW = (2, 4, 8, 8, 8)
    x = jax.random.normal(k_x, (N, Cin, D, D, D), jnp.float32)
    params = init_params(k_p, Cin, Cout)

    out = jax.block_until_ready(jax.jit(encoder_block)(x, params))
    ref = jax.block_until_ready(jax.jit(encoder_block_ref)(x, params))

    assert out.shape == (N, Cout, D // 2, D // 2, D // 2), out.shape
    np.testing.assert_allclose(np.asarray(out), np.asarray(ref), rtol=5e-3, atol=5e-3)
    print("KERNEL_OK")
</pallas_src>

<mosaic_0001>
module attributes {stable_mosaic.version = 11 : i64} {
  func.func @_conv_k2s2_kernel(%arg0: i32, %arg1: memref<128x32xf32, #tpu.memory_space<vmem>>, %arg2: memref<32x8xf32, #tpu.memory_space<vmem>>, %arg3: memref<1x8xf32, #tpu.memory_space<vmem>>, %arg4: memref<128x8xf32, #tpu.memory_space<vmem>>, %arg5: memref<1x2x8xf32, #tpu.memory_space<vmem>>) attributes {dimension_semantics = [#tpu.dimension_semantics<parallel>], iteration_bounds = array<i64: 1>, scalar_prefetch = 0 : i64, scratch_operands = 0 : i64, tpu.core_type = #tpu.core_type<tc>, window_params = [{transform_indices = @transform_0, window_bounds = array<i64: 128, 32>}, {pipeline_mode = #tpu.pipeline_mode<synchronous>, transform_indices = @transform_1, window_bounds = array<i64: 32, 8>}, {pipeline_mode = #tpu.pipeline_mode<synchronous>, transform_indices = @transform_2, window_bounds = array<i64: 1, 8>}, {transform_indices = @transform_3, window_bounds = array<i64: 128, 8>}, {transform_indices = @transform_4, window_bounds = array<i64: 1, 2, 8>}]} {
    %c0 = arith.constant 0 : index
    %c0_0 = arith.constant 0 : index
    %0 = vector.load %arg1[%c0, %c0_0] : memref<128x32xf32, #tpu.memory_space<vmem>>, vector<128x32xf32>
    %c0_1 = arith.constant 0 : index
    %c0_2 = arith.constant 0 : index
    %1 = vector.load %arg2[%c0_1, %c0_2] : memref<32x8xf32, #tpu.memory_space<vmem>>, vector<32x8xf32>
    %cst = arith.constant dense<0.000000e+00> : vector<128x8xf32>
    %2 = tpu.matmul %0, %1, %cst {dimension_numbers = #tpu.dot_dimension_numbers<[1], [0], [0], [1], [0, 0, 1, 1], [], []>} : vector<128x32xf32>, vector<32x8xf32>, vector<128x8xf32> -> vector<128x8xf32>
    %c0_3 = arith.constant 0 : index
    %c0_4 = arith.constant 0 : index
    %3 = vector.load %arg3[%c0_3, %c0_4] : memref<1x8xf32, #tpu.memory_space<vmem>>, vector<1x8xf32>
    %4 = vector.broadcast %3 : vector<1x8xf32> to vector<128x8xf32>
    %5 = arith.addf %2, %4 : vector<128x8xf32>
    %c0_5 = arith.constant 0 : index
    %c0_6 = arith.constant 0 : index
    %6 = vector.load %arg4[%c0_5, %c0_6] : memref<128x8xf32, #tpu.memory_space<vmem>>, vector<128x8xf32>
    tpu.vector_store %arg4[%c0_5, %c0_6], %5 {strides = array<i32>} : memref<128x8xf32, #tpu.memory_space<vmem>>, vector<128x8xf32>,
    %cst_7 = arith.constant dense<0.000000e+00> : vector<8xf32>
    %7 = vector.multi_reduction <add>, %5, %cst_7 [0] : vector<128x8xf32> to vector<8xf32>
    %8 = vector.shape_cast %7 : vector<8xf32> to vector<1x8xf32>
    %9 = arith.mulf %5, %5 : vector<128x8xf32>
    %cst_8 = arith.constant dense<0.000000e+00> : vector<8xf32>
    %10 = vector.multi_reduction <add>, %9, %cst_8 [0] : vector<128x8xf32> to vector<8xf32>
    %11 = vector.shape_cast %10 : vector<8xf32> to vector<1x8xf32>
    %12 = tpu.concatenate %8, %11 in 0 : vector<1x8xf32>, vector<1x8xf32> -> vector<2x8xf32>
    %13 = vector.shape_cast %12 : vector<2x8xf32> to vector<1x2x8xf32>
    %c0_9 = arith.constant 0 : index
    %c0_10 = arith.constant 0 : index
    %c0_11 = arith.constant 0 : index
    %14 = vector.load %arg5[%c0_9, %c0_10, %c0_11] : memref<1x2x8xf32, #tpu.memory_space<vmem>>, vector<1x2x8xf32>
    tpu.vector_store %arg5[%c0_9, %c0_10, %c0_11], %13 {strides = array<i32>} : memref<1x2x8xf32, #tpu.memory_space<vmem>>, vector<1x2x8xf32>,
    return
  }
  func.func @transform_0(%arg0: i32) -> (i32, i32) {
    %c0_i32 = arith.constant 0 : i32
    %c0_i32_0 = arith.constant 0 : i32
    return %arg0, %c0_i32 : i32, i32
  }
  func.func @transform_1(%arg0: i32) -> (i32, i32) {
    %c0_i32 = arith.constant 0 : i32
    %c0_i32_0 = arith.constant 0 : i32
    %c0_i32_1 = arith.constant 0 : i32
    return %c0_i32, %c0_i32_0 : i32, i32
  }
  func.func @transform_2(%arg0: i32) -> (i32, i32) {
    %c0_i32 = arith.constant 0 : i32
    %c0_i32_0 = arith.constant 0 : i32
    %c0_i32_1 = arith.constant 0 : i32
    return %c0_i32, %c0_i32_0 : i32, i32
  }
  func.func @transform_3(%arg0: i32) -> (i32, i32) {
    %c0_i32 = arith.constant 0 : i32
    %c0_i32_0 = arith.constant 0 : i32
    return %arg0, %c0_i32 : i32, i32
  }
  func.func @transform_4(%arg0: i32) -> (i32, i32, i32) {
    %c0_i32 = arith.constant 0 : i32
    %c0_i32_0 = arith.constant 0 : i32
    %c0_i32_1 = arith.constant 0 : i32
    return %arg0, %c0_i32, %c0_i32_0 : i32, i32, i32
  }
}

module attributes {stable_mosaic.version = 11 : i64} {
  func.func @_conv_k3p1_kernel(%arg0: i32, %arg1: i32, %arg2: memref<1x1x6x48xf32, #tpu.memory_space<vmem>>, %arg3: memref<1x1x6x48xf32, #tpu.memory_space<vmem>>, %arg4: memref<1x1x6x48xf32, #tpu.memory_space<vmem>>, %arg5: memref<1x48xf32, #tpu.memory_space<vmem>>, %arg6: memref<1x48xf32, #tpu.memory_space<vmem>>, %arg7: memref<6x48xf32, #tpu.memory_space<vmem>>, %arg8: memref<3x3x3x32x32xf32, #tpu.memory_space<vmem>>, %arg9: memref<1x32xf32, #tpu.memory_space<vmem>>, %arg10: memref<1x1x4x32xf32, #tpu.memory_space<vmem>>, %arg11: memref<1x1x2x8xf32, #tpu.memory_space<vmem>>) attributes {dimension_semantics = [#tpu.dimension_semantics<parallel>, #tpu.dimension_semantics<parallel>], iteration_bounds = array<i64: 2, 4>, scalar_prefetch = 0 : i64, scratch_operands = 0 : i64, tpu.core_type = #tpu.core_type<tc>, window_params = [{transform_indices = @transform_0, window_bounds = array<i64: 1, 1, 6, 48>}, {transform_indices = @transform_1, window_bounds = array<i64: 1, 1, 6, 48>}, {transform_indices = @transform_2, window_bounds = array<i64: 1, 1, 6, 48>}, {pipeline_mode = #tpu.pipeline_mode<synchronous>, transform_indices = @transform_3, window_bounds = array<i64: 1, 48>}, {pipeline_mode = #tpu.pipeline_mode<synchronous>, transform_indices = @transform_4, window_bounds = array<i64: 1, 48>}, {pipeline_mode = #tpu.pipeline_mode<synchronous>, transform_indices = @transform_5, window_bounds = array<i64: 6, 48>}, {pipeline_mode = #tpu.pipeline_mode<synchronous>, transform_indices = @transform_6, window_bounds = array<i64: 3, 3, 3, 32, 32>}, {pipeline_mode = #tpu.pipeline_mode<synchronous>, transform_indices = @transform_7, window_bounds = array<i64: 1, 32>}, {transform_indices = @transform_8, window_bounds = array<i64: 1, 1, 4, 32>}, {transform_indices = @transform_9, window_bounds = array<i64: 1, 1, 2, 8>}]} {
    %c0 = arith.constant 0 : index
    %c0_0 = arith.constant 0 : index
    %0 = vector.load %arg5[%c0, %c0_0] : memref<1x48xf32, #tpu.memory_space<vmem>>, vector<1x48xf32>
    %c0_1 = arith.constant 0 : index
    %c0_2 = arith.constant 0 : index
    %1 = vector.load %arg6[%c0_1, %c0_2] : memref<1x48xf32, #tpu.memory_space<vmem>>, vector<1x48xf32>
    %c0_3 = arith.constant 0 : index
    %c0_4 = arith.constant 0 : index
    %2 = vector.load %arg7[%c0_3, %c0_4] : memref<6x48xf32, #tpu.memory_space<vmem>>, vector<6x48xf32>
    %cst = arith.constant 0.000000e+00 : f32
    %3 = vector.broadcast %cst : f32 to vector<4x32xf32>
    %c0_5 = arith.constant 0 : index
    %c0_6 = arith.constant 0 : index
    %c0_7 = arith.constant 0 : index
    %c0_8 = arith.constant 0 : index
    %4 = vector.load %arg2[%c0_5, %c0_6, %c0_7, %c0_8] : memref<1x1x6x48xf32, #tpu.memory_space<vmem>>, vector<1x1x6x48xf32>
    %5 = vector.shape_cast %4 : vector<1x1x6x48xf32> to vector<6x48xf32>
    %c0_i32 = arith.constant 0 : i32
    %6 = arith.addi %arg1, %c0_i32 : i32
    %c1_i32 = arith.constant 1 : i32
    %7 = arith.cmpi sge, %6, %c1_i32 : i32
    %c0_i32_9 = arith.constant 0 : i32
    %8 = arith.addi %arg1, %c0_i32_9 : i32
    %c4_i32 = arith.constant 4 : i32
    %9 = arith.cmpi sle, %8, %c4_i32 : i32
    %10 = arith.andi %7, %9 : i1
    %11 = arith.extui %10 : i1 to i32
    %12 = arith.sitofp %11 : i32 to f32
    %13 = vector.broadcast %0 : vector<1x48xf32> to vector<6x48xf32>
    %14 = arith.mulf %5, %13 : vector<6x48xf32>
    %15 = vector.broadcast %1 : vector<1x48xf32> to vector<6x48xf32>
    %16 = arith.addf %14, %15 : vector<6x48xf32>
    %cst_10 = arith.constant 0.000000e+00 : f32
    %17 = vector.broadcast %cst_10 : f32 to vector<6x48xf32>
    %18 = arith.maximumf %16, %17 : vector<6x48xf32>
    %19 = vector.broadcast %12 : f32 to vector<6x48xf32>
    %20 = arith.mulf %2, %19 : vector<6x48xf32>
    %21 = arith.mulf %18, %20 : vector<6x48xf32>
    %22 = vector.extract_strided_slice %21 {offsets = [0, 0], sizes = [4, 32], strides = [1, 1]} : vector<6x48xf32> to vector<4x32xf32>
    %c0_11 = arith.constant 0 : index
    %c0_12 = arith.constant 0 : index
    %c0_13 = arith.constant 0 : index
    %c0_14 = arith.constant 0 : index
    %c0_15 = arith.constant 0 : index
    %23 = vector.load %arg8[%c0_11, %c0_12, %c0_13, %c0_14, %c0_15] : memref<3x3x3x32x32xf32, #tpu.memory_space<vmem>>, vector<1x1x1x32x32xf32>
    %24 = vector.shape_cast %23 : vector<1x1x1x32x32xf32> to vector<32x32xf32>
    %cst_16 = arith.constant dense<0.000000e+00> : vector<4x32xf32>
    %25 = tpu.matmul %22, %24, %cst_16 {dimension_numbers = #tpu.dot_dimension_numbers<[1], [0], [0], [1], [0, 0, 1, 1], [], []>} : vector<4x32xf32>, vector<32x32xf32>, vector<4x32xf32> -> vector<4x32xf32>
    %26 = arith.addf %3, %25 : vector<4x32xf32>
    %27 = vector.extract_strided_slice %21 {offsets = [0, 8], sizes = [4, 32], strides = [1, 1]} : vector<6x48xf32> to vector<4x32xf32>
    %c0_17 = arith.constant 0 : index
    %c0_18 = arith.constant 0 : index
    %c1 = arith.constant 1 : index
    %c0_19 = arith.constant 0 : index
    %c0_20 = arith.constant 0 : index
    %28 = vector.load %arg8[%c0_17, %c0_18, %c1, %c0_19, %c0_20] : memref<3x3x3x32x32xf32, #tpu.memory_space<vmem>>, vector<1x1x1x32x32xf32>
    %29 = vector.shape_cast %28 : vector<1x1x1x32x32xf32> to vector<32x32xf32>
    %cst_21 = arith.constant dense<0.000000e+00> : vector<4x32xf32>
    %30 = tpu.matmul %27, %29, %cst_21 {dimension_numbers = #tpu.dot_dimension_numbers<[1], [0], [0], [1], [0, 0, 1, 1], [], []>} : vector<4x32xf32>, vector<32x32xf32>, vector<4x32xf32> -> vector<4x32xf32>
    %31 = arith.addf %26, %30 : vector<4x32xf32>
    %32 = vector.extract_strided_slice %21 {offsets = [0, 16], sizes = [4, 32], strides = [1, 1]} : vector<6x48xf32> to vector<4x32xf32>
    %c0_22 = arith.constant 0 : index
    %c0_23 = arith.constant 0 : index
    %c2 = arith.constant 2 : index
    %c0_24 = arith.constant 0 : index
    %c0_25 = arith.constant 0 : index
    %33 = vector.load %arg8[%c0_22, %c0_23, %c2, %c0_24, %c0_25] : memref<3x3x3x32x32xf32, #tpu.memory_space<vmem>>, vector<1x1x1x32x32xf32>
    %34 = vector.shape_cast %33 : vector<1x1x1x32x32xf32> to vector<32x32xf32>
    %cst_26 = arith.constant dense<0.000000e+00> : vector<4x32xf32>
    %35 = tpu.matmul %32, %34, %cst_26 {dimension_numbers = #tpu.dot_dimension_numbers<[1], [0], [0], [1], [0, 0, 1, 1], [], []>} : vector<4x32xf32>, vector<32x32xf32>, vector<4x32xf32> -> vector<4x32xf32>
    %36 = arith.addf %31, %35 : vector<4x32xf32>
    %37 = vector.extract_strided_slice %21 {offsets = [1, 0], sizes = [4, 32], strides = [1, 1]} : vector<6x48xf32> to vector<4x32xf32>
    %c0_27 = arith.constant 0 : index
    %c1_28 = arith.constant 1 : index
    %c0_29 = arith.constant 0 : index
    %c0_30 = arith.constant 0 : index
    %c0_31 = arith.constant 0 : index
    %38 = vector.load %arg8[%c0_27, %c1_28, %c0_29, %c0_30, %c0_31] : memref<3x3x3x32x32xf32, #tpu.memory_space<vmem>>, vector<1x1x1x32x32xf32>
    %39 = vector.shape_cast %38 : vector<1x1x1x32x32xf32> to vector<32x32xf32>
    %cst_32 = arith.constant dense<0.000000e+00> : vector<4x32xf32>
    %40 = tpu.matmul %37, %39, %cst_32 {dimension_numbers = #tpu.dot_dimension_numbers<[1], [0], [0], [1], [0, 0, 1, 1], [], []>} : vector<4x32xf32>, vector<32x32xf32>, vector<4x32xf32> -> vector<4x32xf32>
    %41 = arith.addf %36, %40 : vector<4x32xf32>
    %42 = vector.extract_strided_slice %21 {offsets = [1, 8], sizes = [4, 32], strides = [1, 1]} : vector<6x48xf32> to vector<4x32xf32>
    %c0_33 = arith.constant 0 : index
    %c1_34 = arith.constant 1 : index
    %c1_35 = arith.constant 1 : index
    %c0_36 = arith.constant 0 : index
    %c0_37 = arith.constant 0 : index
    %43 = vector.load %arg8[%c0_33, %c1_34, %c1_35, %c0_36, %c0_37] : memref<3x3x3x32x32xf32, #tpu.memory_space<vmem>>, vector<1x1x1x32x32xf32>
    %44 = vector.shape_cast %43 : vector<1x1x1x32x32xf32> to vector<32x32xf32>
    %cst_38 = arith.constant dense<0.000000e+00> : vector<4x32xf32>
    %45 = tpu.matmul %42, %44, %cst_38 {dimension_numbers = #tpu.dot_dimension_numbers<[1], [0], [0], [1], [0, 0, 1, 1], [], []>} : vector<4x32xf32>, vector<32x32xf32>, vector<4x32xf32> -> vector<4x32xf32>
    %46 = arith.addf %41, %45 : vector<4x32xf32>
    %47 = vector.extract_strided_slice %21 {offsets = [1, 16], sizes = [4, 32], strides = [1, 1]} : vector<6x48xf32> to vector<4x32xf32>
    %c0_39 = arith.constant 0 : index
    %c1_40 = arith.constant 1 : index
    %c2_41 = arith.constant 2 : index
    %c0_42 = arith.constant 0 : index
    %c0_43 = arith.constant 0 : index
    %48 = vector.load %arg8[%c0_39, %c1_40, %c2_41, %c0_42, %c0_43] : memref<3x3x3x32x32xf32, #tpu.memory_space<vmem>>, vector<1x1x1x32x32xf32>
    %49 = vector.shape_cast %48 : vector<1x1x1x32x32xf32> to vector<32x32xf32>
    %cst_44 = arith.constant dense<0.000000e+00> : vector<4x32xf32>
    %50 = tpu.matmul %47, %49, %cst_44 {dimension_numbers = #tpu.dot_dimension_numbers<[1], [0], [0], [1], [0, 0, 1, 1], [], []>} : vector<4x32xf32>, vector<32x32xf32>, vector<4x32xf32> -> vector<4x32xf32>
    %51 = arith.addf %46, %50 : vector<4x32xf32>
    %52 = vector.extract_strided_slice %21 {offsets = [2, 0], sizes = [4, 32], strides = [1, 1]} : vector<6x48xf32> to vector<4x32xf32>
    %c0_45 = arith.constant 0 : index
    %c2_46 = arith.constant 2 : index
    %c0_47 = arith.constant 0 : index
    %c0_48 = arith.constant 0 : index
    %c0_49 = arith.constant 0 : index
    %53 = vector.load %arg8[%c0_45, %c2_46, %c0_47, %c0_48, %c0_49] : memref<3x3x3x32x32xf32, #tpu.memory_space<vmem>>, vector<1x1x1x32x32xf32>
    %54 = vector.shape_cast %53 : vector<1x1x1x32x32xf32> to vector<32x32xf32>
    %cst_50 = arith.constant dense<0.000000e+00> : vector<4x32xf32>
    %55 = tpu.matmul %52, %54, %cst_50 {dimension_numbers = #tpu.dot_dimension_numbers<[1], [0], [0], [1], [0, 0, 1, 1], [], []>} : vector<4x32xf32>, vector<32x32xf32>, vector<4x32xf32> -> vector<4x32xf32>
    %56 = arith.addf %51, %55 : vector<4x32xf32>
    %57 = vector.extract_strided_slice %21 {offsets = [2, 8], sizes = [4, 32], strides = [1, 1]} : vector<6x48xf32> to vector<4x32xf32>
    %c0_51 = arith.constant 0 : index
    %c2_52 = arith.constant 2 : index
    %c1_53 = arith.constant 1 : index
    %c0_54 = arith.constant 0 : index
    %c0_55 = arith.constant 0 : index
    %58 = vector.load %arg8[%c0_51, %c2_52, %c1_53, %c0_54, %c0_55] : memref<3x3x3x32x32xf32, #tpu.memory_space<vmem>>, vector<1x1x1x32x32xf32>
    %59 = vector.shape_cast %58 : vector<1x1x1x32x32xf32> to vector<32x32xf32>
    %cst_56 = arith.constant dense<0.000000e+00> : vector<4x32xf32>
    %60 = tpu.matmul %57, %59, %cst_56 {dimension_numbers = #tpu.dot_dimension_numbers<[1], [0], [0], [1], [0, 0, 1, 1], [], []>} : vector<4x32xf32>, vector<32x32xf32>, vector<4x32xf32> -> vector<4x32xf32>
    %61 = arith.addf %56, %60 : vector<4x32xf32>
    %62 = vector.extract_strided_slice %21 {offsets = [2, 16], sizes = [4, 32], strides = [1, 1]} : vector<6x48xf32> to vector<4x32xf32>
    %c0_57 = arith.constant 0 : index
    %c2_58 = arith.constant 2 : index
    %c2_59 = arith.constant 2 : index
    %c0_60 = arith.constant 0 : index
    %c0_61 = arith.constant 0 : index
    %63 = vector.load %arg8[%c0_57, %c2_58, %c2_59, %c0_60, %c0_61] : memref<3x3x3x32x32xf32, #tpu.memory_space<vmem>>, vector<1x1x1x32x32xf32>
    %64 = vector.shape_cast %63 : vector<1x1x1x32x32xf32> to vector<32x32xf32>
    %cst_62 = arith.constant dense<0.000000e+00> : vector<4x32xf32>
    %65 = tpu.matmul %62, %64, %cst_62 {dimension_numbers = #tpu.dot_dimension_numbers<[1], [0], [0], [1], [0, 0, 1, 1], [], []>} : vector<4x32xf32>, vector<32x32xf32>, vector<4x32xf32> -> vector<4x32xf32>
    %66 = arith.addf %61, %65 : vector<4x32xf32>
    %c0_63 = arith.constant 0 : index
    %c0_64 = arith.constant 0 : index
    %c0_65 = arith.constant 0 : index
    %c0_66 = arith.constant 0 : index
    %67 = vector.load %arg3[%c0_63, %c0_64, %c0_65, %c0_66] : memref<1x1x6x48xf32, #tpu.memory_space<vmem>>, vector<1x1x6x48xf32>
    %68 = vector.shape_cast %67 : vector<1x1x6x48xf32> to vector<6x48xf32>
    %c1_i32_67 = arith.constant 1 : i32
    %69 = arith.addi %arg1, %c1_i32_67 : i32
    %c1_i32_68 = arith.constant 1 : i32
    %70 = arith.cmpi sge, %69, %c1_i32_68 : i32
    %c1_i32_69 = arith.constant 1 : i32
    %71 = arith.addi %arg1, %c1_i32_69 : i32
    %c4_i32_70 = arith.constant 4 : i32
    %72 = arith.cmpi sle, %71, %c4_i32_70 : i32
    %73 = arith.andi %70, %72 : i1
    %74 = arith.extui %73 : i1 to i32
    %75 = arith.sitofp %74 : i32 to f32
    %76 = vector.broadcast %0 : vector<1x48xf32> to vector<6x48xf32>
    %77 = arith.mulf %68, %76 : vector<6x48xf32>
    %78 = vector.broadcast %1 : vector<1x48xf32> to vector<6x48xf32>
    %79 = arith.addf %77, %78 : vector<6x48xf32>
    %cst_71 = arith.constant 0.000000e+00 : f32
    %80 = vector.broadcast %cst_71 : f32 to vector<6x48xf32>
    %81 = arith.maximumf %79, %80 : vector<6x48xf32>
    %82 = vector.broadcast %75 : f32 to vector<6x48xf32>
    %83 = arith.mulf %2, %82 : vector<6x48xf32>
    %84 = arith.mulf %81, %83 : vector<6x48xf32>
    %85 = vector.extract_strided_slice %84 {offsets = [0, 0], sizes = [4, 32], strides = [1, 1]} : vector<6x48xf32> to vector<4x32xf32>
    %c1_72 = arith.constant 1 : index
    %c0_73 = arith.constant 0 : index
    %c0_74 = arith.constant 0 : index
    %c0_75 = arith.constant 0 : index
    %c0_76 = arith.constant 0 : index
    %86 = vector.load %arg8[%c1_72, %c0_73, %c0_74, %c0_75, %c0_76] : memref<3x3x3x32x32xf32, #tpu.memory_space<vmem>>, vector<1x1x1x32x32xf32>
    %87 = vector.shape_cast %86 : vector<1x1x1x32x32xf32> to vector<32x32xf32>
    %cst_77 = arith.constant dense<0.000000e+00> : vector<4x32xf32>
    %88 = tpu.matmul %85, %87, %cst_77 {dimension_numbers = #tpu.dot_dimension_numbers<[1], [0], [0], [1], [0, 0, 1, 1], [], []>} : vector<4x32xf32>, vector<32x32xf32>, vector<4x32xf32> -> vector<4x32xf32>
    %89 = arith.addf %66, %88 : vector<4x32xf32>
    %90 = vector.extract_strided_slice %84 {offsets = [0, 8], sizes = [4, 32], strides = [1, 1]} : vector<6x48xf32> to vector<4x32xf32>
    %c1_78 = arith.constant 1 : index
    %c0_79 = arith.constant 0 : index
    %c1_80 = arith.constant 1 : index
    %c0_81 = arith.constant 0 : index
    %c0_82 = arith.constant 0 : index
    %91 = vector.load %arg8[%c1_78, %c0_79, %c1_80, %c0_81, %c0_82] : memref<3x3x3x32x32xf32, #tpu.memory_space<vmem>>, vector<1x1x1x32x32xf32>
    %92 = vector.shape_cast %91 : vector<1x1x1x32x32xf32> to vector<32x32xf32>
    %cst_83 = arith.constant dense<0.000000e+00> : vector<4x32xf32>
    %93 = tpu.matmul %90, %92, %cst_83 {dimension_numbers = #tpu.dot_dimension_numbers<[1], [0], [0], [1], [0, 0, 1, 1], [], []>} : vector<4x32xf32>, vector<32x32xf32>, vector<4x32xf32> -> vector<4x32xf32>
    %94 = arith.addf %89, %93 : vector<4x32xf32>
    %95 = vector.extract_strided_slice %84 {offsets = [0, 16], sizes = [4, 32], strides = [1, 1]} : vector<6x48xf32> to vector<4x32xf32>
    %c1_84 = arith.constant 1 : index
    %c0_85 = arith.constant 0 : index
    %c2_86 = arith.constant 2 : index
    %c0_87 = arith.constant 0 : index
    %c0_88 = arith.constant 0 : index
    %96 = vector.load %arg8[%c1_84, %c0_85, %c2_86, %c0_87, %c0_88] : memref<3x3x3x32x32xf32, #tpu.memory_space<vmem>>, vector<1x1x1x32x32xf32>
    %97 = vector.shape_cast %96 : vector<1x1x1x32x32xf32> to vector<32x32xf32>
    %cst_89 = arith.constant dense<0.000000e+00> : vector<4x32xf32>
    %98 = tpu.matmul %95, %97, %cst_89 {dimension_numbers = #tpu.dot_dimension_numbers<[1], [0], [0], [1], [0, 0, 1, 1], [], []>} : vector<4x32xf32>, vector<32x32xf32>, vector<4x32xf32> -> vector<4x32xf32>
    %99 = arith.addf %94, %98 : vector<4x32xf32>
    %100 = vector.extract_strided_slice %84 {offsets = [1, 0], sizes = [4, 32], strides = [1, 1]} : vector<6x48xf32> to vector<4x32xf32>
    %c1_90 = arith.constant 1 : index
    %c1_91 = arith.constant 1 : index
    %c0_92 = arith.constant 0 : index
    %c0_93 = arith.constant 0 : index
    %c0_94 = arith.constant 0 : index
    %101 = vector.load %arg8[%c1_90, %c1_91, %c0_92, %c0_93, %c0_94] : memref<3x3x3x32x32xf32, #tpu.memory_space<vmem>>, vector<1x1x1x32x32xf32>
    %102 = vector.shape_cast %101 : vector<1x1x1x32x32xf32> to vector<32x32xf32>
    %cst_95 = arith.constant dense<0.000000e+00> : vector<4x32xf32>
    %103 = tpu.matmul %100, %102, %cst_95 {dimension_numbers = #tpu.dot_dimension_numbers<[1], [0], [0], [1], [0, 0, 1, 1], [], []>} : vector<4x32xf32>, vector<32x32xf32>, vector<4x32xf32> -> vector<4x32xf32>
    %104 = arith.addf %99, %103 : vector<4x32xf32>
    %105 = vector.extract_strided_slice %84 {offsets = [1, 8], sizes = [4, 32], strides = [1, 1]} : vector<6x48xf32> to vector<4x32xf32>
    %c1_96 = arith.constant 1 : index
    %c1_97 = arith.constant 1 : index
    %c1_98 = arith.constant 1 : index
    %c0_99 = arith.constant 0 : index
    %c0_100 = arith.constant 0 : index
    %106 = vector.load %arg8[%c1_96, %c1_97, %c1_98, %c0_99, %c0_100] : memref<3x3x3x32x32xf32, #tpu.memory_space<vmem>>, vector<1x1x1x32x32xf32>
    %107 = vector.shape_cast %106 : vector<1x1x1x32x32xf32> to vector<32x32xf32>
    %cst_101 = arith.constant dense<0.000000e+00> : vector<4x32xf32>
    %108 = tpu.matmul %105, %107, %cst_101 {dimension_numbers = #tpu.dot_dimension_numbers<[1], [0], [0], [1], [0, 0, 1, 1], [], []>} : vector<4x32xf32>, vector<32x32xf32>, vector<4x32xf32> -> vector<4x32xf32>
    %109 = arith.addf %104, %108 : vector<4x32xf32>
    %110 = vector.extract_strided_slice %84 {offsets = [1, 16], sizes = [4, 32], strides = [1, 1]} : vector<6x48xf32> to vector<4x32xf32>
    %c1_102 = arith.constant 1 : index
    %c1_103 = arith.constant 1 : index
    %c2_104 = arith.constant 2 : index
    %c0_105 = arith.constant 0 : index
    %c0_106 = arith.constant 0 : index
    %111 = vector.load %arg8[%c1_102, %c1_103, %c2_104, %c0_105, %c0_106] : memref<3x3x3x32x32xf32, #tpu.memory_space<vmem>>, vector<1x1x1x32x32xf32>
    %112 = vector.shape_cast %111 : vector<1x1x1x32x32xf32> to vector<32x32xf32>
    %cst_107 = arith.constant dense<0.000000e+00> : vector<4x32xf32>
    %113 = tpu.matmul %110, %112, %cst_107 {dimension_numbers = #tpu.dot_dimension_numbers<[1], [0], [0], [1], [0, 0, 1, 1], [], []>} : vector<4x32xf32>, vector<32x32xf32>, vector<4x32xf32> -> vector<4x32xf32>
    %114 = arith.addf %109, %113 : vector<4x32xf32>
    %115 = vector.extract_strided_slice %84 {offsets = [2, 0], sizes = [4, 32], strides = [1, 1]} : vector<6x48xf32> to vector<4x32xf32>
    %c1_108 = arith.constant 1 : index
    %c2_109 = arith.constant 2 : index
    %c0_110 = arith.constant 0 : index
    %c0_111 = arith.constant 0 : index
    %c0_112 = arith.constant 0 : index
    %116 = vector.load %arg8[%c1_108, %c2_109, %c0_110, %c0_111, %c0_112] : memref<3x3x3x32x32xf32, #tpu.memory_space<vmem>>, vector<1x1x1x32x32xf32>
    %117 = vector.shape_cast %116 : vector<1x1x1x32x32xf32> to vector<32x32xf32>
    %cst_113 = arith.constant dense<0.000000e+00> : vector<4x32xf32>
    %118 = tpu.matmul %115, %117, %cst_113 {dimension_numbers = #tpu.dot_dimension_numbers<[1], [0], [0], [1], [0, 0, 1, 1], [], []>} : vector<4x32xf32>, vector<32x32xf32>, vector<4x32xf32> -> vector<4x32xf32>
    %119 = arith.addf %114, %118 : vector<4x32xf32>
    %120 = vector.extract_strided_slice %84 {offsets = [2, 8], sizes = [4, 32], strides = [1, 1]} : vector<6x48xf32> to vector<4x32xf32>
    %c1_114 = arith.constant 1 : index
    %c2_115 = arith.constant 2 : index
    %c1_116 = arith.constant 1 : index
    %c0_117 = arith.constant 0 : index
    %c0_118 = arith.constant 0 : index
    %121 = vector.load %arg8[%c1_114, %c2_115, %c1_116, %c0_117, %c0_118] : memref<3x3x3x32x32xf32, #tpu.memory_space<vmem>>, vector<1x1x1x32x32xf32>
    %122 = vector.shape_cast %121 : vector<1x1x1x32x32xf32> to vector<32x32xf32>
    %cst_119 = arith.constant dense<0.000000e+00> : vector<4x32xf32>
    %123 = tpu.matmul %120, %122, %cst_119 {dimension_numbers = #tpu.dot_dimension_numbers<[1], [0], [0], [1], [0, 0, 1, 1], [], []>} : vector<4x32xf32>, vector<32x32xf32>, vector<4x32xf32> -> vector<4x32xf32>
    %124 = arith.addf %119, %123 : vector<4x32xf32>
    %125 = vector.extract_strided_slice %84 {offsets = [2, 16], sizes = [4, 32], strides = [1, 1]} : vector<6x48xf32> to vector<4x32xf32>
    %c1_120 = arith.constant 1 : index
    %c2_121 = arith.constant 2 : index
    %c2_122 = arith.constant 2 : index
    %c0_123 = arith.constant 0 : index
    %c0_124 = arith.constant 0 : index
    %126 = vector.load %arg8[%c1_120, %c2_121, %c2_122, %c0_123, %c0_124] : memref<3x3x3x32x32xf32, #tpu.memory_space<vmem>>, vector<1x1x1x32x32xf32>
    %127 = vector.shape_cast %126 : vector<1x1x1x32x32xf32> to vector<32x32xf32>
    %cst_125 = arith.constant dense<0.000000e+00> : vector<4x32xf32>
    %128 = tpu.matmul %125, %127, %cst_125 {dimension_numbers = #tpu.dot_dimension_numbers<[1], [0], [0], [1], [0, 0, 1, 1], [], []>} : vector<4x32xf32>, vector<32x32xf32>, vector<4x32xf32> -> vector<4x32xf32>
    %129 = arith.addf %124, %128 : vector<4x32xf32>
    %c0_126 = arith.constant 0 : index
    %c0_127 = arith.constant 0 : index
    %c0_128 = arith.constant 0 : index
    %c0_129 = arith.constant 0 : index
    %130 = vector.load %arg4[%c0_126, %c0_127, %c0_128, %c0_129] : memref<1x1x6x48xf32, #tpu.memory_space<vmem>>, vector<1x1x6x48xf32>
    %131 = vector.shape_cast %130 : vector<1x1x6x48xf32> to vector<6x48xf32>
    %c2_i32 = arith.constant 2 : i32
    %132 = arith.addi %arg1, %c2_i32 : i32
    %c1_i32_130 = arith.constant 1 : i32
    %133 = arith.cmpi sge, %132, %c1_i32_130 : i32
    %c2_i32_131 = arith.constant 2 : i32
    %134 = arith.addi %arg1, %c2_i32_131 : i32
    %c4_i32_132 = arith.constant 4 : i32
    %135 = arith.cmpi sle, %134, %c4_i32_132 : i32
    %136 = arith.andi %133, %135 : i1
    %137 = arith.extui %136 : i1 to i32
    %138 = arith.sitofp %137 : i32 to f32
    %139 = vector.broadcast %0 : vector<1x48xf32> to vector<6x48xf32>
    %140 = arith.mulf %131, %139 : vector<6x48xf32>
    %141 = vector.broadcast %1 : vector<1x48xf32> to vector<6x48xf32>
    %142 = arith.addf %140, %141 : vector<6x48xf32>
    %cst_133 = arith.constant 0.000000e+00 : f32
    %143 = vector.broadcast %cst_133 : f32 to vector<6x48xf32>
    %144 = arith.maximumf %142, %143 : vector<6x48xf32>
    %145 = vector.broadcast %138 : f32 to vector<6x48xf32>
    %146 = arith.mulf %2, %145 : vector<6x48xf32>
    %147 = arith.mulf %144, %146 : vector<6x48xf32>
    %148 = vector.extract_strided_slice %147 {offsets = [0, 0], sizes = [4, 32], strides = [1, 1]} : vector<6x48xf32> to vector<4x32xf32>
    %c2_134 = arith.constant 2 : index
    %c0_135 = arith.constant 0 : index
    %c0_136 = arith.constant 0 : index
    %c0_137 = arith.constant 0 : index
    %c0_138 = arith.constant 0 : index
    %149 = vector.load %arg8[%c2_134, %c0_135, %c0_136, %c0_137, %c0_138] : memref<3x3x3x32x32xf32, #tpu.memory_space<vmem>>, vector<1x1x1x32x32xf32>
    %150 = vector.shape_cast %149 : vector<1x1x1x32x32xf32> to vector<32x32xf32>
    %cst_139 = arith.constant dense<0.000000e+00> : vector<4x32xf32>
    %151 = tpu.matmul %148, %150, %cst_139 {dimension_numbers = #tpu.dot_dimension_numbers<[1], [0], [0], [1], [0, 0, 1, 1], [], []>} : vector<4x32xf32>, vector<32x32xf32>, vector<4x32xf32> -> vector<4x32xf32>
    %152 = arith.addf %129, %151 : vector<4x32xf32>
    %153 = vector.extract_strided_slice %147 {offsets = [0, 8], sizes = [4, 32], strides = [1, 1]} : vector<6x48xf32> to vector<4x32xf32>
    %c2_140 = arith.constant 2 : index
    %c0_141 = arith.constant 0 : index
    %c1_142 = arith.constant 1 : index
    %c0_143 = arith.constant 0 : index
    %c0_144 = arith.constant 0 : index
    %154 = vector.load %arg8[%c2_140, %c0_141, %c1_142, %c0_143, %c0_144] : memref<3x3x3x32x32xf32, #tpu.memory_space<vmem>>, vector<1x1x1x32x32xf32>
    %155 = vector.shape_cast %154 : vector<1x1x1x32x32xf32> to vector<32x32xf32>
    %cst_145 = arith.constant dense<0.000000e+00> : vector<4x32xf32>
    %156 = tpu.matmul %153, %155, %cst_145 {dimension_numbers = #tpu.dot_dimension_numbers<[1], [0], [0], [1], [0, 0, 1, 1], [], []>} : vector<4x32xf32>, vector<32x32xf32>, vector<4x32xf32> -> vector<4x32xf32>
    %157 = arith.addf %152, %156 : vector<4x32xf32>
    %158 = vector.extract_strided_slice %147 {offsets = [0, 16], sizes = [4, 32], strides = [1, 1]} : vector<6x48xf32> to vector<4x32xf32>
    %c2_146 = arith.constant 2 : index
    %c0_147 = arith.constant 0 : index
    %c2_148 = arith.constant 2 : index
    %c0_149 = arith.constant 0 : index
    %c0_150 = arith.constant 0 : index
    %159 = vector.load %arg8[%c2_146, %c0_147, %c2_148, %c0_149, %c0_150] : memref<3x3x3x32x32xf32, #tpu.memory_space<vmem>>, vector<1x1x1x32x32xf32>
    %160 = vector.shape_cast %159 : vector<1x1x1x32x32xf32> to vector<32x32xf32>
    %cst_151 = arith.constant dense<0.000000e+00> : vector<4x32xf32>
    %161 = tpu.matmul %158, %160, %cst_151 {dimension_numbers = #tpu.dot_dimension_numbers<[1], [0], [0], [1], [0, 0, 1, 1], [], []>} : vector<4x32xf32>, vector<32x32xf32>, vector<4x32xf32> -> vector<4x32xf32>
    %162 = arith.addf %157, %161 : vector<4x32xf32>
    %163 = vector.extract_strided_slice %147 {offsets = [1, 0], sizes = [4, 32], strides = [1, 1]} : vector<6x48xf32> to vector<4x32xf32>
    %c2_152 = arith.constant 2 : index
    %c1_153 = arith.constant 1 : index
    %c0_154 = arith.constant 0 : index
    %c0_155 = arith.constant 0 : index
    %c0_156 = arith.constant 0 : index
    %164 = vector.load %arg8[%c2_152, %c1_153, %c0_154, %c0_155, %c0_156] : memref<3x3x3x32x32xf32, #tpu.memory_space<vmem>>, vector<1x1x1x32x32xf32>
    %165 = vector.shape_cast %164 : vector<1x1x1x32x32xf32> to vector<32x32xf32>
    %cst_157 = arith.constant dense<0.000000e+00> : vector<4x32xf32>
    %166 = tpu.matmul %163, %165, %cst_157 {dimension_numbers = #tpu.dot_dimension_numbers<[1], [0], [0], [1], [0, 0, 1, 1], [], []>} : vector<4x32xf32>, vector<32x32xf32>, vector<4x32xf32> -> vector<4x32xf32>
    %167 = arith.addf %162, %166 : vector<4x32xf32>
    %168 = vector.extract_strided_slice %147 {offsets = [1, 8], sizes = [4, 32], strides = [1, 1]} : vector<6x48xf32> to vector<4x32xf32>
    %c2_158 = arith.constant 2 : index
    %c1_159 = arith.constant 1 : index
    %c1_160 = arith.constant 1 : index
    %c0_161 = arith.constant 0 : index
    %c0_162 = arith.constant 0 : index
    %169 = vector.load %arg8[%c2_158, %c1_159, %c1_160, %c0_161, %c0_162] : memref<3x3x3x32x32xf32, #tpu.memory_space<vmem>>, vector<1x1x1x32x32xf32>
    %170 = vector.shape_cast %169 : vector<1x1x1x32x32xf32> to vector<32x32xf32>
    %cst_163 = arith.constant dense<0.000000e+00> : vector<4x32xf32>
    %171 = tpu.matmul %168, %170, %cst_163 {dimension_numbers = #tpu.dot_dimension_numbers<[1], [0], [0], [1], [0, 0, 1, 1], [], []>} : vector<4x32xf32>, vector<32x32xf32>, vector<4x32xf32> -> vector<4x32xf32>
    %172 = arith.addf %167, %171 : vector<4x32xf32>
    %173 = vector.extract_strided_slice %147 {offsets = [1, 16], sizes = [4, 32], strides = [1, 1]} : vector<6x48xf32> to vector<4x32xf32>
    %c2_164 = arith.constant 2 : index
    %c1_165 = arith.constant 1 : index
    %c2_166 = arith.constant 2 : index
    %c0_167 = arith.constant 0 : index
    %c0_168 = arith.constant 0 : index
    %174 = vector.load %arg8[%c2_164, %c1_165, %c2_166, %c0_167, %c0_168] : memref<3x3x3x32x32xf32, #tpu.memory_space<vmem>>, vector<1x1x1x32x32xf32>
    %175 = vector.shape_cast %174 : vector<1x1x1x32x32xf32> to vector<32x32xf32>
    %cst_169 = arith.constant dense<0.000000e+00> : vector<4x32xf32>
    %176 = tpu.matmul %173, %175, %cst_169 {dimension_numbers = #tpu.dot_dimension_numbers<[1], [0], [0], [1], [0, 0, 1, 1], [], []>} : vector<4x32xf32>, vector<32x32xf32>, vector<4x32xf32> -> vector<4x32xf32>
    %177 = arith.addf %172, %176 : vector<4x32xf32>
    %178 = vector.extract_strided_slice %147 {offsets = [2, 0], sizes = [4, 32], strides = [1, 1]} : vector<6x48xf32> to vector<4x32xf32>
    %c2_170 = arith.constant 2 : index
    %c2_171 = arith.constant 2 : index
    %c0_172 = arith.constant 0 : index
    %c0_173 = arith.constant 0 : index
    %c0_174 = arith.constant 0 : index
    %179 = vector.load %arg8[%c2_170, %c2_171, %c0_172, %c0_173, %c0_174] : memref<3x3x3x32x32xf32, #tpu.memory_space<vmem>>, vector<1x1x1x32x32xf32>
    %180 = vector.shape_cast %179 : vector<1x1x1x32x32xf32> to vector<32x32xf32>
    %cst_175 = arith.constant dense<0.000000e+00> : vector<4x32xf32>
    %181 = tpu.matmul %178, %180, %cst_175 {dimension_numbers = #tpu.dot_dimension_numbers<[1], [0], [0], [1], [0, 0, 1, 1], [], []>} : vector<4x32xf32>, vector<32x32xf32>, vector<4x32xf32> -> vector<4x32xf32>
    %182 = arith.addf %177, %181 : vector<4x32xf32>
    %183 = vector.extract_strided_slice %147 {offsets = [2, 8], sizes = [4, 32], strides = [1, 1]} : vector<6x48xf32> to vector<4x32xf32>
    %c2_176 = arith.constant 2 : index
    %c2_177 = arith.constant 2 : index
    %c1_178 = arith.constant 1 : index
    %c0_179 = arith.constant 0 : index
    %c0_180 = arith.constant 0 : index
    %184 = vector.load %arg8[%c2_176, %c2_177, %c1_178, %c0_179, %c0_180] : memref<3x3x3x32x32xf32, #tpu.memory_space<vmem>>, vector<1x1x1x32x32xf32>
    %185 = vector.shape_cast %184 : vector<1x1x1x32x32xf32> to vector<32x32xf32>
    %cst_181 = arith.constant dense<0.000000e+00> : vector<4x32xf32>
    %186 = tpu.matmul %183, %185, %cst_181 {dimension_numbers = #tpu.dot_dimension_numbers<[1], [0], [0], [1], [0, 0, 1, 1], [], []>} : vector<4x32xf32>, vector<32x32xf32>, vector<4x32xf32> -> vector<4x32xf32>
    %187 = arith.addf %182, %186 : vector<4x32xf32>
    %188 = vector.extract_strided_slice %147 {offsets = [2, 16], sizes = [4, 32], strides = [1, 1]} : vector<6x48xf32> to vector<4x32xf32>
    %c2_182 = arith.constant 2 : index
    %c2_183 = arith.constant 2 : index
    %c2_184 = arith.constant 2 : index
    %c0_185 = arith.constant 0 : index
    %c0_186 = arith.constant 0 : index
    %189 = vector.load %arg8[%c2_182, %c2_183, %c2_184, %c0_185, %c0_186] : memref<3x3x3x32x32xf32, #tpu.memory_space<vmem>>, vector<1x1x1x32x32xf32>
    %190 = vector.shape_cast %189 : vector<1x1x1x32x32xf32> to vector<32x32xf32>
    %cst_187 = arith.constant dense<0.000000e+00> : vector<4x32xf32>
    %191 = tpu.matmul %188, %190, %cst_187 {dimension_numbers = #tpu.dot_dimension_numbers<[1], [0], [0], [1], [0, 0, 1, 1], [], []>} : vector<4x32xf32>, vector<32x32xf32>, vector<4x32xf32> -> vector<4x32xf32>
    %192 = arith.addf %187, %191 : vector<4x32xf32>
    %c0_188 = arith.constant 0 : index
    %c0_189 = arith.constant 0 : index
    %193 = vector.load %arg9[%c0_188, %c0_189] : memref<1x32xf32, #tpu.memory_space<vmem>>, vector<1x32xf32>
    %194 = vector.broadcast %193 : vector<1x32xf32> to vector<4x32xf32>
    %195 = arith.addf %192, %194 : vector<4x32xf32>
    %196 = vector.shape_cast %195 : vector<4x32xf32> to vector<1x1x4x32xf32>
    %c0_190 = arith.constant 0 : index
    %c0_191 = arith.constant 0 : index
    %c0_192 = arith.constant 0 : index
    %c0_193 = arith.constant 0 : index
    %197 = vector.load %arg10[%c0_190, %c0_191, %c0_192, %c0_193] : memref<1x1x4x32xf32, #tpu.memory_space<vmem>>, vector<1x1x4x32xf32>
    tpu.vector_store %arg10[%c0_190, %c0_191, %c0_192, %c0_193], %196 {strides = array<i32>} : memref<1x1x4x32xf32, #tpu.memory_space<vmem>>, vector<1x1x4x32xf32>,
    %cst_194 = arith.constant 0.000000e+00 : f32
    %198 = vector.broadcast %cst_194 : f32 to vector<4x8xf32>
    %cst_195 = arith.constant 0.000000e+00 : f32
    %199 = vector.broadcast %cst_195 : f32 to vector<4x8xf32>
    %200 = vector.extract_strided_slice %195 {offsets = [0, 0], sizes = [4, 8], strides = [1, 1]} : vector<4x32xf32> to vector<4x8xf32>
    %201 = arith.addf %198, %200 : vector<4x8xf32>
    %202 = arith.mulf %200, %200 : vector<4x8xf32>
    %203 = arith.addf %199, %202 : vector<4x8xf32>
    %204 = vector.extract_strided_slice %195 {offsets = [0, 8], sizes = [4, 8], strides = [1, 1]} : vector<4x32xf32> to vector<4x8xf32>
    %205 = arith.addf %201, %204 : vector<4x8xf32>
    %206 = arith.mulf %204, %204 : vector<4x8xf32>
    %207 = arith.addf %203, %206 : vector<4x8xf32>
    %208 = vector.extract_strided_slice %195 {offsets = [0, 16], sizes = [4, 8], strides = [1, 1]} : vector<4x32xf32> to vector<4x8xf32>
    %209 = arith.addf %205, %208 : vector<4x8xf32>
    %210 = arith.mulf %208, %208 : vector<4x8xf32>
    %211 = arith.addf %207, %210 : vector<4x8xf32>
    %212 = vector.extract_strided_slice %195 {offsets = [0, 24], sizes = [4, 8], strides = [1, 1]} : vector<4x32xf32> to vector<4x8xf32>
    %213 = arith.addf %209, %212 : vector<4x8xf32>
    %214 = arith.mulf %212, %212 : vector<4x8xf32>
    %215 = arith.addf %211, %214 : vector<4x8xf32>
    %cst_196 = arith.constant dense<0.000000e+00> : vector<8xf32>
    %216 = vector.multi_reduction <add>, %213, %cst_196 [0] : vector<4x8xf32> to vector<8xf32>
    %217 = vector.shape_cast %216 : vector<8xf32> to vector<1x8xf32>
    %cst_197 = arith.constant dense<0.000000e+00> : vector<8xf32>
    %218 = vector.multi_reduction <add>, %215, %cst_197 [0] : vector<4x8xf32> to vector<8xf32>
    %219 = vector.shape_cast %218 : vector<8xf32> to vector<1x8xf32>
    %220 = tpu.concatenate %217, %219 in 0 : vector<1x8xf32>, vector<1x8xf32> -> vector<2x8xf32>
    %221 = vector.shape_cast %220 : vector<2x8xf32> to vector<1x1x2x8xf32>
    %c0_198 = arith.constant 0 : index
    %c0_199 = arith.constant 0 : index
    %c0_200 = arith.constant 0 : index
    %c0_201 = arith.constant 0 : index
    %222 = vector.load %arg11[%c0_198, %c0_199, %c0_200, %c0_201] : memref<1x1x2x8xf32, #tpu.memory_space<vmem>>, vector<1x1x2x8xf32>
    tpu.vector_store %arg11[%c0_198, %c0_199, %c0_200, %c0_201], %221 {strides = array<i32>} : memref<1x1x2x8xf32, #tpu.memory_space<vmem>>, vector<1x1x2x8xf32>,
    return
  }
  func.func @transform_0(%arg0: i32, %arg1: i32) -> (i32, i32, i32, i32) {
    %c0_i32 = arith.constant 0 : i32
    %c0_i32_0 = arith.constant 0 : i32
    %c0_i32_1 = arith.constant 0 : i32
    return %arg0, %arg1, %c0_i32, %c0_i32_0 : i32, i32, i32, i32
  }
  func.func @transform_1(%arg0: i32, %arg1: i32) -> (i32, i32, i32, i32) {
    %c1_i32 = arith.constant 1 : i32
    %0 = arith.addi %arg1, %c1_i32 : i32
    %c0_i32 = arith.constant 0 : i32
    %c0_i32_0 = arith.constant 0 : i32
    %c0_i32_1 = arith.constant 0 : i32
    return %arg0, %0, %c0_i32, %c0_i32_0 : i32, i32, i32, i32
  }
  func.func @transform_2(%arg0: i32, %arg1: i32) -> (i32, i32, i32, i32) {
    %c2_i32 = arith.constant 2 : i32
    %0 = arith.addi %arg1, %c2_i32 : i32
    %c0_i32 = arith.constant 0 : i32
    %c0_i32_0 = arith.constant 0 : i32
    %c0_i32_1 = arith.constant 0 : i32
    return %arg0, %0, %c0_i32, %c0_i32_0 : i32, i32, i32, i32
  }
  func.func @transform_3(%arg0: i32, %arg1: i32) -> (i32, i32) {
    %c0_i32 = arith.constant 0 : i32
    %c0_i32_0 = arith.constant 0 : i32
    %c0_i32_1 = arith.constant 0 : i32
    return %c0_i32, %c0_i32_0 : i32, i32
  }
  func.func @transform_4(%arg0: i32, %arg1: i32) -> (i32, i32) {
    %c0_i32 = arith.constant 0 : i32
    %c0_i32_0 = arith.constant 0 : i32
    %c0_i32_1 = arith.constant 0 : i32
    return %c0_i32, %c0_i32_0 : i32, i32
  }
  func.func @transform_5(%arg0: i32, %arg1: i32) -> (i32, i32) {
    %c0_i32 = arith.constant 0 : i32
    %c0_i32_0 = arith.constant 0 : i32
    %c0_i32_1 = arith.constant 0 : i32
    return %c0_i32, %c0_i32_0 : i32, i32
  }
  func.func @transform_6(%arg0: i32, %arg1: i32) -> (i32, i32, i32, i32, i32) {
    %c0_i32 = arith.constant 0 : i32
    %c0_i32_0 = arith.constant 0 : i32
    %c0_i32_1 = arith.constant 0 : i32
    %c0_i32_2 = arith.constant 0 : i32
    %c0_i32_3 = arith.constant 0 : i32
    %c0_i32_4 = arith.constant 0 : i32
    return %c0_i32, %c0_i32_0, %c0_i32_1, %c0_i32_2, %c0_i32_3 : i32, i32, i32, i32, i32
  }
  func.func @transform_7(%arg0: i32, %arg1: i32) -> (i32, i32) {
    %c0_i32 = arith.constant 0 : i32
    %c0_i32_0 = arith.constant 0 : i32
    %c0_i32_1 = arith.constant 0 : i32
    return %c0_i32, %c0_i32_0 : i32, i32
  }
  func.func @transform_8(%arg0: i32, %arg1: i32) -> (i32, i32, i32, i32) {
    %c0_i32 = arith.constant 0 : i32
    %c0_i32_0 = arith.constant 0 : i32
    %c0_i32_1 = arith.constant 0 : i32
    return %arg0, %arg1, %c0_i32, %c0_i32_0 : i32, i32, i32, i32
  }
  func.func @transform_9(%arg0: i32, %arg1: i32) -> (i32, i32, i32, i32) {
    %c0_i32 = arith.constant 0 : i32
    %c0_i32_0 = arith.constant 0 : i32
    %c0_i32_1 = arith.constant 0 : i32
    return %arg0, %arg1, %c0_i32, %c0_i32_0 : i32, i32, i32, i32
  }
}

module attributes {stable_mosaic.version = 11 : i64} {
  func.func @_bn_relu_add_kernel(%arg0: i32, %arg1: memref<8x128xf32, #tpu.memory_space<vmem>>, %arg2: memref<8x128xf32, #tpu.memory_space<vmem>>, %arg3: memref<1x128xf32, #tpu.memory_space<vmem>>, %arg4: memref<1x128xf32, #tpu.memory_space<vmem>>, %arg5: memref<1x128xf32, #tpu.memory_space<vmem>>, %arg6: memref<1x128xf32, #tpu.memory_space<vmem>>, %arg7: memref<8x128xf32, #tpu.memory_space<vmem>>) attributes {dimension_semantics = [#tpu.dimension_semantics<parallel>], iteration_bounds = array<i64: 1>, scalar_prefetch = 0 : i64, scratch_operands = 0 : i64, tpu.core_type = #tpu.core_type<tc>, window_params = [{transform_indices = @transform_0, window_bounds = array<i64: 8, 128>}, {transform_indices = @transform_1, window_bounds = array<i64: 8, 128>}, {pipeline_mode = #tpu.pipeline_mode<synchronous>, transform_indices = @transform_2, window_bounds = array<i64: 1, 128>}, {pipeline_mode = #tpu.pipeline_mode<synchronous>, transform_indices = @transform_3, window_bounds = array<i64: 1, 128>}, {pipeline_mode = #tpu.pipeline_mode<synchronous>, transform_indices = @transform_4, window_bounds = array<i64: 1, 128>}, {pipeline_mode = #tpu.pipeline_mode<synchronous>, transform_indices = @transform_5, window_bounds = array<i64: 1, 128>}, {transform_indices = @transform_6, window_bounds = array<i64: 8, 128>}]} {
    %c0 = arith.constant 0 : index
    %c0_0 = arith.constant 0 : index
    %0 = vector.load %arg1[%c0, %c0_0] : memref<8x128xf32, #tpu.memory_space<vmem>>, vector<8x128xf32>
    %c0_1 = arith.constant 0 : index
    %c0_2 = arith.constant 0 : index
    %1 = vector.load %arg3[%c0_1, %c0_2] : memref<1x128xf32, #tpu.memory_space<vmem>>, vector<1x128xf32>
    %2 = vector.broadcast %1 : vector<1x128xf32> to vector<8x128xf32>
    %3 = arith.mulf %0, %2 : vector<8x128xf32>
    %c0_3 = arith.constant 0 : index
    %c0_4 = arith.constant 0 : index
    %4 = vector.load %arg4[%c0_3, %c0_4] : memref<1x128xf32, #tpu.memory_space<vmem>>, vector<1x128xf32>
    %5 = vector.broadcast %4 : vector<1x128xf32> to vector<8x128xf32>
    %6 = arith.addf %3, %5 : vector<8x128xf32>
    %cst = arith.constant 0.000000e+00 : f32
    %7 = vector.broadcast %cst : f32 to vector<8x128xf32>
    %8 = arith.maximumf %6, %7 : vector<8x128xf32>
    %c0_5 = arith.constant 0 : index
    %c0_6 = arith.constant 0 : index
    %9 = vector.load %arg2[%c0_5, %c0_6] : memref<8x128xf32, #tpu.memory_space<vmem>>, vector<8x128xf32>
    %c0_7 = arith.constant 0 : index
    %c0_8 = arith.constant 0 : index
    %10 = vector.load %arg5[%c0_7, %c0_8] : memref<1x128xf32, #tpu.memory_space<vmem>>, vector<1x128xf32>
    %11 = vector.broadcast %10 : vector<1x128xf32> to vector<8x128xf32>
    %12 = arith.mulf %9, %11 : vector<8x128xf32>
    %c0_9 = arith.constant 0 : index
    %c0_10 = arith.constant 0 : index
    %13 = vector.load %arg6[%c0_9, %c0_10] : memref<1x128xf32, #tpu.memory_space<vmem>>, vector<1x128xf32>
    %14 = vector.broadcast %13 : vector<1x128xf32> to vector<8x128xf32>
    %15 = arith.addf %12, %14 : vector<8x128xf32>
    %cst_11 = arith.constant 0.000000e+00 : f32
    %16 = vector.broadcast %cst_11 : f32 to vector<8x128xf32>
    %17 = arith.maximumf %15, %16 : vector<8x128xf32>
    %18 = arith.addf %8, %17 : vector<8x128xf32>
    %c0_12 = arith.constant 0 : index
    %c0_13 = arith.constant 0 : index
    %19 = vector.load %arg7[%c0_12, %c0_13] : memref<8x128xf32, #tpu.memory_space<vmem>>, vector<8x128xf32>
    tpu.vector_store %arg7[%c0_12, %c0_13], %18 {strides = array<i32>} : memref<8x128xf32, #tpu.memory_space<vmem>>, vector<8x128xf32>,
    return
  }
  func.func @transform_0(%arg0: i32) -> (i32, i32) {
    %c0_i32 = arith.constant 0 : i32
    %c0_i32_0 = arith.constant 0 : i32
    return %arg0, %c0_i32 : i32, i32
  }
  func.func @transform_1(%arg0: i32) -> (i32, i32) {
    %c0_i32 = arith.constant 0 : i32
    %c0_i32_0 = arith.constant 0 : i32
    return %arg0, %c0_i32 : i32, i32
  }
  func.func @transform_2(%arg0: i32) -> (i32, i32) {
    %c0_i32 = arith.constant 0 : i32
    %c0_i32_0 = arith.constant 0 : i32
    %c0_i32_1 = arith.constant 0 : i32
    return %c0_i32, %c0_i32_0 : i32, i32
  }
  func.func @transform_3(%arg0: i32) -> (i32, i32) {
    %c0_i32 = arith.constant 0 : i32
    %c0_i32_0 = arith.constant 0 : i32
    %c0_i32_1 = arith.constant 0 : i32
    return %c0_i32, %c0_i32_0 : i32, i32
  }
  func.func @transform_4(%arg0: i32) -> (i32, i32) {
    %c0_i32 = arith.constant 0 : i32
    %c0_i32_0 = arith.constant 0 : i32
    %c0_i32_1 = arith.constant 0 : i32
    return %c0_i32, %c0_i32_0 : i32, i32
  }
  func.func @transform_5(%arg0: i32) -> (i32, i32) {
    %c0_i32 = arith.constant 0 : i32
    %c0_i32_0 = arith.constant 0 : i32
    %c0_i32_1 = arith.constant 0 : i32
    return %c0_i32, %c0_i32_0 : i32, i32
  }
  func.func @transform_6(%arg0: i32) -> (i32, i32) {
    %c0_i32 = arith.constant 0 : i32
    %c0_i32_0 = arith.constant 0 : i32
    return %arg0, %c0_i32 : i32, i32
  }
}

</mosaic_0001>

<llo_original>
// kernel: encoder_block.4
$region0: #{encoder_block.4}
  #allocation0 [shape = 'u32[]', space=smem, size = 0x4, offset = 0x4, fixed_abs, tag = 'smem constant byte address 0x4 - core index']
  #allocation1 [shape = 'u32[144,128]{1,0:T(1,128)}', space=vmem, size = 0x12000, scoped, tag = 'internal scratch']
  %s0 = inlined_call_operand.vmem [shape: f32[128,32], index: 0, kind: input, shape index: {}]
  %s1 = inlined_call_operand.vmem [shape: f32[32,8], index: 1, kind: input, shape index: {}]
  %s2 = inlined_call_operand.vmem [shape: f32[1,8], index: 2, kind: input, shape index: {}]
  %s3 = inlined_call_operand.vmem [shape: f32[128,8], index: 3, kind: output, shape index: {0}]
  %s4 = inlined_call_operand.vmem [shape: f32[1,2,8], index: 4, kind: output, shape index: {1}]
  %5 = xla_tuple %s3, %s4
  %s6 = sld [smem:[#allocation0]]
  $region30: #{encoder_block.4} parent=0
    _
  %s8 = ssub.s32 1, %s6
  %s9 = scalar_select 0, %s8, %s6
  // Predicated region
  $region2: #{encoder_block.4} parent=0 // pred_check
    _
  $region3: #{encoder_block.4} parent=0 // pred_check_branch
    %11 = sbr.rel (0) target = $region5
  $region4: #{encoder_block.4} parent=0 // pred_region
    _
  $region5: #{encoder_block.4} parent=0 // pred_fallthru
    _
  // Predicated region
  $region6: #{encoder_block.4} parent=0 // pred_check
    _
  $region7: #{encoder_block.4} parent=0 // pred_check_branch
    %13 = sbr.rel (0) target = $region9
  $region8: #{encoder_block.4} parent=0 // pred_region
    _
  $region9: #{encoder_block.4} parent=0 // pred_fallthru
    _
  // Predicated region
  $region10: #{encoder_block.4} parent=0 // pred_check
    _
  $region11: #{encoder_block.4} parent=0 // pred_check_branch
    %15 = sbr.rel (0) target = $region13
  $region12: #{encoder_block.4} parent=0 // pred_region
    _
  $region13: #{encoder_block.4} parent=0 // pred_fallthru
    _
  %v16 = vld [vmem:[%s0] sm:$0xff]
  %v17 = vld [vmem:[%s0 + $0x8] sm:$0xff]
  %v18 = vld [vmem:[%s0 + $0x10] sm:$0xff]
  %v19 = vld [vmem:[%s0 + $0x18] sm:$0xff]
  %v20 = vld [vmem:[%s0 + $0x20] sm:$0xff]
  %v21 = vld [vmem:[%s0 + $0x28] sm:$0xff]
  %v22 = vld [vmem:[%s0 + $0x30] sm:$0xff]
  %v23 = vld [vmem:[%s0 + $0x38] sm:$0xff]
  %v24 = vld [vmem:[%s0 + $0x40] sm:$0xff]
  %v25 = vld [vmem:[%s0 + $0x48] sm:$0xff]
  %v26 = vld [vmem:[%s0 + $0x50] sm:$0xff]
  %v27 = vld [vmem:[%s0 + $0x58] sm:$0xff]
  %v28 = vld [vmem:[%s0 + $0x60] sm:$0xff]
  %v29 = vld [vmem:[%s0 + $0x68] sm:$0xff]
  %v30 = vld [vmem:[%s0 + $0x70] sm:$0xff]
  %v31 = vld [vmem:[%s0 + $0x78] sm:$0xff]
  %v32 = vld [vmem:[%s1] sm:$0xff]
  %v33 = vld [vmem:[%s1 + $0x8] sm:$0xff]
  %v34 = vld [vmem:[%s1 + $0x10] sm:$0xff]
  %v35 = vld [vmem:[%s1 + $0x18] sm:$0xff]
  %v36 = vld [vmem:[%s2] sm:$0x1]
  %v38 = vlaneseq
  %v39 = vshrl.u32 %v38, 7
  %v40 = vsub.s32 0, %v39
  %v41 = vrot.slane %v36, %v40
  %vm43 = vcmask 261120
  %v45 = vsel %vm43, %v16, 0
  %v48 = vsel %vm43, %v17, 0
  %v51 = vsel %vm43, %v18, 0
  %v54 = vsel %vm43, %v19, 0
  %v57 = vsel %vm43, %v20, 0
  %v60 = vsel %vm43, %v21, 0
  %v63 = vsel %vm43, %v22, 0
  %v66 = vsel %vm43, %v23, 0
  %v69 = vsel %vm43, %v24, 0
  %v72 = vsel %vm43, %v25, 0
  %v75 = vsel %vm43, %v26, 0
  %v78 = vsel %vm43, %v27, 0
  %v81 = vsel %vm43, %v28, 0
  %v84 = vsel %vm43, %v29, 0
  %v87 = vsel %vm43, %v30, 0
  %v90 = vsel %vm43, %v31, 0
  %92 = vmatprep.subr.mxu0 0.0
  %93 = vmatpush1.msra.mxu0 0.0
  %94 = vmatprep.subr.mxu0 0.0
  %95 = vmatpush1.msra.mxu0 0.0
  %96 = vmatprep.subr.mxu0 0.0
  %97 = vmatpush1.msra.mxu0 0.0
  %98 = vmatprep.subr.mxu0 0.0
  %99 = vmatpush1.msra.mxu0 0.0
  %100 = vmatprep.subr.mxu0 0.0
  %101 = vmatpush1.msra.mxu0 0.0
  %102 = vmatprep.subr.mxu0 0.0
  %103 = vmatpush1.msra.mxu0 0.0
  %104 = vmatprep.subr.mxu0 0.0
  %105 = vmatpush1.msra.mxu0 0.0
  %106 = vmatprep.subr.mxu0 0.0
  %107 = vmatpush1.msra.mxu0 0.0
  %108 = vmatprep.subr.mxu0 0.0
  %109 = vmatpush1.msra.mxu0 0.0
  %110 = vmatprep.subr.mxu0 0.0
  %111 = vmatpush1.msra.mxu0 0.0
  %112 = vmatprep.subr.mxu0 0.0
  %113 = vmatpush1.msra.mxu0 0.0
  %114 = vmatprep.subr.mxu0 0.0
  %115 = vmatpush1.msra.mxu0 0.0
  %116 = vmatprep.subr.mxu0 0.0
  %117 = vmatpush1.msra.mxu0 %v35
  %118 = vmatprep.subr.mxu0 0.0
  %119 = vmatpush1.msra.mxu0 %v34
  %120 = vmatprep.subr.mxu0 0.0
  %121 = vmatpush1.msra.mxu0 %v33
  %122 = vmatprep.subr.mxu0 0.0
  %123 = vmatpush1.msra.mxu0 %v32
  %124 = vmatprep.subr.mxu0 0.0
  %125 = vmatpush2.msra.mxu0 0.0
  %126 = vmatprep.subr.mxu0 0.0
  %127 = vmatpush2.msra.mxu0 0.0
  %128 = vmatprep.subr.mxu0 0.0
  %129 = vmatpush2.msra.mxu0 0.0
  %130 = vmatprep.subr.mxu0 0.0
  %131 = vmatpush2.msra.mxu0 0.0
  %132 = vmatprep.subr.mxu0 0.0
  %133 = vmatpush2.msra.mxu0 0.0
  %134 = vmatprep.subr.mxu0 0.0
  %135 = vmatpush2.msra.mxu0 0.0
  %136 = vmatprep.subr.mxu0 0.0
  %137 = vmatpush2.msra.mxu0 0.0
  %138 = vmatprep.subr.mxu0 0.0
  %139 = vmatpush2.msra.mxu0 0.0
  %140 = vmatprep.subr.mxu0 0.0
  %141 = vmatpush2.msra.mxu0 0.0
  %142 = vmatprep.subr.mxu0 0.0
  %143 = vmatpush2.msra.mxu0 0.0
  %144 = vmatprep.subr.mxu0 0.0
  %145 = vmatpush2.msra.mxu0 0.0
  %146 = vmatprep.subr.mxu0 0.0
  %147 = vmatpush2.msra.mxu0 0.0
  %148 = vmatprep.subr.mxu0 0.0
  %149 = vmatpush2.msra.mxu0 0.0
  %150 = vmatprep.subr.mxu0 0.0
  %151 = vmatpush2.msra.mxu0 0.0
  %152 = vmatprep.subr.mxu0 0.0
  %153 = vmatpush2.msra.mxu0 0.0
  %154 = vmatprep.subr.mxu0 0.0
  %155 = vmatpush2.msra.mxu0 0.0
  %156 = vmatprep.mubr.f32.mxu0 0.0
  %157 = vmatmul.mubr.f32.gmra.mxu0 %v45
  %v158 = vpop.f32.mrf.mxu0
  %v159 = vadd.f32 %v41, %v158
  %v160 = vpop.f32.mrf.mxu0
  %161 = vmatprep.mubr.f32.mxu0 0.0
  %162 = vmatmul.mubr.f32.gmra.mxu0 %v48
  %v163 = vpop.f32.mrf.mxu0
  %v164 = vadd.f32 %v41, %v163
  %v165 = vpop.f32.mrf.mxu0
  %166 = vmatprep.mubr.f32.mxu0 0.0
  %167 = vmatmul.mubr.f32.gmra.mxu0 %v51
  %v168 = vpop.f32.mrf.mxu0
  %v169 = vadd.f32 %v41, %v168
  %v170 = vpop.f32.mrf.mxu0
  %171 = vmatprep.mubr.f32.mxu0 0.0
  %172 = vmatmul.mubr.f32.gmra.mxu0 %v54
  %v173 = vpop.f32.mrf.mxu0
  %v174 = vadd.f32 %v41, %v173
  %v175 = vpop.f32.mrf.mxu0
  %176 = vmatprep.mubr.f32.mxu0 0.0
  %177 = vmatmul.mubr.f32.gmra.mxu0 %v57
  %v178 = vpop.f32.mrf.mxu0
  %v179 = vadd.f32 %v41, %v178
  %v180 = vpop.f32.mrf.mxu0
  %181 = vmatprep.mubr.f32.mxu0 0.0
  %182 = vmatmul.mubr.f32.gmra.mxu0 %v60
  %v183 = vpop.f32.mrf.mxu0
  %v184 = vadd.f32 %v41, %v183
  %v185 = vpop.f32.mrf.mxu0
  %186 = vmatprep.mubr.f32.mxu0 0.0
  %187 = vmatmul.mubr.f32.gmra.mxu0 %v63
  %v188 = vpop.f32.mrf.mxu0
  %v189 = vadd.f32 %v41, %v188
  %v190 = vpop.f32.mrf.mxu0
  %191 = vmatprep.mubr.f32.mxu0 0.0
  %192 = vmatmul.mubr.f32.gmra.mxu0 %v66
  %v193 = vpop.f32.mrf.mxu0
  %v194 = vadd.f32 %v41, %v193
  %v195 = vpop.f32.mrf.mxu0
  %196 = vmatprep.mubr.f32.mxu0 0.0
  %197 = vmatmul.mubr.f32.gmra.mxu0 %v69
  %v198 = vpop.f32.mrf.mxu0
  %v199 = vadd.f32 %v41, %v198
  %v200 = vpop.f32.mrf.mxu0
  %201 = vmatprep.mubr.f32.mxu0 0.0
  %202 = vmatmul.mubr.f32.gmra.mxu0 %v72
  %v203 = vpop.f32.mrf.mxu0
  %v204 = vadd.f32 %v41, %v203
  %v205 = vpop.f32.mrf.mxu0
  %206 = vmatprep.mubr.f32.mxu0 0.0
  %207 = vmatmul.mubr.f32.gmra.mxu0 %v75
  %v208 = vpop.f32.mrf.mxu0
  %v209 = vadd.f32 %v41, %v208
  %v210 = vpop.f32.mrf.mxu0
  %211 = vmatprep.mubr.f32.mxu0 0.0
  %212 = vmatmul.mubr.f32.gmra.mxu0 %v78
  %v213 = vpop.f32.mrf.mxu0
  %v214 = vadd.f32 %v41, %v213
  %v215 = vpop.f32.mrf.mxu0
  %216 = vmatprep.mubr.f32.mxu0 0.0
  %217 = vmatmul.mubr.f32.gmra.mxu0 %v81
  %v218 = vpop.f32.mrf.mxu0
  %v219 = vadd.f32 %v41, %v218
  %v220 = vpop.f32.mrf.mxu0
  %221 = vmatprep.mubr.f32.mxu0 0.0
  %222 = vmatmul.mubr.f32.gmra.mxu0 %v84
  %v223 = vpop.f32.mrf.mxu0
  %v224 = vadd.f32 %v41, %v223
  %v225 = vpop.f32.mrf.mxu0
  %226 = vmatprep.mubr.f32.mxu0 0.0
  %227 = vmatmul.mubr.f32.gmra.mxu0 %v87
  %v228 = vpop.f32.mrf.mxu0
  %v229 = vadd.f32 %v41, %v228
  %v230 = vpop.f32.mrf.mxu0
  %231 = vmatprep.mubr.f32.mxu0 0.0
  %232 = vmatmul.mubr.f32.gmra.mxu0 %v90
  %v233 = vpop.f32.mrf.mxu0
  %v234 = vadd.f32 %v41, %v233
  %v235 = vpop.f32.mrf.mxu0
  %236 = vdwg.mxu0
  %vm237 = vcmask 64512
  %238 = vst.msk [vmem:[%s3] sm:$0xff] %vm237, %v159
  %239 = vst.msk [vmem:[%s3 + $0x8] sm:$0xff] %vm237, %v164
  %240 = vst.msk [vmem:[%s3 + $0x10] sm:$0xff] %vm237, %v169
  %241 = vst.msk [vmem:[%s3 + $0x18] sm:$0xff] %vm237, %v174
  %242 = vst.msk [vmem:[%s3 + $0x20] sm:$0xff] %vm237, %v179
  %243 = vst.msk [vmem:[%s3 + $0x28] sm:$0xff] %vm237, %v184
  %244 = vst.msk [vmem:[%s3 + $0x30] sm:$0xff] %vm237, %v189
  %245 = vst.msk [vmem:[%s3 + $0x38] sm:$0xff] %vm237, %v194
  %246 = vst.msk [vmem:[%s3 + $0x40] sm:$0xff] %vm237, %v199
  %247 = vst.msk [vmem:[%s3 + $0x48] sm:$0xff] %vm237, %v204
  %248 = vst.msk [vmem:[%s3 + $0x50] sm:$0xff] %vm237, %v209
  %249 = vst.msk [vmem:[%s3 + $0x58] sm:$0xff] %vm237, %v214
  %250 = vst.msk [vmem:[%s3 + $0x60] sm:$0xff] %vm237, %v219
  %251 = vst.msk [vmem:[%s3 + $0x68] sm:$0xff] %vm237, %v224
  %252 = vst.msk [vmem:[%s3 + $0x70] sm:$0xff] %vm237, %v229
  %253 = vst.msk [vmem:[%s3 + $0x78] sm:$0xff] %vm237, %v234
  %v254 = vsel %vm237, %v159, 0.0
  %v255 = vsel %vm237, %v164, 0.0
  %v256 = vadd.f32 %v254, %v255
  %v257 = vsel %vm237, %v169, 0.0
  %v258 = vadd.f32 %v256, %v257
  %v259 = vsel %vm237, %v174, 0.0
  %v260 = vadd.f32 %v258, %v259
  %v261 = vsel %vm237, %v179, 0.0
  %v262 = vadd.f32 %v260, %v261
  %v263 = vsel %vm237, %v184, 0.0
  %v264 = vadd.f32 %v262, %v263
  %v265 = vsel %vm237, %v189, 0.0
  %v266 = vadd.f32 %v264, %v265
  %v267 = vsel %vm237, %v194, 0.0
  %v268 = vadd.f32 %v266, %v267
  %v269 = vsel %vm237, %v199, 0.0
  %v270 = vadd.f32 %v268, %v269
  %v271 = vsel %vm237, %v204, 0.0
  %v272 = vadd.f32 %v270, %v271
  %v273 = vsel %vm237, %v209, 0.0
  %v274 = vadd.f32 %v272, %v273
  %v275 = vsel %vm237, %v214, 0.0
  %v276 = vadd.f32 %v274, %v275
  %v277 = vsel %vm237, %v219, 0.0
  %v278 = vadd.f32 %v276, %v277
  %v279 = vsel %vm237, %v224, 0.0
  %v280 = vadd.f32 %v278, %v279
  %v281 = vsel %vm237, %v229, 0.0
  %v282 = vadd.f32 %v280, %v281
  %v283 = vsel %vm237, %v234, 0.0
  %v284 = vadd.f32 %v282, %v283
  %v285 = vrot.slane %v284, 4
  %v286 = vadd.f32 %v284, %v285
  %v287 = vrot.slane %v286, 2
  %v288 = vadd.f32 %v286, %v287
  %v289 = vrot.slane %v288, 1
  %v290 = vadd.f32 %v288, %v289
  %v291 = vmul.f32 %v159, %v159
  %v292 = vmul.f32 %v164, %v164
  %v293 = vmul.f32 %v169, %v169
  %v294 = vmul.f32 %v174, %v174
  %v295 = vmul.f32 %v179, %v179
  %v296 = vmul.f32 %v184, %v184
  %v297 = vmul.f32 %v189, %v189
  %v298 = vmul.f32 %v194, %v194
  %v299 = vmul.f32 %v199, %v199
  %v300 = vmul.f32 %v204, %v204
  %v301 = vmul.f32 %v209, %v209
  %v302 = vmul.f32 %v214, %v214
  %v303 = vmul.f32 %v219, %v219
  %v304 = vmul.f32 %v224, %v224
  %v305 = vmul.f32 %v229, %v229
  %v306 = vmul.f32 %v234, %v234
  %v307 = vsel %vm237, %v291, 0.0
  %v308 = vsel %vm237, %v292, 0.0
  %v309 = vadd.f32 %v307, %v308
  %v310 = vsel %vm237, %v293, 0.0
  %v311 = vadd.f32 %v309, %v310
  %v312 = vsel %vm237, %v294, 0.0
  %v313 = vadd.f32 %v311, %v312
  %v314 = vsel %vm237, %v295, 0.0
  %v315 = vadd.f32 %v313, %v314
  %v316 = vsel %vm237, %v296, 0.0
  %v317 = vadd.f32 %v315, %v316
  %v318 = vsel %vm237, %v297, 0.0
  %v319 = vadd.f32 %v317, %v318
  %v320 = vsel %vm237, %v298, 0.0
  %v321 = vadd.f32 %v319, %v320
  %v322 = vsel %vm237, %v299, 0.0
  %v323 = vadd.f32 %v321, %v322
  %v324 = vsel %vm237, %v300, 0.0
  %v325 = vadd.f32 %v323, %v324
  %v326 = vsel %vm237, %v301, 0.0
  %v327 = vadd.f32 %v325, %v326
  %v328 = vsel %vm237, %v302, 0.0
  %v329 = vadd.f32 %v327, %v328
  %v330 = vsel %vm237, %v303, 0.0
  %v331 = vadd.f32 %v329, %v330
  %v332 = vsel %vm237, %v304, 0.0
  %v333 = vadd.f32 %v331, %v332
  %v334 = vsel %vm237, %v305, 0.0
  %v335 = vadd.f32 %v333, %v334
  %v336 = vsel %vm237, %v306, 0.0
  %v337 = vadd.f32 %v335, %v336
  %v338 = vrot.slane %v337, 4
  %v339 = vadd.f32 %v337, %v338
  %v340 = vrot.slane %v339, 2
  %v341 = vadd.f32 %v339, %v340
  %v342 = vrot.slane %v341, 1
  %v343 = vadd.f32 %v341, %v342
  %vm344 = vcmask 1040384
  %v345 = vsel %vm344, %v290, %v343
  %vm346 = vcmask 58368
  %347 = vst.msk [vmem:[%s4] sm:$0x3] %vm346, %v345
  // Predicated region
  $region14: #{encoder_block.4} parent=0 // pred_check
    _
  $region15: #{encoder_block.4} parent=0 // pred_check_branch
    %349 = sbr.rel (0) target = $region17
  $region16: #{encoder_block.4} parent=0 // pred_region
    _
  $region17: #{encoder_block.4} parent=0 // pred_fallthru
    _
  // Predicated region
  $region18: #{encoder_block.4} parent=0 // pred_check
    _
  $region19: #{encoder_block.4} parent=0 // pred_check_branch
    %351 = sbr.rel (0) target = $region21
  $region20: #{encoder_block.4} parent=0 // pred_region
    _
  $region21: #{encoder_block.4} parent=0 // pred_fallthru
    _
  // Predicated region
  $region22: #{encoder_block.4} parent=0 // pred_check
    _
  $region23: #{encoder_block.4} parent=0 // pred_check_branch
    %353 = sbr.rel (0) target = $region25
  $region24: #{encoder_block.4} parent=0 // pred_region
    _
  $region25: #{encoder_block.4} parent=0 // pred_fallthru
    _
  // Predicated region
  $region26: #{encoder_block.4} parent=0 // pred_check
    _
  $region27: #{encoder_block.4} parent=0 // pred_check_branch
    %355 = sbr.rel (0) target = $region29
  $region28: #{encoder_block.4} parent=0 // pred_region
    _
  $region29: #{encoder_block.4} parent=0 // pred_fallthru
    _

// kernel: encoder_block.5
$region0: #{encoder_block.5}
  #allocation0 [shape = 'u32[]', space=smem, size = 0x4, offset = 0x4, fixed_abs, tag = 'smem constant byte address 0x4 - core index']
  #allocation1 [shape = 'u32[144,128]{1,0:T(1,128)}', space=vmem, size = 0x12000, scoped, tag = 'internal scratch']
  %s0 = inlined_call_operand.vmem [shape: f32[2,6,6,48], index: 0, kind: input, shape index: {}, may-alias: {0,1,2}]
  %s1 = inlined_call_operand.vmem [shape: f32[2,6,6,48], index: 1, kind: input, shape index: {}, may-alias: {0,1,2}]
  %s2 = inlined_call_operand.vmem [shape: f32[2,6,6,48], index: 2, kind: input, shape index: {}, may-alias: {0,1,2}]
  %s3 = inlined_call_operand.vmem [shape: f32[1,48], index: 3, kind: input, shape index: {}]
  %s4 = inlined_call_operand.vmem [shape: f32[1,48], index: 4, kind: input, shape index: {}]
  %s5 = inlined_call_operand.vmem [shape: f32[6,48], index: 5, kind: input, shape index: {}]
  %s6 = inlined_call_operand.vmem [shape: f32[3,3,3,32,32], index: 6, kind: input, shape index: {}]
  %s7 = inlined_call_operand.vmem [shape: f32[1,32], index: 7, kind: input, shape index: {}]
  %s8 = inlined_call_operand.vmem [shape: f32[2,4,4,32], index: 8, kind: output, shape index: {0}]
  %s9 = inlined_call_operand.vmem [shape: f32[2,4,2,8], index: 9, kind: output, shape index: {1}]
  %10 = xla_tuple %s8, %s9
  %s11 = sld [smem:[#allocation0]]
  $region73: #{encoder_block.5} parent=0
    _
  %s13 = ssub.s32 1, %s11
  %s14 = scalar_select 0, %s13, %s11
  loop: start=0, step=1, limit=10
  $region2: #{encoder_block.5} parent=0 // loop_pre_header
    _
  $region3: #{encoder_block.5} parent=0 // loop_header
    %s16 = sphi 0, %s20
    %p17 = scmp.ge.s32.totalorder %s16, 10
    %s23 = sphi 0, %s35
    %s24 = sphi 0, %s31
    %s25 = sphi 0, %s23
    %s26 = sphi 0, %s24
    %s27 = sphi 0, %s25
    %s28 = sphi 0, %s26
    %s40 = sphi 0, %s42
    %s43 = sphi 0, %s40
    %s44 = sphi 0, %s43
    %s60 = sphi 0, %s44
    %s70 = sphi 0, %s72
    %s73 = sphi 0, %s70
    %s74 = sphi 0, %s73
    %s90 = sphi 0, %s74
    %s100 = sphi 0, %s102
    %s103 = sphi 0, %s100
    %s104 = sphi 0, %s103
    %s120 = sphi 0, %s104
    %s124 = sphi 0, %s124
    %s126 = sphi 0, %s124
    %s127 = sphi 0, %s126
    %s141 = sphi 0, %s127
    %s145 = sphi 0, %s145
    %s147 = sphi 0, %s145
    %s148 = sphi 0, %s147
    %s162 = sphi 0, %s148
    %s166 = sphi 0, %s166
    %s168 = sphi 0, %s166
    %s169 = sphi 0, %s168
    %s183 = sphi 0, %s169
    %s187 = sphi 0, %s187
    %s189 = sphi 0, %s187
    %s190 = sphi 0, %s189
    %s204 = sphi 0, %s190
    %s208 = sphi 0, %s208
    %s210 = sphi 0, %s208
    %s211 = sphi 0, %s210
    %s225 = sphi 0, %s211
    %s233 = sphi 0, %s235
    %s236 = sphi 0, %s233
    %s237 = sphi 0, %s236
    %s253 = sphi 0, %s237
    %s261 = sphi 0, %s263
    %s264 = sphi 0, %s261
    %s265 = sphi 0, %s264
    %s281 = sphi 0, %s265
  $region4: #{encoder_block.5} parent=0 // loop_header_branch
    %19 = sbr.rel (%p17) target = $region8
  $region5: #{encoder_block.5} parent=0 // loop_body
    %s21 = ssub.s32 %s16, 1
    %s22 = ssub.s32 %s16, 2
    %s29 = sadd.s32 1, %s24
    %p30 = scmp.ge.s32.totalorder %s29, 4
    %s31 = scalar_select %p30, 0, %s29
    %s32 = sadd.s32 1, %s23
    %s33 = scalar_select %p30, %s32, %s23
    %p34 = scmp.ge.s32.totalorder %s33, 2
    %s35 = scalar_select %p34, 0, %s33
    %s36 = ssub.s32 %s23, %s35
    %s37 = ssub.s32 %s24, %s31
    %s38 = sor.u32 %s36, %s37
    %p39 = scmp.eq.s32.totalorder %s38, 0
    %s41 = sadd.s32 %s40, 1
    %s42 = scalar_select %p39, %s40, %s41
    %p45 = pneg %p39
    %p46 = scmp.eq.s32.totalorder %s16, 7
    %p47 = por %p45, %p46
    %p48 = scmp.ne.s32.totalorder %s40, %s43
    %p49 = scmp.eq.s32.totalorder %s16, 0
    %p50 = por %p48, %p49
    %p51 = scmp.ne.s32.totalorder %s40, %s43
    %p52 = scmp.eq.s32.totalorder %s21, 7
    %p53 = por %p51, %p52
    %p54 = scmp.ne.s32.totalorder %s43, %s44
    %p55 = scmp.eq.s32.totalorder %s21, 0
    %p56 = por %p54, %p55
    %p57 = scmp.ne.s32.totalorder %s43, %s44
    %p58 = scmp.eq.s32.totalorder %s22, 7
    %p59 = por %p57, %p58
    %p61 = scmp.ne.s32.totalorder %s44, %s60
    %p62 = scmp.eq.s32.totalorder %s22, 0
    %p63 = por %p61, %p62
    %s64 = sadd.s32 %s24, 1
    %s65 = sadd.s32 %s31, 1
    %s66 = ssub.s32 %s23, %s35
    %s67 = ssub.s32 %s64, %s65
    %s68 = sor.u32 %s66, %s67
    %p69 = scmp.eq.s32.totalorder %s68, 0
    %s71 = sadd.s32 %s70, 1
    %s72 = scalar_select %p69, %s70, %s71
    %p75 = pneg %p69
    %p76 = scmp.eq.s32.totalorder %s16, 7
    %p77 = por %p75, %p76
    %p78 = scmp.ne.s32.totalorder %s70, %s73
    %p79 = scmp.eq.s32.totalorder %s16, 0
    %p80 = por %p78, %p79
    %p81 = scmp.ne.s32.totalorder %s70, %s73
    %p82 = scmp.eq.s32.totalorder %s21, 7
    %p83 = por %p81, %p82
    %p84 = scmp.ne.s32.totalorder %s73, %s74
    %p85 = scmp.eq.s32.totalorder %s21, 0
    %p86 = por %p84, %p85
    %p87 = scmp.ne.s32.totalorder %s73, %s74
    %p88 = scmp.eq.s32.totalorder %s22, 7
    %p89 = por %p87, %p88
    %p91 = scmp.ne.s32.totalorder %s74, %s90
    %p92 = scmp.eq.s32.totalorder %s22, 0
    %p93 = por %p91, %p92
    %s94 = sadd.s32 %s24, 2
    %s95 = sadd.s32 %s31, 2
    %s96 = ssub.s32 %s23, %s35
    %s97 = ssub.s32 %s94, %s95
    %s98 = sor.u32 %s96, %s97
    %p99 = scmp.eq.s32.totalorder %s98, 0
    %s101 = sadd.s32 %s100, 1
    %s102 = scalar_select %p99, %s100, %s101
    %p105 = pneg %p99
    %p106 = scmp.eq.s32.totalorder %s16, 7
    %p107 = por %p105, %p106
    %p108 = scmp.ne.s32.totalorder %s100, %s103
    %p109 = scmp.eq.s32.totalorder %s16, 0
    %p110 = por %p108, %p109
    %p111 = scmp.ne.s32.totalorder %s100, %s103
    %p112 = scmp.eq.s32.totalorder %s21, 7
    %p113 = por %p111, %p112
    %p114 = scmp.ne.s32.totalorder %s103, %s104
    %p115 = scmp.eq.s32.totalorder %s21, 0
    %p116 = por %p114, %p115
    %p117 = scmp.ne.s32.totalorder %s103, %s104
    %p118 = scmp.eq.s32.totalorder %s22, 7
    %p119 = por %p117, %p118
    %p121 = scmp.ne.s32.totalorder %s104, %s120
    %p122 = scmp.eq.s32.totalorder %s22, 0
    %p123 = por %p121, %p122
    %s125 = sadd.s32 %s124, 1
    %p128 = scmp.eq.s32.totalorder %s16, 7
    %p129 = scmp.ne.s32.totalorder %s124, %s126
    %p130 = scmp.eq.s32.totalorder %s16, 0
    %p131 = por %p129, %p130
    %p132 = scmp.ne.s32.totalorder %s124, %s126
    %p133 = scmp.eq.s32.totalorder %s21, 7
    %p134 = por %p132, %p133
    %p135 = scmp.ne.s32.totalorder %s126, %s127
    %p136 = scmp.eq.s32.totalorder %s21, 0
    %p137 = por %p135, %p136
    %p138 = scmp.ne.s32.totalorder %s126, %s127
    %p139 = scmp.eq.s32.totalorder %s22, 7
    %p140 = por %p138, %p139
    %p142 = scmp.ne.s32.totalorder %s127, %s141
    %p143 = scmp.eq.s32.totalorder %s22, 0
    %p144 = por %p142, %p143
    %s146 = sadd.s32 %s145, 1
    %p149 = scmp.eq.s32.totalorder %s16, 7
    %p150 = scmp.ne.s32.totalorder %s145, %s147
    %p151 = scmp.eq.s32.totalorder %s16, 0
    %p152 = por %p150, %p151
    %p153 = scmp.ne.s32.totalorder %s145, %s147
    %p154 = scmp.eq.s32.totalorder %s21, 7
    %p155 = por %p153, %p154
    %p156 = scmp.ne.s32.totalorder %s147, %s148
    %p157 = scmp.eq.s32.totalorder %s21, 0
    %p158 = por %p156, %p157
    %p159 = scmp.ne.s32.totalorder %s147, %s148
    %p160 = scmp.eq.s32.totalorder %s22, 7
    %p161 = por %p159, %p160
    %p163 = scmp.ne.s32.totalorder %s148, %s162
    %p164 = scmp.eq.s32.totalorder %s22, 0
    %p165 = por %p163, %p164
    %s167 = sadd.s32 %s166, 1
    %p170 = scmp.eq.s32.totalorder %s16, 7
    %p171 = scmp.ne.s32.totalorder %s166, %s168
    %p172 = scmp.eq.s32.totalorder %s16, 0
    %p173 = por %p171, %p172
    %p174 = scmp.ne.s32.totalorder %s166, %s168
    %p175 = scmp.eq.s32.totalorder %s21, 7
    %p176 = por %p174, %p175
    %p177 = scmp.ne.s32.totalorder %s168, %s169
    %p178 = scmp.eq.s32.totalorder %s21, 0
    %p179 = por %p177, %p178
    %p180 = scmp.ne.s32.totalorder %s168, %s169
    %p181 = scmp.eq.s32.totalorder %s22, 7
    %p182 = por %p180, %p181
    %p184 = scmp.ne.s32.totalorder %s169, %s183
    %p185 = scmp.eq.s32.totalorder %s22, 0
    %p186 = por %p184, %p185
    %s188 = sadd.s32 %s187, 1
    %p191 = scmp.eq.s32.totalorder %s16, 7
    %p192 = scmp.ne.s32.totalorder %s187, %s189
    %p193 = scmp.eq.s32.totalorder %s16, 0
    %p194 = por %p192, %p193
    %p195 = scmp.ne.s32.totalorder %s187, %s189
    %p196 = scmp.eq.s32.totalorder %s21, 7
    %p197 = por %p195, %p196
    %p198 = scmp.ne.s32.totalorder %s189, %s190
    %p199 = scmp.eq.s32.totalorder %s21, 0
    %p200 = por %p198, %p199
    %p201 = scmp.ne.s32.totalorder %s189, %s190
    %p202 = scmp.eq.s32.totalorder %s22, 7
    %p203 = por %p201, %p202
    %p205 = scmp.ne.s32.totalorder %s190, %s204
    %p206 = scmp.eq.s32.totalorder %s22, 0
    %p207 = por %p205, %p206
    %s209 = sadd.s32 %s208, 1
    %p212 = scmp.eq.s32.totalorder %s16, 7
    %p213 = scmp.ne.s32.totalorder %s208, %s210
    %p214 = scmp.eq.s32.totalorder %s16, 0
    %p215 = por %p213, %p214
    %p216 = scmp.ne.s32.totalorder %s208, %s210
    %p217 = scmp.eq.s32.totalorder %s21, 7
    %p218 = por %p216, %p217
    %p219 = scmp.ne.s32.totalorder %s210, %s211
    %p220 = scmp.eq.s32.totalorder %s21, 0
    %p221 = por %p219, %p220
    %p222 = scmp.ne.s32.totalorder %s210, %s211
    %p223 = scmp.eq.s32.totalorder %s22, 7
    %p224 = por %p222, %p223
    %p226 = scmp.ne.s32.totalorder %s211, %s225
    %p227 = scmp.eq.s32.totalorder %s22, 0
    %p228 = por %p226, %p227
    %s229 = ssub.s32 %s23, %s35
    %s230 = ssub.s32 %s24, %s31
    %s231 = sor.u32 %s229, %s230
    %p232 = scmp.eq.s32.totalorder %s231, 0
    %s234 = sadd.s32 %s233, 1
    %s235 = scalar_select %p232, %s233, %s234
    %p238 = pneg %p232
    %p239 = scmp.eq.s32.totalorder %s16, 7
    %p240 = por %p238, %p239
    %p241 = scmp.ne.s32.totalorder %s233, %s236
    %p242 = scmp.eq.s32.totalorder %s16, 0
    %p243 = por %p241, %p242
    %p244 = scmp.ne.s32.totalorder %s233, %s236
    %p245 = scmp.eq.s32.totalorder %s21, 7
    %p246 = por %p244, %p245
    %p247 = scmp.ne.s32.totalorder %s236, %s237
    %p248 = scmp.eq.s32.totalorder %s21, 0
    %p249 = por %p247, %p248
    %p250 = scmp.ne.s32.totalorder %s236, %s237
    %p251 = scmp.eq.s32.totalorder %s22, 7
    %p252 = por %p250, %p251
    %p254 = scmp.ne.s32.totalorder %s237, %s253
    %p255 = scmp.eq.s32.totalorder %s22, 0
    %p256 = por %p254, %p255
    %s257 = ssub.s32 %s23, %s35
    %s258 = ssub.s32 %s24, %s31
    %s259 = sor.u32 %s257, %s258
    %p260 = scmp.eq.s32.totalorder %s259, 0
    %s262 = sadd.s32 %s261, 1
    %s263 = scalar_select %p260, %s261, %s262
    %p266 = pneg %p260
    %p267 = scmp.eq.s32.totalorder %s16, 7
    %p268 = por %p266, %p267
    %p269 = scmp.ne.s32.totalorder %s261, %s264
    %p270 = scmp.eq.s32.totalorder %s16, 0
    %p271 = por %p269, %p270
    %p272 = scmp.ne.s32.totalorder %s261, %s264
    %p273 = scmp.eq.s32.totalorder %s21, 7
    %p274 = por %p272, %p273
    %p275 = scmp.ne.s32.totalorder %s264, %s265
    %p276 = scmp.eq.s32.totalorder %s21, 0
    %p277 = por %p275, %p276
    %p278 = scmp.ne.s32.totalorder %s264, %s265
    %p279 = scmp.eq.s32.totalorder %s22, 7
    %p280 = por %p278, %p279
    %p282 = scmp.ne.s32.totalorder %s265, %s281
    %p283 = scmp.eq.s32.totalorder %s22, 0
    %p284 = por %p282, %p283
    %p285 = scmp.le.s32.totalorder 1, %s16
    %p286 = scmp.lt.s32.totalorder %s16, 9
    %p287 = pnand %p285, %p286
    %p288 = pneg %p287
    // Predicated region
    $region9: #{encoder_block.5} parent=5 // pred_check
      _
    $region10: #{encoder_block.5} parent=5 // pred_check_branch
      %290 = sbr.rel (%p287) target = $region12
    $region11: #{encoder_block.5} parent=5 // pred_region
      %s291 = ssub.s32 %s16, 1
      // Predicated region
      $region13: #{encoder_block.5} parent=11 // pred_check
        %p292 = pneg %p137
      $region14: #{encoder_block.5} parent=11 // pred_check_branch
        %294 = sbr.rel (%p292) target = $region16
      $region15: #{encoder_block.5} parent=11 // pred_region
        _
      $region16: #{encoder_block.5} parent=11 // pred_fallthru
        _
      // Predicated region
      $region17: #{encoder_block.5} parent=11 // pred_check
        %p295 = pneg %p158
      $region18: #{encoder_block.5} parent=11 // pred_check_branch
        %297 = sbr.rel (%p295) target = $region20
      $region19: #{encoder_block.5} parent=11 // pred_region
        _
      $region20: #{encoder_block.5} parent=11 // pred_fallthru
        _
      // Predicated region
      $region21: #{encoder_block.5} parent=11 // pred_check
        %p298 = pneg %p179
      $region22: #{encoder_block.5} parent=11 // pred_check_branch
        %300 = sbr.rel (%p298) target = $region24
      $region23: #{encoder_block.5} parent=11 // pred_region
        _
      $region24: #{encoder_block.5} parent=11 // pred_fallthru
        _
      // Predicated region
      $region25: #{encoder_block.5} parent=11 // pred_check
        %p301 = pneg %p200
      $region26: #{encoder_block.5} parent=11 // pred_check_branch
        %303 = sbr.rel (%p301) target = $region28
      $region27: #{encoder_block.5} parent=11 // pred_region
        _
      $region28: #{encoder_block.5} parent=11 // pred_fallthru
        _
      // Predicated region
      $region29: #{encoder_block.5} parent=11 // pred_check
        %p304 = pneg %p221
      $region30: #{encoder_block.5} parent=11 // pred_check_branch
        %306 = sbr.rel (%p304) target = $region32
      $region31: #{encoder_block.5} parent=11 // pred_region
        _
      $region32: #{encoder_block.5} parent=11 // pred_fallthru
        _
    $region12: #{encoder_block.5} parent=5 // pred_fallthru
      _
    %p307 = scmp.lt.s32.totalorder %s16, 8
    // Predicated region
    $region33: #{encoder_block.5} parent=5 // pred_check
      %p308 = pneg %p307
    $region34: #{encoder_block.5} parent=5 // pred_check_branch
      %310 = sbr.rel (%p308) target = $region36
    $region35: #{encoder_block.5} parent=5 // pred_region
      // Predicated region
      $region37: #{encoder_block.5} parent=35 // pred_check
        %p311 = pneg %p50
      $region38: #{encoder_block.5} parent=35 // pred_check_branch
        %313 = sbr.rel (%p311) target = $region40
      $region39: #{encoder_block.5} parent=35 // pred_region
        %p314 = scmp.lt.s32.totalorder %s23, 1
        %s315 = scalar_select %p314, %s23, 1
        %p316 = scmp.lt.s32.totalorder %s24, 5
        %s317 = scalar_select %p316, %s24, 5
        %s318 = smul.addr %s315, 6
        %s319 = sadd.s32 %s317, %s318
        %s320 = smul.addr %s319, 8
        %s321 = scalar_lea.vmem %s0, %s320
      $region40: #{encoder_block.5} parent=35 // pred_fallthru
        _
      // Predicated region
      $region41: #{encoder_block.5} parent=35 // pred_check
        %p322 = pneg %p80
      $region42: #{encoder_block.5} parent=35 // pred_check_branch
        %324 = sbr.rel (%p322) target = $region44
      $region43: #{encoder_block.5} parent=35 // pred_region
        %s325 = sadd.s32 %s24, 1
        %p326 = scmp.lt.s32.totalorder %s23, 1
        %s327 = scalar_select %p326, %s23, 1
        %p328 = scmp.lt.s32.totalorder %s325, 5
        %s329 = scalar_select %p328, %s325, 5
        %s330 = smul.addr %s327, 6
        %s331 = sadd.s32 %s329, %s330
        %s332 = smul.addr %s331, 8
        %s333 = scalar_lea.vmem %s1, %s332
        %s334 = sadd.s32 %s24, 1
      $region44: #{encoder_block.5} parent=35 // pred_fallthru
        _
      // Predicated region
      $region45: #{encoder_block.5} parent=35 // pred_check
        %p335 = pneg %p110
      $region46: #{encoder_block.5} parent=35 // pred_check_branch
        %337 = sbr.rel (%p335) target = $region48
      $region47: #{encoder_block.5} parent=35 // pred_region
        %s338 = sadd.s32 %s24, 2
        %p339 = scmp.lt.s32.totalorder %s23, 1
        %s340 = scalar_select %p339, %s23, 1
        %p341 = scmp.lt.s32.totalorder %s338, 5
        %s342 = scalar_select %p341, %s338, 5
        %s343 = smul.addr %s340, 6
        %s344 = sadd.s32 %s342, %s343
        %s345 = smul.addr %s344, 8
        %s346 = scalar_lea.vmem %s2, %s345
        %s347 = sadd.s32 %s24, 2
      $region48: #{encoder_block.5} parent=35 // pred_fallthru
        _
    $region36: #{encoder_block.5} parent=5 // pred_fallthru
      _
    %p348 = scmp.le.s32.totalorder 1, %s16
    %p349 = scmp.lt.s32.totalorder %s16, 9
    %p350 = pnand %p348, %p349
    %p351 = pneg %p350
    // Predicated region
    $region49: #{encoder_block.5} parent=5 // pred_check
      _
    $region50: #{encoder_block.5} parent=5 // pred_check_branch
      %353 = sbr.rel (%p350) target = $region52
    $region51: #{encoder_block.5} parent=5 // pred_region
      %s354 = ssub.s32 %s16, 1
      %p355 = scmp.lt.s32.totalorder %s25, 1
      %s356 = scalar_select %p355, %s25, 1
      %p357 = scmp.lt.s32.totalorder %s26, 5
      %s358 = scalar_select %p357, %s26, 5
      %s359 = smul.addr %s356, 6
      %s360 = sadd.s32 %s358, %s359
      %s361 = smul.addr %s360, 8
      %s362 = scalar_lea.vmem %s0, %s361
      %p363 = pneg %p56
      %p364 = pneg %p53
      %s365 = sadd.s32 %s26, 1
      %p366 = scmp.lt.s32.totalorder %s25, 1
      %s367 = scalar_select %p366, %s25, 1
      %p368 = scmp.lt.s32.totalorder %s365, 5
      %s369 = scalar_select %p368, %s365, 5
      %s370 = smul.addr %s367, 6
      %s371 = sadd.s32 %s369, %s370
      %s372 = smul.addr %s371, 8
      %s373 = scalar_lea.vmem %s1, %s372
      %p374 = pneg %p86
      %p375 = pneg %p83
      %s376 = sadd.s32 %s26, 2
      %p377 = scmp.lt.s32.totalorder %s25, 1
      %s378 = scalar_select %p377, %s25, 1
      %p379 = scmp.lt.s32.totalorder %s376, 5
      %s380 = scalar_select %p379, %s376, 5
      %s381 = smul.addr %s378, 6
      %s382 = sadd.s32 %s380, %s381
      %s383 = smul.addr %s382, 8
      %s384 = scalar_lea.vmem %s2, %s383
      %p385 = pneg %p116
      %p386 = pneg %p113
      %p387 = pneg %p137
      %p388 = pneg %p134
      %p389 = pneg %p158
      %p390 = pneg %p155
      %p391 = pneg %p179
      %p392 = pneg %p176
      %p393 = pneg %p200
      %p394 = pneg %p197
      %p395 = pneg %p221
      %p396 = pneg %p218
      %p397 = pneg %p249
      %p398 = pneg %p246
      %p399 = scmp.lt.s32.totalorder %s25, 1
      %s400 = scalar_select %p399, %s25, 1
      %p401 = scmp.lt.s32.totalorder %s26, 3
      %s402 = scalar_select %p401, %s26, 3
      %s403 = smul.addr %s400, 4
      %s404 = sadd.s32 %s402, %s403
      %s405 = smul.addr %s404, 4
      %s406 = scalar_lea.vmem %s8, %s405
      %p407 = pneg %p277
      %p408 = pneg %p274
      %p409 = scmp.lt.s32.totalorder %s25, 1
      %s410 = scalar_select %p409, %s25, 1
      %p411 = scmp.lt.s32.totalorder %s26, 3
      %s412 = scalar_select %p411, %s26, 3
      %s413 = smul.addr %s410, 4
      %s414 = sadd.s32 %s412, %s413
      %s415 = smul.addr %s414, 2
      %s416 = scalar_lea.vmem %s9, %s415
      %p417 = scmp.lt.s32.totalorder %s25, 1
      %s418 = scalar_select %p417, %s25, 1
      %p419 = scmp.lt.s32.totalorder %s26, 5
      %s420 = scalar_select %p419, %s26, 5
      %s421 = smul.addr %s418, 6
      %s422 = sadd.s32 %s420, %s421
      %s423 = smul.addr %s422, 8
      %s424 = scalar_lea.vmem %s0, %s423
      %s425 = sadd.s32 %s26, 1
      %p426 = scmp.lt.s32.totalorder %s25, 1
      %s427 = scalar_select %p426, %s25, 1
      %p428 = scmp.lt.s32.totalorder %s425, 5
      %s429 = scalar_select %p428, %s425, 5
      %s430 = smul.addr %s427, 6
      %s431 = sadd.s32 %s429, %s430
      %s432 = smul.addr %s431, 8
      %s433 = scalar_lea.vmem %s1, %s432
      %s434 = sadd.s32 %s26, 1
      %s435 = sadd.s32 %s26, 2
      %p436 = scmp.lt.s32.totalorder %s25, 1
      %s437 = scalar_select %p436, %s25, 1
      %p438 = scmp.lt.s32.totalorder %s435, 5
      %s439 = scalar_select %p438, %s435, 5
      %s440 = smul.addr %s437, 6
      %s441 = sadd.s32 %s439, %s440
      %s442 = smul.addr %s441, 8
      %s443 = scalar_lea.vmem %s2, %s442
      %s444 = sadd.s32 %s26, 2
      %p445 = scmp.lt.s32.totalorder %s25, 1
      %s446 = scalar_select %p445, %s25, 1
      %p447 = scmp.lt.s32.totalorder %s26, 3
      %s448 = scalar_select %p447, %s26, 3
      %s449 = smul.addr %s446, 4
      %s450 = sadd.s32 %s448, %s449
      %s451 = smul.addr %s450, 4
      %s452 = scalar_lea.vmem %s8, %s451
      %p453 = scmp.lt.s32.totalorder %s25, 1
      %s454 = scalar_select %p453, %s25, 1
      %p455 = scmp.lt.s32.totalorder %s26, 3
      %s456 = scalar_select %p455, %s26, 3
      %s457 = smul.addr %s454, 4
      %s458 = sadd.s32 %s456, %s457
      %s459 = smul.addr %s458, 2
      %s460 = scalar_lea.vmem %s9, %s459
      %v461 = vld [vmem:[%s3] sm:$0x1]
      %v462 = vld [vmem:[%s4] sm:$0x1]
      %v463 = vld [vmem:[%s5] sm:$0x3f]
      %v464 = vld [vmem:[%s424] sm:$0x3f]
      %p465 = scmp.ge.s32.totalorder %s26, 1
      %p466 = scmp.le.s32.totalorder %s26, 4
      %p467 = pnand %p465, %p466
      %p468 = pneg %p467
      %s469 = scalar_select %p468, 1, 0
      %s470 = scvt.s32.f32 %s469
      %v472 = vlaneseq
      %v473 = vshrl.u32 %v472, 7
      %v474 = vsub.s32 0, %v473
      %v475 = vrot.slane %v461, %v474
      %v477 = vmul.f32 %v464, %v475
      %v479 = vlaneseq
      %v480 = vshrl.u32 %v479, 7
      %v481 = vsub.s32 0, %v480
      %v482 = vrot.slane %v462, %v481
      %v484 = vadd.f32 %v477, %v482
      %v485 = vmax.f32 %v484, 0.0
      %v486 = vstv %s470
      %v487 = vmul.f32 %v463, %v486
      %v488 = vmul.f32 %v485, %v487
      %v489 = vld [vmem:[%s6] sm:$0xff]
      %v490 = vld [vmem:[%s6 + $0x8] sm:$0xff]
      %v491 = vld [vmem:[%s6 + $0x10] sm:$0xff]
      %v492 = vld [vmem:[%s6 + $0x18] sm:$0xff]
      %s493 = scalar_lea.vmem %s6, 32
      %v494 = vld [vmem:[%s493] sm:$0xff]
      %v495 = vld [vmem:[%s493 + $0x8] sm:$0xff]
      %v496 = vld [vmem:[%s493 + $0x10] sm:$0xff]
      %v497 = vld [vmem:[%s493 + $0x18] sm:$0xff]
      %499 = vrot.lane.b32.xlu0 %v488, 120
      %v500 = vpop.permute.xlu0 %499
      %vm501 = vcmask 261120
      %v502 = vsel %vm501, %v500, 0
      %504 = vmatprep.subr.mxu0 0.0
      %505 = vmatpush1.msra.mxu0 0.0
      %506 = vmatprep.subr.mxu0 0.0
      %507 = vmatpush1.msra.mxu0 0.0
      %508 = vmatprep.subr.mxu0 0.0
      %509 = vmatpush1.msra.mxu0 0.0
      %510 = vmatprep.subr.mxu0 0.0
      %511 = vmatpush1.msra.mxu0 0.0
      %512 = vmatprep.subr.mxu0 0.0
      %513 = vmatpush1.msra.mxu0 0.0
      %514 = vmatprep.subr.mxu0 0.0
      %515 = vmatpush1.msra.mxu0 0.0
      %516 = vmatprep.subr.mxu0 0.0
      %517 = vmatpush1.msra.mxu0 0.0
      %518 = vmatprep.subr.mxu0 0.0
      %519 = vmatpush1.msra.mxu0 0.0
      %520 = vmatprep.subr.mxu0 0.0
      %521 = vmatpush1.msra.mxu0 0.0
      %522 = vmatprep.subr.mxu0 0.0
      %523 = vmatpush1.msra.mxu0 0.0
      %524 = vmatprep.subr.mxu0 0.0
      %525 = vmatpush1.msra.mxu0 0.0
      %526 = vmatprep.subr.mxu0 0.0
      %527 = vmatpush1.msra.mxu0 0.0
      %528 = vmatprep.subr.mxu0 0.0
      %529 = vmatpush1.msra.mxu0 %v497
      %530 = vmatprep.subr.mxu0 0.0
      %531 = vmatpush1.msra.mxu0 %v496
      %532 = vmatprep.subr.mxu0 0.0
      %533 = vmatpush1.msra.mxu0 %v495
      %534 = vmatprep.subr.mxu0 0.0
      %535 = vmatpush1.msra.mxu0 %v494
      %536 = vmatprep.subr.mxu0 0.0
      %537 = vmatpush2.msra.mxu0 0.0
      %538 = vmatprep.subr.mxu0 0.0
      %539 = vmatpush2.msra.mxu0 0.0
      %540 = vmatprep.subr.mxu0 0.0
      %541 = vmatpush2.msra.mxu0 0.0
      %542 = vmatprep.subr.mxu0 0.0
      %543 = vmatpush2.msra.mxu0 0.0
      %544 = vmatprep.subr.mxu0 0.0
      %545 = vmatpush2.msra.mxu0 0.0
      %546 = vmatprep.subr.mxu0 0.0
      %547 = vmatpush2.msra.mxu0 0.0
      %548 = vmatprep.subr.mxu0 0.0
      %549 = vmatpush2.msra.mxu0 0.0
      %550 = vmatprep.subr.mxu0 0.0
      %551 = vmatpush2.msra.mxu0 0.0
      %552 = vmatprep.subr.mxu0 0.0
      %553 = vmatpush2.msra.mxu0 0.0
      %554 = vmatprep.subr.mxu0 0.0
      %555 = vmatpush2.msra.mxu0 0.0
      %556 = vmatprep.subr.mxu0 0.0
      %557 = vmatpush2.msra.mxu0 0.0
      %558 = vmatprep.subr.mxu0 0.0
      %559 = vmatpush2.msra.mxu0 0.0
      %560 = vmatprep.subr.mxu0 0.0
      %561 = vmatpush2.msra.mxu0 0.0
      %562 = vmatprep.subr.mxu0 0.0
      %563 = vmatpush2.msra.mxu0 0.0
      %564 = vmatprep.subr.mxu0 0.0
      %565 = vmatpush2.msra.mxu0 0.0
      %566 = vmatprep.subr.mxu0 0.0
      %567 = vmatpush2.msra.mxu0 0.0
      %568 = vmatprep.mubr.f32.mxu0 0.0
      %569 = vmatmul.mubr.f32.gmra.mxu0 %v502
      %v570 = vpop.f32.mrf.mxu0
      %v571 = vadd.f32 0.0, %v570
      %v572 = vpop.f32.mrf.mxu0
      %573 = vdwg.mxu0
      %v574 = vsel %vm501, %v488, 0
      %576 = vmatprep.subr.mxu0 0.0
      %577 = vmatpush1.msra.mxu0 0.0
      %578 = vmatprep.subr.mxu0 0.0
      %579 = vmatpush1.msra.mxu0 0.0
      %580 = vmatprep.subr.mxu0 0.0
      %581 = vmatpush1.msra.mxu0 0.0
      %582 = vmatprep.subr.mxu0 0.0
      %583 = vmatpush1.msra.mxu0 0.0
      %584 = vmatprep.subr.mxu0 0.0
      %585 = vmatpush1.msra.mxu0 0.0
      %586 = vmatprep.subr.mxu0 0.0
      %587 = vmatpush1.msra.mxu0 0.0
      %588 = vmatprep.subr.mxu0 0.0
      %589 = vmatpush1.msra.mxu0 0.0
      %590 = vmatprep.subr.mxu0 0.0
      %591 = vmatpush1.msra.mxu0 0.0
      %592 = vmatprep.subr.mxu0 0.0
      %593 = vmatpush1.msra.mxu0 0.0
      %594 = vmatprep.subr.mxu0 0.0
      %595 = vmatpush1.msra.mxu0 0.0
      %596 = vmatprep.subr.mxu0 0.0
      %597 = vmatpush1.msra.mxu0 0.0
      %598 = vmatprep.subr.mxu0 0.0
      %599 = vmatpush1.msra.mxu0 0.0
      %600 = vmatprep.subr.mxu0 0.0
      %601 = vmatpush1.msra.mxu0 %v492
      %602 = vmatprep.subr.mxu0 0.0
      %603 = vmatpush1.msra.mxu0 %v491
      %604 = vmatprep.subr.mxu0 0.0
      %605 = vmatpush1.msra.mxu0 %v490
      %606 = vmatprep.subr.mxu0 0.0
      %607 = vmatpush1.msra.mxu0 %v489
      %608 = vmatprep.subr.mxu0 0.0
      %609 = vmatpush2.msra.mxu0 0.0
      %610 = vmatprep.subr.mxu0 0.0
      %611 = vmatpush2.msra.mxu0 0.0
      %612 = vmatprep.subr.mxu0 0.0
      %613 = vmatpush2.msra.mxu0 0.0
      %614 = vmatprep.subr.mxu0 0.0
      %615 = vmatpush2.msra.mxu0 0.0
      %616 = vmatprep.subr.mxu0 0.0
      %617 = vmatpush2.msra.mxu0 0.0
      %618 = vmatprep.subr.mxu0 0.0
      %619 = vmatpush2.msra.mxu0 0.0
      %620 = vmatprep.subr.mxu0 0.0
      %621 = vmatpush2.msra.mxu0 0.0
      %622 = vmatprep.subr.mxu0 0.0
      %623 = vmatpush2.msra.mxu0 0.0
      %624 = vmatprep.subr.mxu0 0.0
      %625 = vmatpush2.msra.mxu0 0.0
      %626 = vmatprep.subr.mxu0 0.0
      %627 = vmatpush2.msra.mxu0 0.0
      %628 = vmatprep.subr.mxu0 0.0
      %629 = vmatpush2.msra.mxu0 0.0
      %630 = vmatprep.subr.mxu0 0.0
      %631 = vmatpush2.msra.mxu0 0.0
      %632 = vmatprep.subr.mxu0 0.0
      %633 = vmatpush2.msra.mxu0 0.0
      %634 = vmatprep.subr.mxu0 0.0
      %635 = vmatpush2.msra.mxu0 0.0
      %636 = vmatprep.subr.mxu0 0.0
      %637 = vmatpush2.msra.mxu0 0.0
      %638 = vmatprep.subr.mxu0 0.0
      %639 = vmatpush2.msra.mxu0 0.0
      %640 = vmatprep.mubr.f32.mxu0 0.0
      %641 = vmatmul.mubr.f32.gmra.mxu0 %v574
      %v642 = vpop.f32.mrf.mxu0
      %v643 = vadd.f32 %v571, %v642
      %v644 = vpop.f32.mrf.mxu0
      %645 = vdwg.mxu0
      %s646 = scalar_lea.vmem %s6, 64
      %v647 = vld [vmem:[%s646] sm:$0xff]
      %v648 = vld [vmem:[%s646 + $0x8] sm:$0xff]
      %v649 = vld [vmem:[%s646 + $0x10] sm:$0xff]
      %v650 = vld [vmem:[%s646 + $0x18] sm:$0xff]
      %651 = vrot.lane.b32.xlu0 %v488, 112
      %v652 = vpop.permute.xlu0 %651
      %v653 = vsel %vm501, %v652, 0
      %655 = vmatprep.subr.mxu0 0.0
      %656 = vmatpush1.msra.mxu0 0.0
      %657 = vmatprep.subr.mxu0 0.0
      %658 = vmatpush1.msra.mxu0 0.0
      %659 = vmatprep.subr.mxu0 0.0
      %660 = vmatpush1.msra.mxu0 0.0
      %661 = vmatprep.subr.mxu0 0.0
      %662 = vmatpush1.msra.mxu0 0.0
      %663 = vmatprep.subr.mxu0 0.0
      %664 = vmatpush1.msra.mxu0 0.0
      %665 = vmatprep.subr.mxu0 0.0
      %666 = vmatpush1.msra.mxu0 0.0
      %667 = vmatprep.subr.mxu0 0.0
      %668 = vmatpush1.msra.mxu0 0.0
      %669 = vmatprep.subr.mxu0 0.0
      %670 = vmatpush1.msra.mxu0 0.0
      %671 = vmatprep.subr.mxu0 0.0
      %672 = vmatpush1.msra.mxu0 0.0
      %673 = vmatprep.subr.mxu0 0.0
      %674 = vmatpush1.msra.mxu0 0.0
      %675 = vmatprep.subr.mxu0 0.0
      %676 = vmatpush1.msra.mxu0 0.0
      %677 = vmatprep.subr.mxu0 0.0
      %678 = vmatpush1.msra.mxu0 0.0
      %679 = vmatprep.subr.mxu0 0.0
      %680 = vmatpush1.msra.mxu0 %v650
      %681 = vmatprep.subr.mxu0 0.0
      %682 = vmatpush1.msra.mxu0 %v649
      %683 = vmatprep.subr.mxu0 0.0
      %684 = vmatpush1.msra.mxu0 %v648
      %685 = vmatprep.subr.mxu0 0.0
      %686 = vmatpush1.msra.mxu0 %v647
      %687 = vmatprep.subr.mxu0 0.0
      %688 = vmatpush2.msra.mxu0 0.0
      %689 = vmatprep.subr.mxu0 0.0
      %690 = vmatpush2.msra.mxu0 0.0
      %691 = vmatprep.subr.mxu0 0.0
      %692 = vmatpush2.msra.mxu0 0.0
      %693 = vmatprep.subr.mxu0 0.0
      %694 = vmatpush2.msra.mxu0 0.0
      %695 = vmatprep.subr.mxu0 0.0
      %696 = vmatpush2.msra.mxu0 0.0
      %697 = vmatprep.subr.mxu0 0.0
      %698 = vmatpush2.msra.mxu0 0.0
      %699 = vmatprep.subr.mxu0 0.0
      %700 = vmatpush2.msra.mxu0 0.0
      %701 = vmatprep.subr.mxu0 0.0
      %702 = vmatpush2.msra.mxu0 0.0
      %703 = vmatprep.subr.mxu0 0.0
      %704 = vmatpush2.msra.mxu0 0.0
      %705 = vmatprep.subr.mxu0 0.0
      %706 = vmatpush2.msra.mxu0 0.0
      %707 = vmatprep.subr.mxu0 0.0
      %708 = vmatpush2.msra.mxu0 0.0
      %709 = vmatprep.subr.mxu0 0.0
      %710 = vmatpush2.msra.mxu0 0.0
      %711 = vmatprep.subr.mxu0 0.0
      %712 = vmatpush2.msra.mxu0 0.0
      %713 = vmatprep.subr.mxu0 0.0
      %714 = vmatpush2.msra.mxu0 0.0
      %715 = vmatprep.subr.mxu0 0.0
      %716 = vmatpush2.msra.mxu0 0.0
      %717 = vmatprep.subr.mxu0 0.0
      %718 = vmatpush2.msra.mxu0 0.0
      %719 = vmatprep.mubr.f32.mxu0 0.0
      %720 = vmatmul.mubr.f32.gmra.mxu0 %v653
      %v721 = vpop.f32.mrf.mxu0
      %v722 = vadd.f32 0.0, %v721
      %v723 = vpop.f32.mrf.mxu0
      %724 = vdwg.mxu0
      %v725 = vadd.f32 %v643, %v722
      %s726 = scalar_lea.vmem %s6, 96
      %v727 = vld [vmem:[%s726] sm:$0xff]
      %v728 = vld [vmem:[%s726 + $0x8] sm:$0xff]
      %v729 = vld [vmem:[%s726 + $0x10] sm:$0xff]
      %v730 = vld [vmem:[%s726 + $0x18] sm:$0xff]
      %v731 = vrot.slane %v488, 1
      %v732 = vsel %vm501, %v731, 0
      %734 = vmatprep.subr.mxu0 0.0
      %735 = vmatpush1.msra.mxu0 0.0
      %736 = vmatprep.subr.mxu0 0.0
      %737 = vmatpush1.msra.mxu0 0.0
      %738 = vmatprep.subr.mxu0 0.0
      %739 = vmatpush1.msra.mxu0 0.0
      %740 = vmatprep.subr.mxu0 0.0
      %741 = vmatpush1.msra.mxu0 0.0
      %742 = vmatprep.subr.mxu0 0.0
      %743 = vmatpush1.msra.mxu0 0.0
      %744 = vmatprep.subr.mxu0 0.0
      %745 = vmatpush1.msra.mxu0 0.0
      %746 = vmatprep.subr.mxu0 0.0
      %747 = vmatpush1.msra.mxu0 0.0
      %748 = vmatprep.subr.mxu0 0.0
      %749 = vmatpush1.msra.mxu0 0.0
      %750 = vmatprep.subr.mxu0 0.0
      %751 = vmatpush1.msra.mxu0 0.0
      %752 = vmatprep.subr.mxu0 0.0
      %753 = vmatpush1.msra.mxu0 0.0
      %754 = vmatprep.subr.mxu0 0.0
      %755 = vmatpush1.msra.mxu0 0.0
      %756 = vmatprep.subr.mxu0 0.0
      %757 = vmatpush1.msra.mxu0 0.0
      %758 = vmatprep.subr.mxu0 0.0
      %759 = vmatpush1.msra.mxu0 %v730
      %760 = vmatprep.subr.mxu0 0.0
      %761 = vmatpush1.msra.mxu0 %v729
      %762 = vmatprep.subr.mxu0 0.0
      %763 = vmatpush1.msra.mxu0 %v728
      %764 = vmatprep.subr.mxu0 0.0
      %765 = vmatpush1.msra.mxu0 %v727
      %766 = vmatprep.subr.mxu0 0.0
      %767 = vmatpush2.msra.mxu0 0.0
      %768 = vmatprep.subr.mxu0 0.0
      %769 = vmatpush2.msra.mxu0 0.0
      %770 = vmatprep.subr.mxu0 0.0
      %771 = vmatpush2.msra.mxu0 0.0
      %772 = vmatprep.subr.mxu0 0.0
      %773 = vmatpush2.msra.mxu0 0.0
      %774 = vmatprep.subr.mxu0 0.0
      %775 = vmatpush2.msra.mxu0 0.0
      %776 = vmatprep.subr.mxu0 0.0
      %777 = vmatpush2.msra.mxu0 0.0
      %778 = vmatprep.subr.mxu0 0.0
      %779 = vmatpush2.msra.mxu0 0.0
      %780 = vmatprep.subr.mxu0 0.0
      %781 = vmatpush2.msra.mxu0 0.0
      %782 = vmatprep.subr.mxu0 0.0
      %783 = vmatpush2.msra.mxu0 0.0
      %784 = vmatprep.subr.mxu0 0.0
      %785 = vmatpush2.msra.mxu0 0.0
      %786 = vmatprep.subr.mxu0 0.0
      %787 = vmatpush2.msra.mxu0 0.0
      %788 = vmatprep.subr.mxu0 0.0
      %789 = vmatpush2.msra.mxu0 0.0
      %790 = vmatprep.subr.mxu0 0.0
      %791 = vmatpush2.msra.mxu0 0.0
      %792 = vmatprep.subr.mxu0 0.0
      %793 = vmatpush2.msra.mxu0 0.0
      %794 = vmatprep.subr.mxu0 0.0
      %795 = vmatpush2.msra.mxu0 0.0
      %796 = vmatprep.subr.mxu0 0.0
      %797 = vmatpush2.msra.mxu0 0.0
      %798 = vmatprep.mubr.f32.mxu0 0.0
      %799 = vmatmul.mubr.f32.gmra.mxu0 %v732
      %v800 = vpop.f32.mrf.mxu0
      %v801 = vadd.f32 0.0, %v800
      %v802 = vpop.f32.mrf.mxu0
      %803 = vdwg.mxu0
      %v804 = vadd.f32 %v725, %v801
      %s805 = scalar_lea.vmem %s6, 128
      %v806 = vld [vmem:[%s805] sm:$0xff]
      %v807 = vld [vmem:[%s805 + $0x8] sm:$0xff]
      %v808 = vld [vmem:[%s805 + $0x10] sm:$0xff]
      %v809 = vld [vmem:[%s805 + $0x18] sm:$0xff]
      %810 = vrot.lane.b32.xlu0 %v731, 120
      %v811 = vpop.permute.xlu0 %810
      %v812 = vsel %vm501, %v811, 0
      %814 = vmatprep.subr.mxu0 0.0
      %815 = vmatpush1.msra.mxu0 0.0
      %816 = vmatprep.subr.mxu0 0.0
      %817 = vmatpush1.msra.mxu0 0.0
      %818 = vmatprep.subr.mxu0 0.0
      %819 = vmatpush1.msra.mxu0 0.0
      %820 = vmatprep.subr.mxu0 0.0
      %821 = vmatpush1.msra.mxu0 0.0
      %822 = vmatprep.subr.mxu0 0.0
      %823 = vmatpush1.msra.mxu0 0.0
      %824 = vmatprep.subr.mxu0 0.0
      %825 = vmatpush1.msra.mxu0 0.0
      %826 = vmatprep.subr.mxu0 0.0
      %827 = vmatpush1.msra.mxu0 0.0
      %828 = vmatprep.subr.mxu0 0.0
      %829 = vmatpush1.msra.mxu0 0.0
      %830 = vmatprep.subr.mxu0 0.0
      %831 = vmatpush1.msra.mxu0 0.0
      %832 = vmatprep.subr.mxu0 0.0
      %833 = vmatpush1.msra.mxu0 0.0
      %834 = vmatprep.subr.mxu0 0.0
      %835 = vmatpush1.msra.mxu0 0.0
      %836 = vmatprep.subr.mxu0 0.0
      %837 = vmatpush1.msra.mxu0 0.0
      %838 = vmatprep.subr.mxu0 0.0
      %839 = vmatpush1.msra.mxu0 %v809
      %840 = vmatprep.subr.mxu0 0.0
      %841 = vmatpush1.msra.mxu0 %v808
      %842 = vmatprep.subr.mxu0 0.0
      %843 = vmatpush1.msra.mxu0 %v807
      %844 = vmatprep.subr.mxu0 0.0
      %845 = vmatpush1.msra.mxu0 %v806
      %846 = vmatprep.subr.mxu0 0.0
      %847 = vmatpush2.msra.mxu0 0.0
      %848 = vmatprep.subr.mxu0 0.0
      %849 = vmatpush2.msra.mxu0 0.0
      %850 = vmatprep.subr.mxu0 0.0
      %851 = vmatpush2.msra.mxu0 0.0
      %852 = vmatprep.subr.mxu0 0.0
      %853 = vmatpush2.msra.mxu0 0.0
      %854 = vmatprep.subr.mxu0 0.0
      %855 = vmatpush2.msra.mxu0 0.0
      %856 = vmatprep.subr.mxu0 0.0
      %857 = vmatpush2.msra.mxu0 0.0
      %858 = vmatprep.subr.mxu0 0.0
      %859 = vmatpush2.msra.mxu0 0.0
      %860 = vmatprep.subr.mxu0 0.0
      %861 = vmatpush2.msra.mxu0 0.0
      %862 = vmatprep.subr.mxu0 0.0
      %863 = vmatpush2.msra.mxu0 0.0
      %864 = vmatprep.subr.mxu0 0.0
      %865 = vmatpush2.msra.mxu0 0.0
      %866 = vmatprep.subr.mxu0 0.0
      %867 = vmatpush2.msra.mxu0 0.0
      %868 = vmatprep.subr.mxu0 0.0
      %869 = vmatpush2.msra.mxu0 0.0
      %870 = vmatprep.subr.mxu0 0.0
      %871 = vmatpush2.msra.mxu0 0.0
      %872 = vmatprep.subr.mxu0 0.0
      %873 = vmatpush2.msra.mxu0 0.0
      %874 = vmatprep.subr.mxu0 0.0
      %875 = vmatpush2.msra.mxu0 0.0
      %876 = vmatprep.subr.mxu0 0.0
      %877 = vmatpush2.msra.mxu0 0.0
      %878 = vmatprep.mubr.f32.mxu0 0.0
      %879 = vmatmul.mubr.f32.gmra.mxu0 %v812
      %v880 = vpop.f32.mrf.mxu0
      %v881 = vadd.f32 0.0, %v880
      %v882 = vpop.f32.mrf.mxu0
      %883 = vdwg.mxu0
      %v884 = vadd.f32 %v804, %v881
      %s885 = scalar_lea.vmem %s6, 160
      %v886 = vld [vmem:[%s885] sm:$0xff]
      %v887 = vld [vmem:[%s885 + $0x8] sm:$0xff]
      %v888 = vld [vmem:[%s885 + $0x10] sm:$0xff]
      %v889 = vld [vmem:[%s885 + $0x18] sm:$0xff]
      %890 = vrot.lane.b32.xlu0 %v731, 112
      %v891 = vpop.permute.xlu0 %890
      %v892 = vsel %vm501, %v891, 0
      %894 = vmatprep.subr.mxu0 0.0
      %895 = vmatpush1.msra.mxu0 0.0
      %896 = vmatprep.subr.mxu0 0.0
      %897 = vmatpush1.msra.mxu0 0.0
      %898 = vmatprep.subr.mxu0 0.0
      %899 = vmatpush1.msra.mxu0 0.0
      %900 = vmatprep.subr.mxu0 0.0
      %901 = vmatpush1.msra.mxu0 0.0
      %902 = vmatprep.subr.mxu0 0.0
      %903 = vmatpush1.msra.mxu0 0.0
      %904 = vmatprep.subr.mxu0 0.0
      %905 = vmatpush1.msra.mxu0 0.0
      %906 = vmatprep.subr.mxu0 0.0
      %907 = vmatpush1.msra.mxu0 0.0
      %908 = vmatprep.subr.mxu0 0.0
      %909 = vmatpush1.msra.mxu0 0.0
      %910 = vmatprep.subr.mxu0 0.0
      %911 = vmatpush1.msra.mxu0 0.0
      %912 = vmatprep.subr.mxu0 0.0
      %913 = vmatpush1.msra.mxu0 0.0
      %914 = vmatprep.subr.mxu0 0.0
      %915 = vmatpush1.msra.mxu0 0.0
      %916 = vmatprep.subr.mxu0 0.0
      %917 = vmatpush1.msra.mxu0 0.0
      %918 = vmatprep.subr.mxu0 0.0
      %919 = vmatpush1.msra.mxu0 %v889
      %920 = vmatprep.subr.mxu0 0.0
      %921 = vmatpush1.msra.mxu0 %v888
      %922 = vmatprep.subr.mxu0 0.0
      %923 = vmatpush1.msra.mxu0 %v887
      %924 = vmatprep.subr.mxu0 0.0
      %925 = vmatpush1.msra.mxu0 %v886
      %926 = vmatprep.subr.mxu0 0.0
      %927 = vmatpush2.msra.mxu0 0.0
      %928 = vmatprep.subr.mxu0 0.0
      %929 = vmatpush2.msra.mxu0 0.0
      %930 = vmatprep.subr.mxu0 0.0
      %931 = vmatpush2.msra.mxu0 0.0
      %932 = vmatprep.subr.mxu0 0.0
      %933 = vmatpush2.msra.mxu0 0.0
      %934 = vmatprep.subr.mxu0 0.0
      %935 = vmatpush2.msra.mxu0 0.0
      %936 = vmatprep.subr.mxu0 0.0
      %937 = vmatpush2.msra.mxu0 0.0
      %938 = vmatprep.subr.mxu0 0.0
      %939 = vmatpush2.msra.mxu0 0.0
      %940 = vmatprep.subr.mxu0 0.0
      %941 = vmatpush2.msra.mxu0 0.0
      %942 = vmatprep.subr.mxu0 0.0
      %943 = vmatpush2.msra.mxu0 0.0
      %944 = vmatprep.subr.mxu0 0.0
      %945 = vmatpush2.msra.mxu0 0.0
      %946 = vmatprep.subr.mxu0 0.0
      %947 = vmatpush2.msra.mxu0 0.0
      %948 = vmatprep.subr.mxu0 0.0
      %949 = vmatpush2.msra.mxu0 0.0
      %950 = vmatprep.subr.mxu0 0.0
      %951 = vmatpush2.msra.mxu0 0.0
      %952 = vmatprep.subr.mxu0 0.0
      %953 = vmatpush2.msra.mxu0 0.0
      %954 = vmatprep.subr.mxu0 0.0
      %955 = vmatpush2.msra.mxu0 0.0
      %956 = vmatprep.subr.mxu0 0.0
      %957 = vmatpush2.msra.mxu0 0.0
      %958 = vmatprep.mubr.f32.mxu0 0.0
      %959 = vmatmul.mubr.f32.gmra.mxu0 %v892
      %v960 = vpop.f32.mrf.mxu0
      %v961 = vadd.f32 0.0, %v960
      %v962 = vpop.f32.mrf.mxu0
      %963 = vdwg.mxu0
      %v964 = vadd.f32 %v884, %v961
      %s965 = scalar_lea.vmem %s6, 192
      %v966 = vld [vmem:[%s965] sm:$0xff]
      %v967 = vld [vmem:[%s965 + $0x8] sm:$0xff]
      %v968 = vld [vmem:[%s965 + $0x10] sm:$0xff]
      %v969 = vld [vmem:[%s965 + $0x18] sm:$0xff]
      %v970 = vrot.slane %v488, 2
      %v971 = vsel %vm501, %v970, 0
      %973 = vmatprep.subr.mxu0 0.0
      %974 = vmatpush1.msra.mxu0 0.0
      %975 = vmatprep.subr.mxu0 0.0
      %976 = vmatpush1.msra.mxu0 0.0
      %977 = vmatprep.subr.mxu0 0.0
      %978 = vmatpush1.msra.mxu0 0.0
      %979 = vmatprep.subr.mxu0 0.0
      %980 = vmatpush1.msra.mxu0 0.0
      %981 = vmatprep.subr.mxu0 0.0
      %982 = vmatpush1.msra.mxu0 0.0
      %983 = vmatprep.subr.mxu0 0.0
      %984 = vmatpush1.msra.mxu0 0.0
      %985 = vmatprep.subr.mxu0 0.0
      %986 = vmatpush1.msra.mxu0 0.0
      %987 = vmatprep.subr.mxu0 0.0
      %988 = vmatpush1.msra.mxu0 0.0
      %989 = vmatprep.subr.mxu0 0.0
      %990 = vmatpush1.msra.mxu0 0.0
      %991 = vmatprep.subr.mxu0 0.0
      %992 = vmatpush1.msra.mxu0 0.0
      %993 = vmatprep.subr.mxu0 0.0
      %994 = vmatpush1.msra.mxu0 0.0
      %995 = vmatprep.subr.mxu0 0.0
      %996 = vmatpush1.msra.mxu0 0.0
      %997 = vmatprep.subr.mxu0 0.0
      %998 = vmatpush1.msra.mxu0 %v969
      %999 = vmatprep.subr.mxu0 0.0
      %1000 = vmatpush1.msra.mxu0 %v968
      %1001 = vmatprep.subr.mxu0 0.0
      %1002 = vmatpush1.msra.mxu0 %v967
      %1003 = vmatprep.subr.mxu0 0.0
      %1004 = vmatpush1.msra.mxu0 %v966
      %1005 = vmatprep.subr.mxu0 0.0
      %1006 = vmatpush2.msra.mxu0 0.0
      %1007 = vmatprep.subr.mxu0 0.0
      %1008 = vmatpush2.msra.mxu0 0.0
      %1009 = vmatprep.subr.mxu0 0.0
      %1010 = vmatpush2.msra.mxu0 0.0
      %1011 = vmatprep.subr.mxu0 0.0
      %1012 = vmatpush2.msra.mxu0 0.0
      %1013 = vmatprep.subr.mxu0 0.0
      %1014 = vmatpush2.msra.mxu0 0.0
      %1015 = vmatprep.subr.mxu0 0.0
      %1016 = vmatpush2.msra.mxu0 0.0
      %1017 = vmatprep.subr.mxu0 0.0
      %1018 = vmatpush2.msra.mxu0 0.0
      %1019 = vmatprep.subr.mxu0 0.0
      %1020 = vmatpush2.msra.mxu0 0.0
      %1021 = vmatprep.subr.mxu0 0.0
      %1022 = vmatpush2.msra.mxu0 0.0
      %1023 = vmatprep.subr.mxu0 0.0
      %1024 = vmatpush2.msra.mxu0 0.0
      %1025 = vmatprep.subr.mxu0 0.0
      %1026 = vmatpush2.msra.mxu0 0.0
      %1027 = vmatprep.subr.mxu0 0.0
      %1028 = vmatpush2.msra.mxu0 0.0
      %1029 = vmatprep.subr.mxu0 0.0
      %1030 = vmatpush2.msra.mxu0 0.0
      %1031 = vmatprep.subr.mxu0 0.0
      %1032 = vmatpush2.msra.mxu0 0.0
      %1033 = vmatprep.subr.mxu0 0.0
      %1034 = vmatpush2.msra.mxu0 0.0
      %1035 = vmatprep.subr.mxu0 0.0
      %1036 = vmatpush2.msra.mxu0 0.0
      %1037 = vmatprep.mubr.f32.mxu0 0.0
      %1038 = vmatmul.mubr.f32.gmra.mxu0 %v971
      %v1039 = vpop.f32.mrf.mxu0
      %v1040 = vadd.f32 0.0, %v1039
      %v1041 = vpop.f32.mrf.mxu0
      %1042 = vdwg.mxu0
      %v1043 = vadd.f32 %v964, %v1040
      %s1044 = scalar_lea.vmem %s6, 224
      %v1045 = vld [vmem:[%s1044] sm:$0xff]
      %v1046 = vld [vmem:[%s1044 + $0x8] sm:$0xff]
      %v1047 = vld [vmem:[%s1044 + $0x10] sm:$0xff]
      %v1048 = vld [vmem:[%s1044 + $0x18] sm:$0xff]
      %1049 = vrot.lane.b32.xlu0 %v970, 120
      %v1050 = vpop.permute.xlu0 %1049
      %v1051 = vsel %vm501, %v1050, 0
      %1053 = vmatprep.subr.mxu0 0.0
      %1054 = vmatpush1.msra.mxu0 0.0
      %1055 = vmatprep.subr.mxu0 0.0
      %1056 = vmatpush1.msra.mxu0 0.0
      %1057 = vmatprep.subr.mxu0 0.0
      %1058 = vmatpush1.msra.mxu0 0.0
      %1059 = vmatprep.subr.mxu0 0.0
      %1060 = vmatpush1.msra.mxu0 0.0
      %1061 = vmatprep.subr.mxu0 0.0
      %1062 = vmatpush1.msra.mxu0 0.0
      %1063 = vmatprep.subr.mxu0 0.0
      %1064 = vmatpush1.msra.mxu0 0.0
      %1065 = vmatprep.subr.mxu0 0.0
      %1066 = vmatpush1.msra.mxu0 0.0
      %1067 = vmatprep.subr.mxu0 0.0
      %1068 = vmatpush1.msra.mxu0 0.0
      %1069 = vmatprep.subr.mxu0 0.0
      %1070 = vmatpush1.msra.mxu0 0.0
      %1071 = vmatprep.subr.mxu0 0.0
      %1072 = vmatpush1.msra.mxu0 0.0
      %1073 = vmatprep.subr.mxu0 0.0
      %1074 = vmatpush1.msra.mxu0 0.0
      %1075 = vmatprep.subr.mxu0 0.0
      %1076 = vmatpush1.msra.mxu0 0.0
      %1077 = vmatprep.subr.mxu0 0.0
      %1078 = vmatpush1.msra.mxu0 %v1048
      %1079 = vmatprep.subr.mxu0 0.0
      %1080 = vmatpush1.msra.mxu0 %v1047
      %1081 = vmatprep.subr.mxu0 0.0
      %1082 = vmatpush1.msra.mxu0 %v1046
      %1083 = vmatprep.subr.mxu0 0.0
      %1084 = vmatpush1.msra.mxu0 %v1045
      %1085 = vmatprep.subr.mxu0 0.0
      %1086 = vmatpush2.msra.mxu0 0.0
      %1087 = vmatprep.subr.mxu0 0.0
      %1088 = vmatpush2.msra.mxu0 0.0
      %1089 = vmatprep.subr.mxu0 0.0
      %1090 = vmatpush2.msra.mxu0 0.0
      %1091 = vmatprep.subr.mxu0 0.0
      %1092 = vmatpush2.msra.mxu0 0.0
      %1093 = vmatprep.subr.mxu0 0.0
      %1094 = vmatpush2.msra.mxu0 0.0
      %1095 = vmatprep.subr.mxu0 0.0
      %1096 = vmatpush2.msra.mxu0 0.0
      %1097 = vmatprep.subr.mxu0 0.0
      %1098 = vmatpush2.msra.mxu0 0.0
      %1099 = vmatprep.subr.mxu0 0.0
      %1100 = vmatpush2.msra.mxu0 0.0
      %1101 = vmatprep.subr.mxu0 0.0
      %1102 = vmatpush2.msra.mxu0 0.0
      %1103 = vmatprep.subr.mxu0 0.0
      %1104 = vmatpush2.msra.mxu0 0.0
      %1105 = vmatprep.subr.mxu0 0.0
      %1106 = vmatpush2.msra.mxu0 0.0
      %1107 = vmatprep.subr.mxu0 0.0
      %1108 = vmatpush2.msra.mxu0 0.0
      %1109 = vmatprep.subr.mxu0 0.0
      %1110 = vmatpush2.msra.mxu0 0.0
      %1111 = vmatprep.subr.mxu0 0.0
      %1112 = vmatpush2.msra.mxu0 0.0
      %1113 = vmatprep.subr.mxu0 0.0
      %1114 = vmatpush2.msra.mxu0 0.0
      %1115 = vmatprep.subr.mxu0 0.0
      %1116 = vmatpush2.msra.mxu0 0.0
      %1117 = vmatprep.mubr.f32.mxu0 0.0
      %1118 = vmatmul.mubr.f32.gmra.mxu0 %v1051
      %v1119 = vpop.f32.mrf.mxu0
      %v1120 = vadd.f32 0.0, %v1119
      %v1121 = vpop.f32.mrf.mxu0
      %1122 = vdwg.mxu0
      %v1123 = vadd.f32 %v1043, %v1120
      %s1124 = scalar_lea.vmem %s6, 256
      %v1125 = vld [vmem:[%s1124] sm:$0xff]
      %v1126 = vld [vmem:[%s1124 + $0x8] sm:$0xff]
      %v1127 = vld [vmem:[%s1124 + $0x10] sm:$0xff]
      %v1128 = vld [vmem:[%s1124 + $0x18] sm:$0xff]
      %1129 = vrot.lane.b32.xlu0 %v970, 112
      %v1130 = vpop.permute.xlu0 %1129
      %v1131 = vsel %vm501, %v1130, 0
      %1133 = vmatprep.subr.mxu0 0.0
      %1134 = vmatpush1.msra.mxu0 0.0
      %1135 = vmatprep.subr.mxu0 0.0
      %1136 = vmatpush1.msra.mxu0 0.0
      %1137 = vmatprep.subr.mxu0 0.0
      %1138 = vmatpush1.msra.mxu0 0.0
      %1139 = vmatprep.subr.mxu0 0.0
      %1140 = vmatpush1.msra.mxu0 0.0
      %1141 = vmatprep.subr.mxu0 0.0
      %1142 = vmatpush1.msra.mxu0 0.0
      %1143 = vmatprep.subr.mxu0 0.0
      %1144 = vmatpush1.msra.mxu0 0.0
      %1145 = vmatprep.subr.mxu0 0.0
      %1146 = vmatpush1.msra.mxu0 0.0
      %1147 = vmatprep.subr.mxu0 0.0
      %1148 = vmatpush1.msra.mxu0 0.0
      %1149 = vmatprep.subr.mxu0 0.0
      %1150 = vmatpush1.msra.mxu0 0.0
      %1151 = vmatprep.subr.mxu0 0.0
      %1152 = vmatpush1.msra.mxu0 0.0
      %1153 = vmatprep.subr.mxu0 0.0
      %1154 = vmatpush1.msra.mxu0 0.0
      %1155 = vmatprep.subr.mxu0 0.0
      %1156 = vmatpush1.msra.mxu0 0.0
      %1157 = vmatprep.subr.mxu0 0.0
      %1158 = vmatpush1.msra.mxu0 %v1128
      %1159 = vmatprep.subr.mxu0 0.0
      %1160 = vmatpush1.msra.mxu0 %v1127
      %1161 = vmatprep.subr.mxu0 0.0
      %1162 = vmatpush1.msra.mxu0 %v1126
      %1163 = vmatprep.subr.mxu0 0.0
      %1164 = vmatpush1.msra.mxu0 %v1125
      %1165 = vmatprep.subr.mxu0 0.0
      %1166 = vmatpush2.msra.mxu0 0.0
      %1167 = vmatprep.subr.mxu0 0.0
      %1168 = vmatpush2.msra.mxu0 0.0
      %1169 = vmatprep.subr.mxu0 0.0
      %1170 = vmatpush2.msra.mxu0 0.0
      %1171 = vmatprep.subr.mxu0 0.0
      %1172 = vmatpush2.msra.mxu0 0.0
      %1173 = vmatprep.subr.mxu0 0.0
      %1174 = vmatpush2.msra.mxu0 0.0
      %1175 = vmatprep.subr.mxu0 0.0
      %1176 = vmatpush2.msra.mxu0 0.0
      %1177 = vmatprep.subr.mxu0 0.0
      %1178 = vmatpush2.msra.mxu0 0.0
      %1179 = vmatprep.subr.mxu0 0.0
      %1180 = vmatpush2.msra.mxu0 0.0
      %1181 = vmatprep.subr.mxu0 0.0
      %1182 = vmatpush2.msra.mxu0 0.0
      %1183 = vmatprep.subr.mxu0 0.0
      %1184 = vmatpush2.msra.mxu0 0.0
      %1185 = vmatprep.subr.mxu0 0.0
      %1186 = vmatpush2.msra.mxu0 0.0
      %1187 = vmatprep.subr.mxu0 0.0
      %1188 = vmatpush2.msra.mxu0 0.0
      %1189 = vmatprep.subr.mxu0 0.0
      %1190 = vmatpush2.msra.mxu0 0.0
      %1191 = vmatprep.subr.mxu0 0.0
      %1192 = vmatpush2.msra.mxu0 0.0
      %1193 = vmatprep.subr.mxu0 0.0
      %1194 = vmatpush2.msra.mxu0 0.0
      %1195 = vmatprep.subr.mxu0 0.0
      %1196 = vmatpush2.msra.mxu0 0.0
      %1197 = vmatprep.mubr.f32.mxu0 0.0
      %1198 = vmatmul.mubr.f32.gmra.mxu0 %v1131
      %v1199 = vpop.f32.mrf.mxu0
      %v1200 = vadd.f32 0.0, %v1199
      %v1201 = vpop.f32.mrf.mxu0
      %1202 = vdwg.mxu0
      %v1203 = vadd.f32 %v1123, %v1200
      %v1204 = vld [vmem:[%s433] sm:$0x3f]
      %s1205 = sadd.s32 %s26, 1
      %p1206 = scmp.ge.s32.totalorder %s1205, 1
      %p1207 = scmp.le.s32.totalorder %s1205, 4
      %p1208 = pnand %p1206, %p1207
      %p1209 = pneg %p1208
      %s1210 = scalar_select %p1209, 1, 0
      %s1211 = scvt.s32.f32 %s1210
      %v1212 = vmul.f32 %v1204, %v475
      %v1213 = vadd.f32 %v1212, %v482
      %v1214 = vmax.f32 %v1213, 0.0
      %v1215 = vstv %s1211
      %v1216 = vmul.f32 %v463, %v1215
      %v1217 = vmul.f32 %v1214, %v1216
      %s1218 = scalar_lea.vmem %s6, 288
      %v1219 = vld [vmem:[%s1218] sm:$0xff]
      %v1220 = vld [vmem:[%s1218 + $0x8] sm:$0xff]
      %v1221 = vld [vmem:[%s1218 + $0x10] sm:$0xff]
      %v1222 = vld [vmem:[%s1218 + $0x18] sm:$0xff]
      %v1224 = vsel %vm501, %v1217, 0
      %1226 = vmatprep.subr.mxu0 0.0
      %1227 = vmatpush1.msra.mxu0 0.0
      %1228 = vmatprep.subr.mxu0 0.0
      %1229 = vmatpush1.msra.mxu0 0.0
      %1230 = vmatprep.subr.mxu0 0.0
      %1231 = vmatpush1.msra.mxu0 0.0
      %1232 = vmatprep.subr.mxu0 0.0
      %1233 = vmatpush1.msra.mxu0 0.0
      %1234 = vmatprep.subr.mxu0 0.0
      %1235 = vmatpush1.msra.mxu0 0.0
      %1236 = vmatprep.subr.mxu0 0.0
      %1237 = vmatpush1.msra.mxu0 0.0
      %1238 = vmatprep.subr.mxu0 0.0
      %1239 = vmatpush1.msra.mxu0 0.0
      %1240 = vmatprep.subr.mxu0 0.0
      %1241 = vmatpush1.msra.mxu0 0.0
      %1242 = vmatprep.subr.mxu0 0.0
      %1243 = vmatpush1.msra.mxu0 0.0
      %1244 = vmatprep.subr.mxu0 0.0
      %1245 = vmatpush1.msra.mxu0 0.0
      %1246 = vmatprep.subr.mxu0 0.0
      %1247 = vmatpush1.msra.mxu0 0.0
      %1248 = vmatprep.subr.mxu0 0.0
      %1249 = vmatpush1.msra.mxu0 0.0
      %1250 = vmatprep.subr.mxu0 0.0
      %1251 = vmatpush1.msra.mxu0 %v1222
      %1252 = vmatprep.subr.mxu0 0.0
      %1253 = vmatpush1.msra.mxu0 %v1221
      %1254 = vmatprep.subr.mxu0 0.0
      %1255 = vmatpush1.msra.mxu0 %v1220
      %1256 = vmatprep.subr.mxu0 0.0
      %1257 = vmatpush1.msra.mxu0 %v1219
      %1258 = vmatprep.subr.mxu0 0.0
      %1259 = vmatpush2.msra.mxu0 0.0
      %1260 = vmatprep.subr.mxu0 0.0
      %1261 = vmatpush2.msra.mxu0 0.0
      %1262 = vmatprep.subr.mxu0 0.0
      %1263 = vmatpush2.msra.mxu0 0.0
      %1264 = vmatprep.subr.mxu0 0.0
      %1265 = vmatpush2.msra.mxu0 0.0
      %1266 = vmatprep.subr.mxu0 0.0
      %1267 = vmatpush2.msra.mxu0 0.0
      %1268 = vmatprep.subr.mxu0 0.0
      %1269 = vmatpush2.msra.mxu0 0.0
      %1270 = vmatprep.subr.mxu0 0.0
      %1271 = vmatpush2.msra.mxu0 0.0
      %1272 = vmatprep.subr.mxu0 0.0
      %1273 = vmatpush2.msra.mxu0 0.0
      %1274 = vmatprep.subr.mxu0 0.0
      %1275 = vmatpush2.msra.mxu0 0.0
      %1276 = vmatprep.subr.mxu0 0.0
      %1277 = vmatpush2.msra.mxu0 0.0
      %1278 = vmatprep.subr.mxu0 0.0
      %1279 = vmatpush2.msra.mxu0 0.0
      %1280 = vmatprep.subr.mxu0 0.0
      %1281 = vmatpush2.msra.mxu0 0.0
      %1282 = vmatprep.subr.mxu0 0.0
      %1283 = vmatpush2.msra.mxu0 0.0
      %1284 = vmatprep.subr.mxu0 0.0
      %1285 = vmatpush2.msra.mxu0 0.0
      %1286 = vmatprep.subr.mxu0 0.0
      %1287 = vmatpush2.msra.mxu0 0.0
      %1288 = vmatprep.subr.mxu0 0.0
      %1289 = vmatpush2.msra.mxu0 0.0
      %1290 = vmatprep.mubr.f32.mxu0 0.0
      %1291 = vmatmul.mubr.f32.gmra.mxu0 %v1224
      %v1292 = vpop.f32.mrf.mxu0
      %v1293 = vadd.f32 0.0, %v1292
      %v1294 = vpop.f32.mrf.mxu0
      %1295 = vdwg.mxu0
      %v1296 = vadd.f32 %v1203, %v1293
      %s1297 = scalar_lea.vmem %s6, 320
      %v1298 = vld [vmem:[%s1297] sm:$0xff]
      %v1299 = vld [vmem:[%s1297 + $0x8] sm:$0xff]
      %v1300 = vld [vmem:[%s1297 + $0x10] sm:$0xff]
      %v1301 = vld [vmem:[%s1297 + $0x18] sm:$0xff]
      %1302 = vrot.lane.b32.xlu0 %v1217, 120
      %v1303 = vpop.permute.xlu0 %1302
      %v1304 = vsel %vm501, %v1303, 0
      %1306 = vmatprep.subr.mxu0 0.0
      %1307 = vmatpush1.msra.mxu0 0.0
      %1308 = vmatprep.subr.mxu0 0.0
      %1309 = vmatpush1.msra.mxu0 0.0
      %1310 = vmatprep.subr.mxu0 0.0
      %1311 = vmatpush1.msra.mxu0 0.0
      %1312 = vmatprep.subr.mxu0 0.0
      %1313 = vmatpush1.msra.mxu0 0.0
      %1314 = vmatprep.subr.mxu0 0.0
      %1315 = vmatpush1.msra.mxu0 0.0
      %1316 = vmatprep.subr.mxu0 0.0
      %1317 = vmatpush1.msra.mxu0 0.0
      %1318 = vmatprep.subr.mxu0 0.0
      %1319 = vmatpush1.msra.mxu0 0.0
      %1320 = vmatprep.subr.mxu0 0.0
      %1321 = vmatpush1.msra.mxu0 0.0
      %1322 = vmatprep.subr.mxu0 0.0
      %1323 = vmatpush1.msra.mxu0 0.0
      %1324 = vmatprep.subr.mxu0 0.0
      %1325 = vmatpush1.msra.mxu0 0.0
      %1326 = vmatprep.subr.mxu0 0.0
      %1327 = vmatpush1.msra.mxu0 0.0
      %1328 = vmatprep.subr.mxu0 0.0
      %1329 = vmatpush1.msra.mxu0 0.0
      %1330 = vmatprep.subr.mxu0 0.0
      %1331 = vmatpush1.msra.mxu0 %v1301
      %1332 = vmatprep.subr.mxu0 0.0
      %1333 = vmatpush1.msra.mxu0 %v1300
      %1334 = vmatprep.subr.mxu0 0.0
      %1335 = vmatpush1.msra.mxu0 %v1299
      %1336 = vmatprep.subr.mxu0 0.0
      %1337 = vmatpush1.msra.mxu0 %v1298
      %1338 = vmatprep.subr.mxu0 0.0
      %1339 = vmatpush2.msra.mxu0 0.0
      %1340 = vmatprep.subr.mxu0 0.0
      %1341 = vmatpush2.msra.mxu0 0.0
      %1342 = vmatprep.subr.mxu0 0.0
      %1343 = vmatpush2.msra.mxu0 0.0
      %1344 = vmatprep.subr.mxu0 0.0
      %1345 = vmatpush2.msra.mxu0 0.0
      %1346 = vmatprep.subr.mxu0 0.0
      %1347 = vmatpush2.msra.mxu0 0.0
      %1348 = vmatprep.subr.mxu0 0.0
      %1349 = vmatpush2.msra.mxu0 0.0
      %1350 = vmatprep.subr.mxu0 0.0
      %1351 = vmatpush2.msra.mxu0 0.0
      %1352 = vmatprep.subr.mxu0 0.0
      %1353 = vmatpush2.msra.mxu0 0.0
      %1354 = vmatprep.subr.mxu0 0.0
      %1355 = vmatpush2.msra.mxu0 0.0
      %1356 = vmatprep.subr.mxu0 0.0
      %1357 = vmatpush2.msra.mxu0 0.0
      %1358 = vmatprep.subr.mxu0 0.0
      %1359 = vmatpush2.msra.mxu0 0.0
      %1360 = vmatprep.subr.mxu0 0.0
      %1361 = vmatpush2.msra.mxu0 0.0
      %1362 = vmatprep.subr.mxu0 0.0
      %1363 = vmatpush2.msra.mxu0 0.0
      %1364 = vmatprep.subr.mxu0 0.0
      %1365 = vmatpush2.msra.mxu0 0.0
      %1366 = vmatprep.subr.mxu0 0.0
      %1367 = vmatpush2.msra.mxu0 0.0
      %1368 = vmatprep.subr.mxu0 0.0
      %1369 = vmatpush2.msra.mxu0 0.0
      %1370 = vmatprep.mubr.f32.mxu0 0.0
      %1371 = vmatmul.mubr.f32.gmra.mxu0 %v1304
      %v1372 = vpop.f32.mrf.mxu0
      %v1373 = vadd.f32 0.0, %v1372
      %v1374 = vpop.f32.mrf.mxu0
      %1375 = vdwg.mxu0
      %v1376 = vadd.f32 %v1296, %v1373
      %s1377 = scalar_lea.vmem %s6, 352
      %v1378 = vld [vmem:[%s1377] sm:$0xff]
      %v1379 = vld [vmem:[%s1377 + $0x8] sm:$0xff]
      %v1380 = vld [vmem:[%s1377 + $0x10] sm:$0xff]
      %v1381 = vld [vmem:[%s1377 + $0x18] sm:$0xff]
      %1382 = vrot.lane.b32.xlu0 %v1217, 112
      %v1383 = vpop.permute.xlu0 %1382
      %v1384 = vsel %vm501, %v1383, 0
      %1386 = vmatprep.subr.mxu0 0.0
      %1387 = vmatpush1.msra.mxu0 0.0
      %1388 = vmatprep.subr.mxu0 0.0
      %1389 = vmatpush1.msra.mxu0 0.0
      %1390 = vmatprep.subr.mxu0 0.0
      %1391 = vmatpush1.msra.mxu0 0.0
      %1392 = vmatprep.subr.mxu0 0.0
      %1393 = vmatpush1.msra.mxu0 0.0
      %1394 = vmatprep.subr.mxu0 0.0
      %1395 = vmatpush1.msra.mxu0 0.0
      %1396 = vmatprep.subr.mxu0 0.0
      %1397 = vmatpush1.msra.mxu0 0.0
      %1398 = vmatprep.subr.mxu0 0.0
      %1399 = vmatpush1.msra.mxu0 0.0
      %1400 = vmatprep.subr.mxu0 0.0
      %1401 = vmatpush1.msra.mxu0 0.0
      %1402 = vmatprep.subr.mxu0 0.0
      %1403 = vmatpush1.msra.mxu0 0.0
      %1404 = vmatprep.subr.mxu0 0.0
      %1405 = vmatpush1.msra.mxu0 0.0
      %1406 = vmatprep.subr.mxu0 0.0
      %1407 = vmatpush1.msra.mxu0 0.0
      %1408 = vmatprep.subr.mxu0 0.0
      %1409 = vmatpush1.msra.mxu0 0.0
      %1410 = vmatprep.subr.mxu0 0.0
      %1411 = vmatpush1.msra.mxu0 %v1381
      %1412 = vmatprep.subr.mxu0 0.0
      %1413 = vmatpush1.msra.mxu0 %v1380
      %1414 = vmatprep.subr.mxu0 0.0
      %1415 = vmatpush1.msra.mxu0 %v1379
      %1416 = vmatprep.subr.mxu0 0.0
      %1417 = vmatpush1.msra.mxu0 %v1378
      %1418 = vmatprep.subr.mxu0 0.0
      %1419 = vmatpush2.msra.mxu0 0.0
      %1420 = vmatprep.subr.mxu0 0.0
      %1421 = vmatpush2.msra.mxu0 0.0
      %1422 = vmatprep.subr.mxu0 0.0
      %1423 = vmatpush2.msra.mxu0 0.0
      %1424 = vmatprep.subr.mxu0 0.0
      %1425 = vmatpush2.msra.mxu0 0.0
      %1426 = vmatprep.subr.mxu0 0.0
      %1427 = vmatpush2.msra.mxu0 0.0
      %1428 = vmatprep.subr.mxu0 0.0
      %1429 = vmatpush2.msra.mxu0 0.0
      %1430 = vmatprep.subr.mxu0 0.0
      %1431 = vmatpush2.msra.mxu0 0.0
      %1432 = vmatprep.subr.mxu0 0.0
      %1433 = vmatpush2.msra.mxu0 0.0
      %1434 = vmatprep.subr.mxu0 0.0
      %1435 = vmatpush2.msra.mxu0 0.0
      %1436 = vmatprep.subr.mxu0 0.0
      %1437 = vmatpush2.msra.mxu0 0.0
      %1438 = vmatprep.subr.mxu0 0.0
      %1439 = vmatpush2.msra.mxu0 0.0
      %1440 = vmatprep.subr.mxu0 0.0
      %1441 = vmatpush2.msra.mxu0 0.0
      %1442 = vmatprep.subr.mxu0 0.0
      %1443 = vmatpush2.msra.mxu0 0.0
      %1444 = vmatprep.subr.mxu0 0.0
      %1445 = vmatpush2.msra.mxu0 0.0
      %1446 = vmatprep.subr.mxu0 0.0
      %1447 = vmatpush2.msra.mxu0 0.0
      %1448 = vmatprep.subr.mxu0 0.0
      %1449 = vmatpush2.msra.mxu0 0.0
      %1450 = vmatprep.mubr.f32.mxu0 0.0
      %1451 = vmatmul.mubr.f32.gmra.mxu0 %v1384
      %v1452 = vpop.f32.mrf.mxu0
      %v1453 = vadd.f32 0.0, %v1452
      %v1454 = vpop.f32.mrf.mxu0
      %1455 = vdwg.mxu0
      %v1456 = vadd.f32 %v1376, %v1453
      %s1457 = scalar_lea.vmem %s6, 384
      %v1458 = vld [vmem:[%s1457] sm:$0xff]
      %v1459 = vld [vmem:[%s1457 + $0x8] sm:$0xff]
      %v1460 = vld [vmem:[%s1457 + $0x10] sm:$0xff]
      %v1461 = vld [vmem:[%s1457 + $0x18] sm:$0xff]
      %v1462 = vrot.slane %v1217, 1
      %v1463 = vsel %vm501, %v1462, 0
      %1465 = vmatprep.subr.mxu0 0.0
      %1466 = vmatpush1.msra.mxu0 0.0
      %1467 = vmatprep.subr.mxu0 0.0
      %1468 = vmatpush1.msra.mxu0 0.0
      %1469 = vmatprep.subr.mxu0 0.0
      %1470 = vmatpush1.msra.mxu0 0.0
      %1471 = vmatprep.subr.mxu0 0.0
      %1472 = vmatpush1.msra.mxu0 0.0
      %1473 = vmatprep.subr.mxu0 0.0
      %1474 = vmatpush1.msra.mxu0 0.0
      %1475 = vmatprep.subr.mxu0 0.0
      %1476 = vmatpush1.msra.mxu0 0.0
      %1477 = vmatprep.subr.mxu0 0.0
      %1478 = vmatpush1.msra.mxu0 0.0
      %1479 = vmatprep.subr.mxu0 0.0
      %1480 = vmatpush1.msra.mxu0 0.0
      %1481 = vmatprep.subr.mxu0 0.0
      %1482 = vmatpush1.msra.mxu0 0.0
      %1483 = vmatprep.subr.mxu0 0.0
      %1484 = vmatpush1.msra.mxu0 0.0
      %1485 = vmatprep.subr.mxu0 0.0
      %1486 = vmatpush1.msra.mxu0 0.0
      %1487 = vmatprep.subr.mxu0 0.0
      %1488 = vmatpush1.msra.mxu0 0.0
      %1489 = vmatprep.subr.mxu0 0.0
      %1490 = vmatpush1.msra.mxu0 %v1461
      %1491 = vmatprep.subr.mxu0 0.0
      %1492 = vmatpush1.msra.mxu0 %v1460
      %1493 = vmatprep.subr.mxu0 0.0
      %1494 = vmatpush1.msra.mxu0 %v1459
      %1495 = vmatprep.subr.mxu0 0.0
      %1496 = vmatpush1.msra.mxu0 %v1458
      %1497 = vmatprep.subr.mxu0 0.0
      %1498 = vmatpush2.msra.mxu0 0.0
      %1499 = vmatprep.subr.mxu0 0.0
      %1500 = vmatpush2.msra.mxu0 0.0
      %1501 = vmatprep.subr.mxu0 0.0
      %1502 = vmatpush2.msra.mxu0 0.0
      %1503 = vmatprep.subr.mxu0 0.0
      %1504 = vmatpush2.msra.mxu0 0.0
      %1505 = vmatprep.subr.mxu0 0.0
      %1506 = vmatpush2.msra.mxu0 0.0
      %1507 = vmatprep.subr.mxu0 0.0
      %1508 = vmatpush2.msra.mxu0 0.0
      %1509 = vmatprep.subr.mxu0 0.0
      %1510 = vmatpush2.msra.mxu0 0.0
      %1511 = vmatprep.subr.mxu0 0.0
      %1512 = vmatpush2.msra.mxu0 0.0
      %1513 = vmatprep.subr.mxu0 0.0
      %1514 = vmatpush2.msra.mxu0 0.0
      %1515 = vmatprep.subr.mxu0 0.0
      %1516 = vmatpush2.msra.mxu0 0.0
      %1517 = vmatprep.subr.mxu0 0.0
      %1518 = vmatpush2.msra.mxu0 0.0
      %1519 = vmatprep.subr.mxu0 0.0
      %1520 = vmatpush2.msra.mxu0 0.0
      %1521 = vmatprep.subr.mxu0 0.0
      %1522 = vmatpush2.msra.mxu0 0.0
      %1523 = vmatprep.subr.mxu0 0.0
      %1524 = vmatpush2.msra.mxu0 0.0
      %1525 = vmatprep.subr.mxu0 0.0
      %1526 = vmatpush2.msra.mxu0 0.0
      %1527 = vmatprep.subr.mxu0 0.0
      %1528 = vmatpush2.msra.mxu0 0.0
      %1529 = vmatprep.mubr.f32.mxu0 0.0
      %1530 = vmatmul.mubr.f32.gmra.mxu0 %v1463
      %v1531 = vpop.f32.mrf.mxu0
      %v1532 = vadd.f32 0.0, %v1531
      %v1533 = vpop.f32.mrf.mxu0
      %1534 = vdwg.mxu0
      %v1535 = vadd.f32 %v1456, %v1532
      %s1536 = scalar_lea.vmem %s6, 416
      %v1537 = vld [vmem:[%s1536] sm:$0xff]
      %v1538 = vld [vmem:[%s1536 + $0x8] sm:$0xff]
      %v1539 = vld [vmem:[%s1536 + $0x10] sm:$0xff]
      %v1540 = vld [vmem:[%s1536 + $0x18] sm:$0xff]
      %1541 = vrot.lane.b32.xlu0 %v1462, 120
      %v1542 = vpop.permute.xlu0 %1541
      %v1543 = vsel %vm501, %v1542, 0
      %1545 = vmatprep.subr.mxu0 0.0
      %1546 = vmatpush1.msra.mxu0 0.0
      %1547 = vmatprep.subr.mxu0 0.0
      %1548 = vmatpush1.msra.mxu0 0.0
      %1549 = vmatprep.subr.mxu0 0.0
      %1550 = vmatpush1.msra.mxu0 0.0
      %1551 = vmatprep.subr.mxu0 0.0
      %1552 = vmatpush1.msra.mxu0 0.0
      %1553 = vmatprep.subr.mxu0 0.0
      %1554 = vmatpush1.msra.mxu0 0.0
      %1555 = vmatprep.subr.mxu0 0.0
      %1556 = vmatpush1.msra.mxu0 0.0
      %1557 = vmatprep.subr.mxu0 0.0
      %1558 = vmatpush1.msra.mxu0 0.0
      %1559 = vmatprep.subr.mxu0 0.0
      %1560 = vmatpush1.msra.mxu0 0.0
      %1561 = vmatprep.subr.mxu0 0.0
      %1562 = vmatpush1.msra.mxu0 0.0
      %1563 = vmatprep.subr.mxu0 0.0
      %1564 = vmatpush1.msra.mxu0 0.0
      %1565 = vmatprep.subr.mxu0 0.0
      %1566 = vmatpush1.msra.mxu0 0.0
      %1567 = vmatprep.subr.mxu0 0.0
      %1568 = vmatpush1.msra.mxu0 0.0
      %1569 = vmatprep.subr.mxu0 0.0
      %1570 = vmatpush1.msra.mxu0 %v1540
      %1571 = vmatprep.subr.mxu0 0.0
      %1572 = vmatpush1.msra.mxu0 %v1539
      %1573 = vmatprep.subr.mxu0 0.0
      %1574 = vmatpush1.msra.mxu0 %v1538
      %1575 = vmatprep.subr.mxu0 0.0
      %1576 = vmatpush1.msra.mxu0 %v1537
      %1577 = vmatprep.subr.mxu0 0.0
      %1578 = vmatpush2.msra.mxu0 0.0
      %1579 = vmatprep.subr.mxu0 0.0
      %1580 = vmatpush2.msra.mxu0 0.0
      %1581 = vmatprep.subr.mxu0 0.0
      %1582 = vmatpush2.msra.mxu0 0.0
      %1583 = vmatprep.subr.mxu0 0.0
      %1584 = vmatpush2.msra.mxu0 0.0
      %1585 = vmatprep.subr.mxu0 0.0
      %1586 = vmatpush2.msra.mxu0 0.0
      %1587 = vmatprep.subr.mxu0 0.0
      %1588 = vmatpush2.msra.mxu0 0.0
      %1589 = vmatprep.subr.mxu0 0.0
      %1590 = vmatpush2.msra.mxu0 0.0
      %1591 = vmatprep.subr.mxu0 0.0
      %1592 = vmatpush2.msra.mxu0 0.0
      %1593 = vmatprep.subr.mxu0 0.0
      %1594 = vmatpush2.msra.mxu0 0.0
      %1595 = vmatprep.subr.mxu0 0.0
      %1596 = vmatpush2.msra.mxu0 0.0
      %1597 = vmatprep.subr.mxu0 0.0
      %1598 = vmatpush2.msra.mxu0 0.0
      %1599 = vmatprep.subr.mxu0 0.0
      %1600 = vmatpush2.msra.mxu0 0.0
      %1601 = vmatprep.subr.mxu0 0.0
      %1602 = vmatpush2.msra.mxu0 0.0
      %1603 = vmatprep.subr.mxu0 0.0
      %1604 = vmatpush2.msra.mxu0 0.0
      %1605 = vmatprep.subr.mxu0 0.0
      %1606 = vmatpush2.msra.mxu0 0.0
      %1607 = vmatprep.subr.mxu0 0.0
      %1608 = vmatpush2.msra.mxu0 0.0
      %1609 = vmatprep.mubr.f32.mxu0 0.0
      %1610 = vmatmul.mubr.f32.gmra.mxu0 %v1543
      %v1611 = vpop.f32.mrf.mxu0
      %v1612 = vadd.f32 0.0, %v1611
      %v1613 = vpop.f32.mrf.mxu0
      %1614 = vdwg.mxu0
      %v1615 = vadd.f32 %v1535, %v1612
      %s1616 = scalar_lea.vmem %s6, 448
      %v1617 = vld [vmem:[%s1616] sm:$0xff]
      %v1618 = vld [vmem:[%s1616 + $0x8] sm:$0xff]
      %v1619 = vld [vmem:[%s1616 + $0x10] sm:$0xff]
      %v1620 = vld [vmem:[%s1616 + $0x18] sm:$0xff]
      %1621 = vrot.lane.b32.xlu0 %v1462, 112
      %v1622 = vpop.permute.xlu0 %1621
      %v1623 = vsel %vm501, %v1622, 0
      %1625 = vmatprep.subr.mxu0 0.0
      %1626 = vmatpush1.msra.mxu0 0.0
      %1627 = vmatprep.subr.mxu0 0.0
      %1628 = vmatpush1.msra.mxu0 0.0
      %1629 = vmatprep.subr.mxu0 0.0
      %1630 = vmatpush1.msra.mxu0 0.0
      %1631 = vmatprep.subr.mxu0 0.0
      %1632 = vmatpush1.msra.mxu0 0.0
      %1633 = vmatprep.subr.mxu0 0.0
      %1634 = vmatpush1.msra.mxu0 0.0
      %1635 = vmatprep.subr.mxu0 0.0
      %1636 = vmatpush1.msra.mxu0 0.0
      %1637 = vmatprep.subr.mxu0 0.0
      %1638 = vmatpush1.msra.mxu0 0.0
      %1639 = vmatprep.subr.mxu0 0.0
      %1640 = vmatpush1.msra.mxu0 0.0
      %1641 = vmatprep.subr.mxu0 0.0
      %1642 = vmatpush1.msra.mxu0 0.0
      %1643 = vmatprep.subr.mxu0 0.0
      %1644 = vmatpush1.msra.mxu0 0.0
      %1645 = vmatprep.subr.mxu0 0.0
      %1646 = vmatpush1.msra.mxu0 0.0
      %1647 = vmatprep.subr.mxu0 0.0
      %1648 = vmatpush1.msra.mxu0 0.0
      %1649 = vmatprep.subr.mxu0 0.0
      %1650 = vmatpush1.msra.mxu0 %v1620
      %1651 = vmatprep.subr.mxu0 0.0
      %1652 = vmatpush1.msra.mxu0 %v1619
      %1653 = vmatprep.subr.mxu0 0.0
      %1654 = vmatpush1.msra.mxu0 %v1618
      %1655 = vmatprep.subr.mxu0 0.0
      %1656 = vmatpush1.msra.mxu0 %v1617
      %1657 = vmatprep.subr.mxu0 0.0
      %1658 = vmatpush2.msra.mxu0 0.0
      %1659 = vmatprep.subr.mxu0 0.0
      %1660 = vmatpush2.msra.mxu0 0.0
      %1661 = vmatprep.subr.mxu0 0.0
      %1662 = vmatpush2.msra.mxu0 0.0
      %1663 = vmatprep.subr.mxu0 0.0
      %1664 = vmatpush2.msra.mxu0 0.0
      %1665 = vmatprep.subr.mxu0 0.0
      %1666 = vmatpush2.msra.mxu0 0.0
      %1667 = vmatprep.subr.mxu0 0.0
      %1668 = vmatpush2.msra.mxu0 0.0
      %1669 = vmatprep.subr.mxu0 0.0
      %1670 = vmatpush2.msra.mxu0 0.0
      %1671 = vmatprep.subr.mxu0 0.0
      %1672 = vmatpush2.msra.mxu0 0.0
      %1673 = vmatprep.subr.mxu0 0.0
      %1674 = vmatpush2.msra.mxu0 0.0
      %1675 = vmatprep.subr.mxu0 0.0
      %1676 = vmatpush2.msra.mxu0 0.0
      %1677 = vmatprep.subr.mxu0 0.0
      %1678 = vmatpush2.msra.mxu0 0.0
      %1679 = vmatprep.subr.mxu0 0.0
      %1680 = vmatpush2.msra.mxu0 0.0
      %1681 = vmatprep.subr.mxu0 0.0
      %1682 = vmatpush2.msra.mxu0 0.0
      %1683 = vmatprep.subr.mxu0 0.0
      %1684 = vmatpush2.msra.mxu0 0.0
      %1685 = vmatprep.subr.mxu0 0.0
      %1686 = vmatpush2.msra.mxu0 0.0
      %1687 = vmatprep.subr.mxu0 0.0
      %1688 = vmatpush2.msra.mxu0 0.0
      %1689 = vmatprep.mubr.f32.mxu0 0.0
      %1690 = vmatmul.mubr.f32.gmra.mxu0 %v1623
      %v1691 = vpop.f32.mrf.mxu0
      %v1692 = vadd.f32 0.0, %v1691
      %v1693 = vpop.f32.mrf.mxu0
      %1694 = vdwg.mxu0
      %v1695 = vadd.f32 %v1615, %v1692
      %s1696 = scalar_lea.vmem %s6, 480
      %v1697 = vld [vmem:[%s1696] sm:$0xff]
      %v1698 = vld [vmem:[%s1696 + $0x8] sm:$0xff]
      %v1699 = vld [vmem:[%s1696 + $0x10] sm:$0xff]
      %v1700 = vld [vmem:[%s1696 + $0x18] sm:$0xff]
      %v1701 = vrot.slane %v1217, 2
      %v1702 = vsel %vm501, %v1701, 0
      %1704 = vmatprep.subr.mxu0 0.0
      %1705 = vmatpush1.msra.mxu0 0.0
      %1706 = vmatprep.subr.mxu0 0.0
      %1707 = vmatpush1.msra.mxu0 0.0
      %1708 = vmatprep.subr.mxu0 0.0
      %1709 = vmatpush1.msra.mxu0 0.0
      %1710 = vmatprep.subr.mxu0 0.0
      %1711 = vmatpush1.msra.mxu0 0.0
      %1712 = vmatprep.subr.mxu0 0.0
      %1713 = vmatpush1.msra.mxu0 0.0
      %1714 = vmatprep.subr.mxu0 0.0
      %1715 = vmatpush1.msra.mxu0 0.0
      %1716 = vmatprep.subr.mxu0 0.0
      %1717 = vmatpush1.msra.mxu0 0.0
      %1718 = vmatprep.subr.mxu0 0.0
      %1719 = vmatpush1.msra.mxu0 0.0
      %1720 = vmatprep.subr.mxu0 0.0
      %1721 = vmatpush1.msra.mxu0 0.0
      %1722 = vmatprep.subr.mxu0 0.0
      %1723 = vmatpush1.msra.mxu0 0.0
      %1724 = vmatprep.subr.mxu0 0.0
      %1725 = vmatpush1.msra.mxu0 0.0
      %1726 = vmatprep.subr.mxu0 0.0
      %1727 = vmatpush1.msra.mxu0 0.0
      %1728 = vmatprep.subr.mxu0 0.0
      %1729 = vmatpush1.msra.mxu0 %v1700
      %1730 = vmatprep.subr.mxu0 0.0
      %1731 = vmatpush1.msra.mxu0 %v1699
      %1732 = vmatprep.subr.mxu0 0.0
      %1733 = vmatpush1.msra.mxu0 %v1698
      %1734 = vmatprep.subr.mxu0 0.0
      %1735 = vmatpush1.msra.mxu0 %v1697
      %1736 = vmatprep.subr.mxu0 0.0
      %1737 = vmatpush2.msra.mxu0 0.0
      %1738 = vmatprep.subr.mxu0 0.0
      %1739 = vmatpush2.msra.mxu0 0.0
      %1740 = vmatprep.subr.mxu0 0.0
      %1741 = vmatpush2.msra.mxu0 0.0
      %1742 = vmatprep.subr.mxu0 0.0
      %1743 = vmatpush2.msra.mxu0 0.0
      %1744 = vmatprep.subr.mxu0 0.0
      %1745 = vmatpush2.msra.mxu0 0.0
      %1746 = vmatprep.subr.mxu0 0.0
      %1747 = vmatpush2.msra.mxu0 0.0
      %1748 = vmatprep.subr.mxu0 0.0
      %1749 = vmatpush2.msra.mxu0 0.0
      %1750 = vmatprep.subr.mxu0 0.0
      %1751 = vmatpush2.msra.mxu0 0.0
      %1752 = vmatprep.subr.mxu0 0.0
      %1753 = vmatpush2.msra.mxu0 0.0
      %1754 = vmatprep.subr.mxu0 0.0
      %1755 = vmatpush2.msra.mxu0 0.0
      %1756 = vmatprep.subr.mxu0 0.0
      %1757 = vmatpush2.msra.mxu0 0.0
      %1758 = vmatprep.subr.mxu0 0.0
      %1759 = vmatpush2.msra.mxu0 0.0
      %1760 = vmatprep.subr.mxu0 0.0
      %1761 = vmatpush2.msra.mxu0 0.0
      %1762 = vmatprep.subr.mxu0 0.0
      %1763 = vmatpush2.msra.mxu0 0.0
      %1764 = vmatprep.subr.mxu0 0.0
      %1765 = vmatpush2.msra.mxu0 0.0
      %1766 = vmatprep.subr.mxu0 0.0
      %1767 = vmatpush2.msra.mxu0 0.0
      %1768 = vmatprep.mubr.f32.mxu0 0.0
      %1769 = vmatmul.mubr.f32.gmra.mxu0 %v1702
      %v1770 = vpop.f32.mrf.mxu0
      %v1771 = vadd.f32 0.0, %v1770
      %v1772 = vpop.f32.mrf.mxu0
      %1773 = vdwg.mxu0
      %v1774 = vadd.f32 %v1695, %v1771
      %s1775 = scalar_lea.vmem %s6, 512
      %v1776 = vld [vmem:[%s1775] sm:$0xff]
      %v1777 = vld [vmem:[%s1775 + $0x8] sm:$0xff]
      %v1778 = vld [vmem:[%s1775 + $0x10] sm:$0xff]
      %v1779 = vld [vmem:[%s1775 + $0x18] sm:$0xff]
      %1780 = vrot.lane.b32.xlu0 %v1701, 120
      %v1781 = vpop.permute.xlu0 %1780
      %v1782 = vsel %vm501, %v1781, 0
      %1784 = vmatprep.subr.mxu0 0.0
      %1785 = vmatpush1.msra.mxu0 0.0
      %1786 = vmatprep.subr.mxu0 0.0
      %1787 = vmatpush1.msra.mxu0 0.0
      %1788 = vmatprep.subr.mxu0 0.0
      %1789 = vmatpush1.msra.mxu0 0.0
      %1790 = vmatprep.subr.mxu0 0.0
      %1791 = vmatpush1.msra.mxu0 0.0
      %1792 = vmatprep.subr.mxu0 0.0
      %1793 = vmatpush1.msra.mxu0 0.0
      %1794 = vmatprep.subr.mxu0 0.0
      %1795 = vmatpush1.msra.mxu0 0.0
      %1796 = vmatprep.subr.mxu0 0.0
      %1797 = vmatpush1.msra.mxu0 0.0
      %1798 = vmatprep.subr.mxu0 0.0
      %1799 = vmatpush1.msra.mxu0 0.0
      %1800 = vmatprep.subr.mxu0 0.0
      %1801 = vmatpush1.msra.mxu0 0.0
      %1802 = vmatprep.subr.mxu0 0.0
      %1803 = vmatpush1.msra.mxu0 0.0
      %1804 = vmatprep.subr.mxu0 0.0
      %1805 = vmatpush1.msra.mxu0 0.0
      %1806 = vmatprep.subr.mxu0 0.0
      %1807 = vmatpush1.msra.mxu0 0.0
      %1808 = vmatprep.subr.mxu0 0.0
      %1809 = vmatpush1.msra.mxu0 %v1779
      %1810 = vmatprep.subr.mxu0 0.0
      %1811 = vmatpush1.msra.mxu0 %v1778
      %1812 = vmatprep.subr.mxu0 0.0
      %1813 = vmatpush1.msra.mxu0 %v1777
      %1814 = vmatprep.subr.mxu0 0.0
      %1815 = vmatpush1.msra.mxu0 %v1776
      %1816 = vmatprep.subr.mxu0 0.0
      %1817 = vmatpush2.msra.mxu0 0.0
      %1818 = vmatprep.subr.mxu0 0.0
      %1819 = vmatpush2.msra.mxu0 0.0
      %1820 = vmatprep.subr.mxu0 0.0
      %1821 = vmatpush2.msra.mxu0 0.0
      %1822 = vmatprep.subr.mxu0 0.0
      %1823 = vmatpush2.msra.mxu0 0.0
      %1824 = vmatprep.subr.mxu0 0.0
      %1825 = vmatpush2.msra.mxu0 0.0
      %1826 = vmatprep.subr.mxu0 0.0
      %1827 = vmatpush2.msra.mxu0 0.0
      %1828 = vmatprep.subr.mxu0 0.0
      %1829 = vmatpush2.msra.mxu0 0.0
      %1830 = vmatprep.subr.mxu0 0.0
      %1831 = vmatpush2.msra.mxu0 0.0
      %1832 = vmatprep.subr.mxu0 0.0
      %1833 = vmatpush2.msra.mxu0 0.0
      %1834 = vmatprep.subr.mxu0 0.0
      %1835 = vmatpush2.msra.mxu0 0.0
      %1836 = vmatprep.subr.mxu0 0.0
      %1837 = vmatpush2.msra.mxu0 0.0
      %1838 = vmatprep.subr.mxu0 0.0
      %1839 = vmatpush2.msra.mxu0 0.0
      %1840 = vmatprep.subr.mxu0 0.0
      %1841 = vmatpush2.msra.mxu0 0.0
      %1842 = vmatprep.subr.mxu0 0.0
      %1843 = vmatpush2.msra.mxu0 0.0
      %1844 = vmatprep.subr.mxu0 0.0
      %1845 = vmatpush2.msra.mxu0 0.0
      %1846 = vmatprep.subr.mxu0 0.0
      %1847 = vmatpush2.msra.mxu0 0.0
      %1848 = vmatprep.mubr.f32.mxu0 0.0
      %1849 = vmatmul.mubr.f32.gmra.mxu0 %v1782
      %v1850 = vpop.f32.mrf.mxu0
      %v1851 = vadd.f32 0.0, %v1850
      %v1852 = vpop.f32.mrf.mxu0
      %1853 = vdwg.mxu0
      %v1854 = vadd.f32 %v1774, %v1851
      %s1855 = scalar_lea.vmem %s6, 544
      %v1856 = vld [vmem:[%s1855] sm:$0xff]
      %v1857 = vld [vmem:[%s1855 + $0x8] sm:$0xff]
      %v1858 = vld [vmem:[%s1855 + $0x10] sm:$0xff]
      %v1859 = vld [vmem:[%s1855 + $0x18] sm:$0xff]
      %1860 = vrot.lane.b32.xlu0 %v1701, 112
      %v1861 = vpop.permute.xlu0 %1860
      %v1862 = vsel %vm501, %v1861, 0
      %1864 = vmatprep.subr.mxu0 0.0
      %1865 = vmatpush1.msra.mxu0 0.0
      %1866 = vmatprep.subr.mxu0 0.0
      %1867 = vmatpush1.msra.mxu0 0.0
      %1868 = vmatprep.subr.mxu0 0.0
      %1869 = vmatpush1.msra.mxu0 0.0
      %1870 = vmatprep.subr.mxu0 0.0
      %1871 = vmatpush1.msra.mxu0 0.0
      %1872 = vmatprep.subr.mxu0 0.0
      %1873 = vmatpush1.msra.mxu0 0.0
      %1874 = vmatprep.subr.mxu0 0.0
      %1875 = vmatpush1.msra.mxu0 0.0
      %1876 = vmatprep.subr.mxu0 0.0
      %1877 = vmatpush1.msra.mxu0 0.0
      %1878 = vmatprep.subr.mxu0 0.0
      %1879 = vmatpush1.msra.mxu0 0.0
      %1880 = vmatprep.subr.mxu0 0.0
      %1881 = vmatpush1.msra.mxu0 0.0
      %1882 = vmatprep.subr.mxu0 0.0
      %1883 = vmatpush1.msra.mxu0 0.0
      %1884 = vmatprep.subr.mxu0 0.0
      %1885 = vmatpush1.msra.mxu0 0.0
      %1886 = vmatprep.subr.mxu0 0.0
      %1887 = vmatpush1.msra.mxu0 0.0
      %1888 = vmatprep.subr.mxu0 0.0
      %1889 = vmatpush1.msra.mxu0 %v1859
      %1890 = vmatprep.subr.mxu0 0.0
      %1891 = vmatpush1.msra.mxu0 %v1858
      %1892 = vmatprep.subr.mxu0 0.0
      %1893 = vmatpush1.msra.mxu0 %v1857
      %1894 = vmatprep.subr.mxu0 0.0
      %1895 = vmatpush1.msra.mxu0 %v1856
      %1896 = vmatprep.subr.mxu0 0.0
      %1897 = vmatpush2.msra.mxu0 0.0
      %1898 = vmatprep.subr.mxu0 0.0
      %1899 = vmatpush2.msra.mxu0 0.0
      %1900 = vmatprep.subr.mxu0 0.0
      %1901 = vmatpush2.msra.mxu0 0.0
      %1902 = vmatprep.subr.mxu0 0.0
      %1903 = vmatpush2.msra.mxu0 0.0
      %1904 = vmatprep.subr.mxu0 0.0
      %1905 = vmatpush2.msra.mxu0 0.0
      %1906 = vmatprep.subr.mxu0 0.0
      %1907 = vmatpush2.msra.mxu0 0.0
      %1908 = vmatprep.subr.mxu0 0.0
      %1909 = vmatpush2.msra.mxu0 0.0
      %1910 = vmatprep.subr.mxu0 0.0
      %1911 = vmatpush2.msra.mxu0 0.0
      %1912 = vmatprep.subr.mxu0 0.0
      %1913 = vmatpush2.msra.mxu0 0.0
      %1914 = vmatprep.subr.mxu0 0.0
      %1915 = vmatpush2.msra.mxu0 0.0
      %1916 = vmatprep.subr.mxu0 0.0
      %1917 = vmatpush2.msra.mxu0 0.0
      %1918 = vmatprep.subr.mxu0 0.0
      %1919 = vmatpush2.msra.mxu0 0.0
      %1920 = vmatprep.subr.mxu0 0.0
      %1921 = vmatpush2.msra.mxu0 0.0
      %1922 = vmatprep.subr.mxu0 0.0
      %1923 = vmatpush2.msra.mxu0 0.0
      %1924 = vmatprep.subr.mxu0 0.0
      %1925 = vmatpush2.msra.mxu0 0.0
      %1926 = vmatprep.subr.mxu0 0.0
      %1927 = vmatpush2.msra.mxu0 0.0
      %1928 = vmatprep.mubr.f32.mxu0 0.0
      %1929 = vmatmul.mubr.f32.gmra.mxu0 %v1862
      %v1930 = vpop.f32.mrf.mxu0
      %v1931 = vadd.f32 0.0, %v1930
      %v1932 = vpop.f32.mrf.mxu0
      %1933 = vdwg.mxu0
      %v1934 = vadd.f32 %v1854, %v1931
      %v1935 = vld [vmem:[%s443] sm:$0x3f]
      %s1936 = sadd.s32 %s26, 2
      %p1937 = scmp.ge.s32.totalorder %s1936, 1
      %p1938 = scmp.le.s32.totalorder %s1936, 4
      %p1939 = pnand %p1937, %p1938
      %p1940 = pneg %p1939
      %s1941 = scalar_select %p1940, 1, 0
      %s1942 = scvt.s32.f32 %s1941
      %v1943 = vmul.f32 %v1935, %v475
      %v1944 = vadd.f32 %v1943, %v482
      %v1945 = vmax.f32 %v1944, 0.0
      %v1946 = vstv %s1942
      %v1947 = vmul.f32 %v463, %v1946
      %v1948 = vmul.f32 %v1945, %v1947
      %s1949 = scalar_lea.vmem %s6, 576
      %v1950 = vld [vmem:[%s1949] sm:$0xff]
      %v1951 = vld [vmem:[%s1949 + $0x8] sm:$0xff]
      %v1952 = vld [vmem:[%s1949 + $0x10] sm:$0xff]
      %v1953 = vld [vmem:[%s1949 + $0x18] sm:$0xff]
      %v1955 = vsel %vm501, %v1948, 0
      %1957 = vmatprep.subr.mxu0 0.0
      %1958 = vmatpush1.msra.mxu0 0.0
      %1959 = vmatprep.subr.mxu0 0.0
      %1960 = vmatpush1.msra.mxu0 0.0
      %1961 = vmatprep.subr.mxu0 0.0
      %1962 = vmatpush1.msra.mxu0 0.0
      %1963 = vmatprep.subr.mxu0 0.0
      %1964 = vmatpush1.msra.mxu0 0.0
      %1965 = vmatprep.subr.mxu0 0.0
      %1966 = vmatpush1.msra.mxu0 0.0
      %1967 = vmatprep.subr.mxu0 0.0
      %1968 = vmatpush1.msra.mxu0 0.0
      %1969 = vmatprep.subr.mxu0 0.0
      %1970 = vmatpush1.msra.mxu0 0.0
      %1971 = vmatprep.subr.mxu0 0.0
      %1972 = vmatpush1.msra.mxu0 0.0
      %1973 = vmatprep.subr.mxu0 0.0
      %1974 = vmatpush1.msra.mxu0 0.0
      %1975 = vmatprep.subr.mxu0 0.0
      %1976 = vmatpush1.msra.mxu0 0.0
      %1977 = vmatprep.subr.mxu0 0.0
      %1978 = vmatpush1.msra.mxu0 0.0
      %1979 = vmatprep.subr.mxu0 0.0
      %1980 = vmatpush1.msra.mxu0 0.0
      %1981 = vmatprep.subr.mxu0 0.0
      %1982 = vmatpush1.msra.mxu0 %v1953
      %1983 = vmatprep.subr.mxu0 0.0
      %1984 = vmatpush1.msra.mxu0 %v1952
      %1985 = vmatprep.subr.mxu0 0.0
      %1986 = vmatpush1.msra.mxu0 %v1951
      %1987 = vmatprep.subr.mxu0 0.0
      %1988 = vmatpush1.msra.mxu0 %v1950
      %1989 = vmatprep.subr.mxu0 0.0
      %1990 = vmatpush2.msra.mxu0 0.0
      %1991 = vmatprep.subr.mxu0 0.0
      %1992 = vmatpush2.msra.mxu0 0.0
      %1993 = vmatprep.subr.mxu0 0.0
      %1994 = vmatpush2.msra.mxu0 0.0
      %1995 = vmatprep.subr.mxu0 0.0
      %1996 = vmatpush2.msra.mxu0 0.0
      %1997 = vmatprep.subr.mxu0 0.0
      %1998 = vmatpush2.msra.mxu0 0.0
      %1999 = vmatprep.subr.mxu0 0.0
      %2000 = vmatpush2.msra.mxu0 0.0
      %2001 = vmatprep.subr.mxu0 0.0
      %2002 = vmatpush2.msra.mxu0 0.0
      %2003 = vmatprep.subr.mxu0 0.0
      %2004 = vmatpush2.msra.mxu0 0.0
      %2005 = vmatprep.subr.mxu0 0.0
      %2006 = vmatpush2.msra.mxu0 0.0
      %2007 = vmatprep.subr.mxu0 0.0
      %2008 = vmatpush2.msra.mxu0 0.0
      %2009 = vmatprep.subr.mxu0 0.0
      %2010 = vmatpush2.msra.mxu0 0.0
      %2011 = vmatprep.subr.mxu0 0.0
      %2012 = vmatpush2.msra.mxu0 0.0
      %2013 = vmatprep.subr.mxu0 0.0
      %2014 = vmatpush2.msra.mxu0 0.0
      %2015 = vmatprep.subr.mxu0 0.0
      %2016 = vmatpush2.msra.mxu0 0.0
      %2017 = vmatprep.subr.mxu0 0.0
      %2018 = vmatpush2.msra.mxu0 0.0
      %2019 = vmatprep.subr.mxu0 0.0
      %2020 = vmatpush2.msra.mxu0 0.0
      %2021 = vmatprep.mubr.f32.mxu0 0.0
      %2022 = vmatmul.mubr.f32.gmra.mxu0 %v1955
      %v2023 = vpop.f32.mrf.mxu0
      %v2024 = vadd.f32 0.0, %v2023
      %v2025 = vpop.f32.mrf.mxu0
      %2026 = vdwg.mxu0
      %v2027 = vadd.f32 %v1934, %v2024
      %s2028 = scalar_lea.vmem %s6, 608
      %v2029 = vld [vmem:[%s2028] sm:$0xff]
      %v2030 = vld [vmem:[%s2028 + $0x8] sm:$0xff]
      %v2031 = vld [vmem:[%s2028 + $0x10] sm:$0xff]
      %v2032 = vld [vmem:[%s2028 + $0x18] sm:$0xff]
      %2033 = vrot.lane.b32.xlu0 %v1948, 120
      %v2034 = vpop.permute.xlu0 %2033
      %v2035 = vsel %vm501, %v2034, 0
      %2037 = vmatprep.subr.mxu0 0.0
      %2038 = vmatpush1.msra.mxu0 0.0
      %2039 = vmatprep.subr.mxu0 0.0
      %2040 = vmatpush1.msra.mxu0 0.0
      %2041 = vmatprep.subr.mxu0 0.0
      %2042 = vmatpush1.msra.mxu0 0.0
      %2043 = vmatprep.subr.mxu0 0.0
      %2044 = vmatpush1.msra.mxu0 0.0
      %2045 = vmatprep.subr.mxu0 0.0
      %2046 = vmatpush1.msra.mxu0 0.0
      %2047 = vmatprep.subr.mxu0 0.0
      %2048 = vmatpush1.msra.mxu0 0.0
      %2049 = vmatprep.subr.mxu0 0.0
      %2050 = vmatpush1.msra.mxu0 0.0
      %2051 = vmatprep.subr.mxu0 0.0
      %2052 = vmatpush1.msra.mxu0 0.0
      %2053 = vmatprep.subr.mxu0 0.0
      %2054 = vmatpush1.msra.mxu0 0.0
      %2055 = vmatprep.subr.mxu0 0.0
      %2056 = vmatpush1.msra.mxu0 0.0
      %2057 = vmatprep.subr.mxu0 0.0
      %2058 = vmatpush1.msra.mxu0 0.0
      %2059 = vmatprep.subr.mxu0 0.0
      %2060 = vmatpush1.msra.mxu0 0.0
      %2061 = vmatprep.subr.mxu0 0.0
      %2062 = vmatpush1.msra.mxu0 %v2032
      %2063 = vmatprep.subr.mxu0 0.0
      %2064 = vmatpush1.msra.mxu0 %v2031
      %2065 = vmatprep.subr.mxu0 0.0
      %2066 = vmatpush1.msra.mxu0 %v2030
      %2067 = vmatprep.subr.mxu0 0.0
      %2068 = vmatpush1.msra.mxu0 %v2029
      %2069 = vmatprep.subr.mxu0 0.0
      %2070 = vmatpush2.msra.mxu0 0.0
      %2071 = vmatprep.subr.mxu0 0.0
      %2072 = vmatpush2.msra.mxu0 0.0
      %2073 = vmatprep.subr.mxu0 0.0
      %2074 = vmatpush2.msra.mxu0 0.0
      %2075 = vmatprep.subr.mxu0 0.0
      %2076 = vmatpush2.msra.mxu0 0.0
      %2077 = vmatprep.subr.mxu0 0.0
      %2078 = vmatpush2.msra.mxu0 0.0
      %2079 = vmatprep.subr.mxu0 0.0
      %2080 = vmatpush2.msra.mxu0 0.0
      %2081 = vmatprep.subr.mxu0 0.0
      %2082 = vmatpush2.msra.mxu0 0.0
      %2083 = vmatprep.subr.mxu0 0.0
      %2084 = vmatpush2.msra.mxu0 0.0
      %2085 = vmatprep.subr.mxu0 0.0
      %2086 = vmatpush2.msra.mxu0 0.0
      %2087 = vmatprep.subr.mxu0 0.0
      %2088 = vmatpush2.msra.mxu0 0.0
      %2089 = vmatprep.subr.mxu0 0.0
      %2090 = vmatpush2.msra.mxu0 0.0
      %2091 = vmatprep.subr.mxu0 0.0
      %2092 = vmatpush2.msra.mxu0 0.0
      %2093 = vmatprep.subr.mxu0 0.0
      %2094 = vmatpush2.msra.mxu0 0.0
      %2095 = vmatprep.subr.mxu0 0.0
      %2096 = vmatpush2.msra.mxu0 0.0
      %2097 = vmatprep.subr.mxu0 0.0
      %2098 = vmatpush2.msra.mxu0 0.0
      %2099 = vmatprep.subr.mxu0 0.0
      %2100 = vmatpush2.msra.mxu0 0.0
      %2101 = vmatprep.mubr.f32.mxu0 0.0
      %2102 = vmatmul.mubr.f32.gmra.mxu0 %v2035
      %v2103 = vpop.f32.mrf.mxu0
      %v2104 = vadd.f32 0.0, %v2103
      %v2105 = vpop.f32.mrf.mxu0
      %2106 = vdwg.mxu0
      %v2107 = vadd.f32 %v2027, %v2104
      %s2108 = scalar_lea.vmem %s6, 640
      %v2109 = vld [vmem:[%s2108] sm:$0xff]
      %v2110 = vld [vmem:[%s2108 + $0x8] sm:$0xff]
      %v2111 = vld [vmem:[%s2108 + $0x10] sm:$0xff]
      %v2112 = vld [vmem:[%s2108 + $0x18] sm:$0xff]
      %2113 = vrot.lane.b32.xlu0 %v1948, 112
      %v2114 = vpop.permute.xlu0 %2113
      %v2115 = vsel %vm501, %v2114, 0
      %2117 = vmatprep.subr.mxu0 0.0
      %2118 = vmatpush1.msra.mxu0 0.0
      %2119 = vmatprep.subr.mxu0 0.0
      %2120 = vmatpush1.msra.mxu0 0.0
      %2121 = vmatprep.subr.mxu0 0.0
      %2122 = vmatpush1.msra.mxu0 0.0
      %2123 = vmatprep.subr.mxu0 0.0
      %2124 = vmatpush1.msra.mxu0 0.0
      %2125 = vmatprep.subr.mxu0 0.0
      %2126 = vmatpush1.msra.mxu0 0.0
      %2127 = vmatprep.subr.mxu0 0.0
      %2128 = vmatpush1.msra.mxu0 0.0
      %2129 = vmatprep.subr.mxu0 0.0
      %2130 = vmatpush1.msra.mxu0 0.0
      %2131 = vmatprep.subr.mxu0 0.0
      %2132 = vmatpush1.msra.mxu0 0.0
      %2133 = vmatprep.subr.mxu0 0.0
      %2134 = vmatpush1.msra.mxu0 0.0
      %2135 = vmatprep.subr.mxu0 0.0
      %2136 = vmatpush1.msra.mxu0 0.0
      %2137 = vmatprep.subr.mxu0 0.0
      %2138 = vmatpush1.msra.mxu0 0.0
      %2139 = vmatprep.subr.mxu0 0.0
      %2140 = vmatpush1.msra.mxu0 0.0
      %2141 = vmatprep.subr.mxu0 0.0
      %2142 = vmatpush1.msra.mxu0 %v2112
      %2143 = vmatprep.subr.mxu0 0.0
      %2144 = vmatpush1.msra.mxu0 %v2111
      %2145 = vmatprep.subr.mxu0 0.0
      %2146 = vmatpush1.msra.mxu0 %v2110
      %2147 = vmatprep.subr.mxu0 0.0
      %2148 = vmatpush1.msra.mxu0 %v2109
      %2149 = vmatprep.subr.mxu0 0.0
      %2150 = vmatpush2.msra.mxu0 0.0
      %2151 = vmatprep.subr.mxu0 0.0
      %2152 = vmatpush2.msra.mxu0 0.0
      %2153 = vmatprep.subr.mxu0 0.0
      %2154 = vmatpush2.msra.mxu0 0.0
      %2155 = vmatprep.subr.mxu0 0.0
      %2156 = vmatpush2.msra.mxu0 0.0
      %2157 = vmatprep.subr.mxu0 0.0
      %2158 = vmatpush2.msra.mxu0 0.0
      %2159 = vmatprep.subr.mxu0 0.0
      %2160 = vmatpush2.msra.mxu0 0.0
      %2161 = vmatprep.subr.mxu0 0.0
      %2162 = vmatpush2.msra.mxu0 0.0
      %2163 = vmatprep.subr.mxu0 0.0
      %2164 = vmatpush2.msra.mxu0 0.0
      %2165 = vmatprep.subr.mxu0 0.0
      %2166 = vmatpush2.msra.mxu0 0.0
      %2167 = vmatprep.subr.mxu0 0.0
      %2168 = vmatpush2.msra.mxu0 0.0
      %2169 = vmatprep.subr.mxu0 0.0
      %2170 = vmatpush2.msra.mxu0 0.0
      %2171 = vmatprep.subr.mxu0 0.0
      %2172 = vmatpush2.msra.mxu0 0.0
      %2173 = vmatprep.subr.mxu0 0.0
      %2174 = vmatpush2.msra.mxu0 0.0
      %2175 = vmatprep.subr.mxu0 0.0
      %2176 = vmatpush2.msra.mxu0 0.0
      %2177 = vmatprep.subr.mxu0 0.0
      %2178 = vmatpush2.msra.mxu0 0.0
      %2179 = vmatprep.subr.mxu0 0.0
      %2180 = vmatpush2.msra.mxu0 0.0
      %2181 = vmatprep.mubr.f32.mxu0 0.0
      %2182 = vmatmul.mubr.f32.gmra.mxu0 %v2115
      %v2183 = vpop.f32.mrf.mxu0
      %v2184 = vadd.f32 0.0, %v2183
      %v2185 = vpop.f32.mrf.mxu0
      %2186 = vdwg.mxu0
      %v2187 = vadd.f32 %v2107, %v2184
      %s2188 = scalar_lea.vmem %s6, 672
      %v2189 = vld [vmem:[%s2188] sm:$0xff]
      %v2190 = vld [vmem:[%s2188 + $0x8] sm:$0xff]
      %v2191 = vld [vmem:[%s2188 + $0x10] sm:$0xff]
      %v2192 = vld [vmem:[%s2188 + $0x18] sm:$0xff]
      %v2193 = vrot.slane %v1948, 1
      %v2194 = vsel %vm501, %v2193, 0
      %2196 = vmatprep.subr.mxu0 0.0
      %2197 = vmatpush1.msra.mxu0 0.0
      %2198 = vmatprep.subr.mxu0 0.0
      %2199 = vmatpush1.msra.mxu0 0.0
      %2200 = vmatprep.subr.mxu0 0.0
      %2201 = vmatpush1.msra.mxu0 0.0
      %2202 = vmatprep.subr.mxu0 0.0
      %2203 = vmatpush1.msra.mxu0 0.0
      %2204 = vmatprep.subr.mxu0 0.0
      %2205 = vmatpush1.msra.mxu0 0.0
      %2206 = vmatprep.subr.mxu0 0.0
      %2207 = vmatpush1.msra.mxu0 0.0
      %2208 = vmatprep.subr.mxu0 0.0
      %2209 = vmatpush1.msra.mxu0 0.0
      %2210 = vmatprep.subr.mxu0 0.0
      %2211 = vmatpush1.msra.mxu0 0.0
      %2212 = vmatprep.subr.mxu0 0.0
      %2213 = vmatpush1.msra.mxu0 0.0
      %2214 = vmatprep.subr.mxu0 0.0
      %2215 = vmatpush1.msra.mxu0 0.0
      %2216 = vmatprep.subr.mxu0 0.0
      %2217 = vmatpush1.msra.mxu0 0.0
      %2218 = vmatprep.subr.mxu0 0.0
      %2219 = vmatpush1.msra.mxu0 0.0
      %2220 = vmatprep.subr.mxu0 0.0
      %2221 = vmatpush1.msra.mxu0 %v2192
      %2222 = vmatprep.subr.mxu0 0.0
      %2223 = vmatpush1.msra.mxu0 %v2191
      %2224 = vmatprep.subr.mxu0 0.0
      %2225 = vmatpush1.msra.mxu0 %v2190
      %2226 = vmatprep.subr.mxu0 0.0
      %2227 = vmatpush1.msra.mxu0 %v2189
      %2228 = vmatprep.subr.mxu0 0.0
      %2229 = vmatpush2.msra.mxu0 0.0
      %2230 = vmatprep.subr.mxu0 0.0
      %2231 = vmatpush2.msra.mxu0 0.0
      %2232 = vmatprep.subr.mxu0 0.0
      %2233 = vmatpush2.msra.mxu0 0.0
      %2234 = vmatprep.subr.mxu0 0.0
      %2235 = vmatpush2.msra.mxu0 0.0
      %2236 = vmatprep.subr.mxu0 0.0
      %2237 = vmatpush2.msra.mxu0 0.0
      %2238 = vmatprep.subr.mxu0 0.0
      %2239 = vmatpush2.msra.mxu0 0.0
      %2240 = vmatprep.subr.mxu0 0.0
      %2241 = vmatpush2.msra.mxu0 0.0
      %2242 = vmatprep.subr.mxu0 0.0
      %2243 = vmatpush2.msra.mxu0 0.0
      %2244 = vmatprep.subr.mxu0 0.0
      %2245 = vmatpush2.msra.mxu0 0.0
      %2246 = vmatprep.subr.mxu0 0.0
      %2247 = vmatpush2.msra.mxu0 0.0
      %2248 = vmatprep.subr.mxu0 0.0
      %2249 = vmatpush2.msra.mxu0 0.0
      %2250 = vmatprep.subr.mxu0 0.0
      %2251 = vmatpush2.msra.mxu0 0.0
      %2252 = vmatprep.subr.mxu0 0.0
      %2253 = vmatpush2.msra.mxu0 0.0
      %2254 = vmatprep.subr.mxu0 0.0
      %2255 = vmatpush2.msra.mxu0 0.0
      %2256 = vmatprep.subr.mxu0 0.0
      %2257 = vmatpush2.msra.mxu0 0.0
      %2258 = vmatprep.subr.mxu0 0.0
      %2259 = vmatpush2.msra.mxu0 0.0
      %2260 = vmatprep.mubr.f32.mxu0 0.0
      %2261 = vmatmul.mubr.f32.gmra.mxu0 %v2194
      %v2262 = vpop.f32.mrf.mxu0
      %v2263 = vadd.f32 0.0, %v2262
      %v2264 = vpop.f32.mrf.mxu0
      %2265 = vdwg.mxu0
      %v2266 = vadd.f32 %v2187, %v2263
      %s2267 = scalar_lea.vmem %s6, 704
      %v2268 = vld [vmem:[%s2267] sm:$0xff]
      %v2269 = vld [vmem:[%s2267 + $0x8] sm:$0xff]
      %v2270 = vld [vmem:[%s2267 + $0x10] sm:$0xff]
      %v2271 = vld [vmem:[%s2267 + $0x18] sm:$0xff]
      %2272 = vrot.lane.b32.xlu0 %v2193, 120
      %v2273 = vpop.permute.xlu0 %2272
      %v2274 = vsel %vm501, %v2273, 0
      %2276 = vmatprep.subr.mxu0 0.0
      %2277 = vmatpush1.msra.mxu0 0.0
      %2278 = vmatprep.subr.mxu0 0.0
      %2279 = vmatpush1.msra.mxu0 0.0
      %2280 = vmatprep.subr.mxu0 0.0
      %2281 = vmatpush1.msra.mxu0 0.0
      %2282 = vmatprep.subr.mxu0 0.0
      %2283 = vmatpush1.msra.mxu0 0.0
      %2284 = vmatprep.subr.mxu0 0.0
      %2285 = vmatpush1.msra.mxu0 0.0
      %2286 = vmatprep.subr.mxu0 0.0
      %2287 = vmatpush1.msra.mxu0 0.0
      %2288 = vmatprep.subr.mxu0 0.0
      %2289 = vmatpush1.msra.mxu0 0.0
      %2290 = vmatprep.subr.mxu0 0.0
      %2291 = vmatpush1.msra.mxu0 0.0
      %2292 = vmatprep.subr.mxu0 0.0
      %2293 = vmatpush1.msra.mxu0 0.0
      %2294 = vmatprep.subr.mxu0 0.0
      %2295 = vmatpush1.msra.mxu0 0.0
      %2296 = vmatprep.subr.mxu0 0.0
      %2297 = vmatpush1.msra.mxu0 0.0
      %2298 = vmatprep.subr.mxu0 0.0
      %2299 = vmatpush1.msra.mxu0 0.0
      %2300 = vmatprep.subr.mxu0 0.0
      %2301 = vmatpush1.msra.mxu0 %v2271
      %2302 = vmatprep.subr.mxu0 0.0
      %2303 = vmatpush1.msra.mxu0 %v2270
      %2304 = vmatprep.subr.mxu0 0.0
      %2305 = vmatpush1.msra.mxu0 %v2269
      %2306 = vmatprep.subr.mxu0 0.0
      %2307 = vmatpush1.msra.mxu0 %v2268
      %2308 = vmatprep.subr.mxu0 0.0
      %2309 = vmatpush2.msra.mxu0 0.0
      %2310 = vmatprep.subr.mxu0 0.0
      %2311 = vmatpush2.msra.mxu0 0.0
      %2312 = vmatprep.subr.mxu0 0.0
      %2313 = vmatpush2.msra.mxu0 0.0
      %2314 = vmatprep.subr.mxu0 0.0
      %2315 = vmatpush2.msra.mxu0 0.0
      %2316 = vmatprep.subr.mxu0 0.0
      %2317 = vmatpush2.msra.mxu0 0.0
      %2318 = vmatprep.subr.mxu0 0.0
      %2319 = vmatpush2.msra.mxu0 0.0
      %2320 = vmatprep.subr.mxu0 0.0
      %2321 = vmatpush2.msra.mxu0 0.0
      %2322 = vmatprep.subr.mxu0 0.0
      %2323 = vmatpush2.msra.mxu0 0.0
      %2324 = vmatprep.subr.mxu0 0.0
      %2325 = vmatpush2.msra.mxu0 0.0
      %2326 = vmatprep.subr.mxu0 0.0
      %2327 = vmatpush2.msra.mxu0 0.0
      %2328 = vmatprep.subr.mxu0 0.0
      %2329 = vmatpush2.msra.mxu0 0.0
      %2330 = vmatprep.subr.mxu0 0.0
      %2331 = vmatpush2.msra.mxu0 0.0
      %2332 = vmatprep.subr.mxu0 0.0
      %2333 = vmatpush2.msra.mxu0 0.0
      %2334 = vmatprep.subr.mxu0 0.0
      %2335 = vmatpush2.msra.mxu0 0.0
      %2336 = vmatprep.subr.mxu0 0.0
      %2337 = vmatpush2.msra.mxu0 0.0
      %2338 = vmatprep.subr.mxu0 0.0
      %2339 = vmatpush2.msra.mxu0 0.0
      %2340 = vmatprep.mubr.f32.mxu0 0.0
      %2341 = vmatmul.mubr.f32.gmra.mxu0 %v2274
      %v2342 = vpop.f32.mrf.mxu0
      %v2343 = vadd.f32 0.0, %v2342
      %v2344 = vpop.f32.mrf.mxu0
      %2345 = vdwg.mxu0
      %v2346 = vadd.f32 %v2266, %v2343
      %s2347 = scalar_lea.vmem %s6, 736
      %v2348 = vld [vmem:[%s2347] sm:$0xff]
      %v2349 = vld [vmem:[%s2347 + $0x8] sm:$0xff]
      %v2350 = vld [vmem:[%s2347 + $0x10] sm:$0xff]
      %v2351 = vld [vmem:[%s2347 + $0x18] sm:$0xff]
      %2352 = vrot.lane.b32.xlu0 %v2193, 112
      %v2353 = vpop.permute.xlu0 %2352
      %v2354 = vsel %vm501, %v2353, 0
      %2356 = vmatprep.subr.mxu0 0.0
      %2357 = vmatpush1.msra.mxu0 0.0
      %2358 = vmatprep.subr.mxu0 0.0
      %2359 = vmatpush1.msra.mxu0 0.0
      %2360 = vmatprep.subr.mxu0 0.0
      %2361 = vmatpush1.msra.mxu0 0.0
      %2362 = vmatprep.subr.mxu0 0.0
      %2363 = vmatpush1.msra.mxu0 0.0
      %2364 = vmatprep.subr.mxu0 0.0
      %2365 = vmatpush1.msra.mxu0 0.0
      %2366 = vmatprep.subr.mxu0 0.0
      %2367 = vmatpush1.msra.mxu0 0.0
      %2368 = vmatprep.subr.mxu0 0.0
      %2369 = vmatpush1.msra.mxu0 0.0
      %2370 = vmatprep.subr.mxu0 0.0
      %2371 = vmatpush1.msra.mxu0 0.0
      %2372 = vmatprep.subr.mxu0 0.0
      %2373 = vmatpush1.msra.mxu0 0.0
      %2374 = vmatprep.subr.mxu0 0.0
      %2375 = vmatpush1.msra.mxu0 0.0
      %2376 = vmatprep.subr.mxu0 0.0
      %2377 = vmatpush1.msra.mxu0 0.0
      %2378 = vmatprep.subr.mxu0 0.0
      %2379 = vmatpush1.msra.mxu0 0.0
      %2380 = vmatprep.subr.mxu0 0.0
      %2381 = vmatpush1.msra.mxu0 %v2351
      %2382 = vmatprep.subr.mxu0 0.0
      %2383 = vmatpush1.msra.mxu0 %v2350
      %2384 = vmatprep.subr.mxu0 0.0
      %2385 = vmatpush1.msra.mxu0 %v2349
      %2386 = vmatprep.subr.mxu0 0.0
      %2387 = vmatpush1.msra.mxu0 %v2348
      %2388 = vmatprep.subr.mxu0 0.0
      %2389 = vmatpush2.msra.mxu0 0.0
      %2390 = vmatprep.subr.mxu0 0.0
      %2391 = vmatpush2.msra.mxu0 0.0
      %2392 = vmatprep.subr.mxu0 0.0
      %2393 = vmatpush2.msra.mxu0 0.0
      %2394 = vmatprep.subr.mxu0 0.0
      %2395 = vmatpush2.msra.mxu0 0.0
      %2396 = vmatprep.subr.mxu0 0.0
      %2397 = vmatpush2.msra.mxu0 0.0
      %2398 = vmatprep.subr.mxu0 0.0
      %2399 = vmatpush2.msra.mxu0 0.0
      %2400 = vmatprep.subr.mxu0 0.0
      %2401 = vmatpush2.msra.mxu0 0.0
      %2402 = vmatprep.subr.mxu0 0.0
      %2403 = vmatpush2.msra.mxu0 0.0
      %2404 = vmatprep.subr.mxu0 0.0
      %2405 = vmatpush2.msra.mxu0 0.0
      %2406 = vmatprep.subr.mxu0 0.0
      %2407 = vmatpush2.msra.mxu0 0.0
      %2408 = vmatprep.subr.mxu0 0.0
      %2409 = vmatpush2.msra.mxu0 0.0
      %2410 = vmatprep.subr.mxu0 0.0
      %2411 = vmatpush2.msra.mxu0 0.0
      %2412 = vmatprep.subr.mxu0 0.0
      %2413 = vmatpush2.msra.mxu0 0.0
      %2414 = vmatprep.subr.mxu0 0.0
      %2415 = vmatpush2.msra.mxu0 0.0
      %2416 = vmatprep.subr.mxu0 0.0
      %2417 = vmatpush2.msra.mxu0 0.0
      %2418 = vmatprep.subr.mxu0 0.0
      %2419 = vmatpush2.msra.mxu0 0.0
      %2420 = vmatprep.mubr.f32.mxu0 0.0
      %2421 = vmatmul.mubr.f32.gmra.mxu0 %v2354
      %v2422 = vpop.f32.mrf.mxu0
      %v2423 = vadd.f32 0.0, %v2422
      %v2424 = vpop.f32.mrf.mxu0
      %2425 = vdwg.mxu0
      %v2426 = vadd.f32 %v2346, %v2423
      %s2427 = scalar_lea.vmem %s6, 768
      %v2428 = vld [vmem:[%s2427] sm:$0xff]
      %v2429 = vld [vmem:[%s2427 + $0x8] sm:$0xff]
      %v2430 = vld [vmem:[%s2427 + $0x10] sm:$0xff]
      %v2431 = vld [vmem:[%s2427 + $0x18] sm:$0xff]
      %v2432 = vrot.slane %v1948, 2
      %v2433 = vsel %vm501, %v2432, 0
      %2435 = vmatprep.subr.mxu0 0.0
      %2436 = vmatpush1.msra.mxu0 0.0
      %2437 = vmatprep.subr.mxu0 0.0
      %2438 = vmatpush1.msra.mxu0 0.0
      %2439 = vmatprep.subr.mxu0 0.0
      %2440 = vmatpush1.msra.mxu0 0.0
      %2441 = vmatprep.subr.mxu0 0.0
      %2442 = vmatpush1.msra.mxu0 0.0
      %2443 = vmatprep.subr.mxu0 0.0
      %2444 = vmatpush1.msra.mxu0 0.0
      %2445 = vmatprep.subr.mxu0 0.0
      %2446 = vmatpush1.msra.mxu0 0.0
      %2447 = vmatprep.subr.mxu0 0.0
      %2448 = vmatpush1.msra.mxu0 0.0
      %2449 = vmatprep.subr.mxu0 0.0
      %2450 = vmatpush1.msra.mxu0 0.0
      %2451 = vmatprep.subr.mxu0 0.0
      %2452 = vmatpush1.msra.mxu0 0.0
      %2453 = vmatprep.subr.mxu0 0.0
      %2454 = vmatpush1.msra.mxu0 0.0
      %2455 = vmatprep.subr.mxu0 0.0
      %2456 = vmatpush1.msra.mxu0 0.0
      %2457 = vmatprep.subr.mxu0 0.0
      %2458 = vmatpush1.msra.mxu0 0.0
      %2459 = vmatprep.subr.mxu0 0.0
      %2460 = vmatpush1.msra.mxu0 %v2431
      %2461 = vmatprep.subr.mxu0 0.0
      %2462 = vmatpush1.msra.mxu0 %v2430
      %2463 = vmatprep.subr.mxu0 0.0
      %2464 = vmatpush1.msra.mxu0 %v2429
      %2465 = vmatprep.subr.mxu0 0.0
      %2466 = vmatpush1.msra.mxu0 %v2428
      %2467 = vmatprep.subr.mxu0 0.0
      %2468 = vmatpush2.msra.mxu0 0.0
      %2469 = vmatprep.subr.mxu0 0.0
      %2470 = vmatpush2.msra.mxu0 0.0
      %2471 = vmatprep.subr.mxu0 0.0
      %2472 = vmatpush2.msra.mxu0 0.0
      %2473 = vmatprep.subr.mxu0 0.0
      %2474 = vmatpush2.msra.mxu0 0.0
      %2475 = vmatprep.subr.mxu0 0.0
      %2476 = vmatpush2.msra.mxu0 0.0
      %2477 = vmatprep.subr.mxu0 0.0
      %2478 = vmatpush2.msra.mxu0 0.0
      %2479 = vmatprep.subr.mxu0 0.0
      %2480 = vmatpush2.msra.mxu0 0.0
      %2481 = vmatprep.subr.mxu0 0.0
      %2482 = vmatpush2.msra.mxu0 0.0
      %2483 = vmatprep.subr.mxu0 0.0
      %2484 = vmatpush2.msra.mxu0 0.0
      %2485 = vmatprep.subr.mxu0 0.0
      %2486 = vmatpush2.msra.mxu0 0.0
      %2487 = vmatprep.subr.mxu0 0.0
      %2488 = vmatpush2.msra.mxu0 0.0
      %2489 = vmatprep.subr.mxu0 0.0
      %2490 = vmatpush2.msra.mxu0 0.0
      %2491 = vmatprep.subr.mxu0 0.0
      %2492 = vmatpush2.msra.mxu0 0.0
      %2493 = vmatprep.subr.mxu0 0.0
      %2494 = vmatpush2.msra.mxu0 0.0
      %2495 = vmatprep.subr.mxu0 0.0
      %2496 = vmatpush2.msra.mxu0 0.0
      %2497 = vmatprep.subr.mxu0 0.0
      %2498 = vmatpush2.msra.mxu0 0.0
      %2499 = vmatprep.mubr.f32.mxu0 0.0
      %2500 = vmatmul.mubr.f32.gmra.mxu0 %v2433
      %v2501 = vpop.f32.mrf.mxu0
      %v2502 = vadd.f32 0.0, %v2501
      %v2503 = vpop.f32.mrf.mxu0
      %2504 = vdwg.mxu0
      %v2505 = vadd.f32 %v2426, %v2502
      %s2506 = scalar_lea.vmem %s6, 800
      %v2507 = vld [vmem:[%s2506] sm:$0xff]
      %v2508 = vld [vmem:[%s2506 + $0x8] sm:$0xff]
      %v2509 = vld [vmem:[%s2506 + $0x10] sm:$0xff]
      %v2510 = vld [vmem:[%s2506 + $0x18] sm:$0xff]
      %2511 = vrot.lane.b32.xlu0 %v2432, 120
      %v2512 = vpop.permute.xlu0 %2511
      %v2513 = vsel %vm501, %v2512, 0
      %2515 = vmatprep.subr.mxu0 0.0
      %2516 = vmatpush1.msra.mxu0 0.0
      %2517 = vmatprep.subr.mxu0 0.0
      %2518 = vmatpush1.msra.mxu0 0.0
      %2519 = vmatprep.subr.mxu0 0.0
      %2520 = vmatpush1.msra.mxu0 0.0
      %2521 = vmatprep.subr.mxu0 0.0
      %2522 = vmatpush1.msra.mxu0 0.0
      %2523 = vmatprep.subr.mxu0 0.0
      %2524 = vmatpush1.msra.mxu0 0.0
      %2525 = vmatprep.subr.mxu0 0.0
      %2526 = vmatpush1.msra.mxu0 0.0
      %2527 = vmatprep.subr.mxu0 0.0
      %2528 = vmatpush1.msra.mxu0 0.0
      %2529 = vmatprep.subr.mxu0 0.0
      %2530 = vmatpush1.msra.mxu0 0.0
      %2531 = vmatprep.subr.mxu0 0.0
      %2532 = vmatpush1.msra.mxu0 0.0
      %2533 = vmatprep.subr.mxu0 0.0
      %2534 = vmatpush1.msra.mxu0 0.0
      %2535 = vmatprep.subr.mxu0 0.0
      %2536 = vmatpush1.msra.mxu0 0.0
      %2537 = vmatprep.subr.mxu0 0.0
      %2538 = vmatpush1.msra.mxu0 0.0
      %2539 = vmatprep.subr.mxu0 0.0
      %2540 = vmatpush1.msra.mxu0 %v2510
      %2541 = vmatprep.subr.mxu0 0.0
      %2542 = vmatpush1.msra.mxu0 %v2509
      %2543 = vmatprep.subr.mxu0 0.0
      %2544 = vmatpush1.msra.mxu0 %v2508
      %2545 = vmatprep.subr.mxu0 0.0
      %2546 = vmatpush1.msra.mxu0 %v2507
      %2547 = vmatprep.subr.mxu0 0.0
      %2548 = vmatpush2.msra.mxu0 0.0
      %2549 = vmatprep.subr.mxu0 0.0
      %2550 = vmatpush2.msra.mxu0 0.0
      %2551 = vmatprep.subr.mxu0 0.0
      %2552 = vmatpush2.msra.mxu0 0.0
      %2553 = vmatprep.subr.mxu0 0.0
      %2554 = vmatpush2.msra.mxu0 0.0
      %2555 = vmatprep.subr.mxu0 0.0
      %2556 = vmatpush2.msra.mxu0 0.0
      %2557 = vmatprep.subr.mxu0 0.0
      %2558 = vmatpush2.msra.mxu0 0.0
      %2559 = vmatprep.subr.mxu0 0.0
      %2560 = vmatpush2.msra.mxu0 0.0
      %2561 = vmatprep.subr.mxu0 0.0
      %2562 = vmatpush2.msra.mxu0 0.0
      %2563 = vmatprep.subr.mxu0 0.0
      %2564 = vmatpush2.msra.mxu0 0.0
      %2565 = vmatprep.subr.mxu0 0.0
      %2566 = vmatpush2.msra.mxu0 0.0
      %2567 = vmatprep.subr.mxu0 0.0
      %2568 = vmatpush2.msra.mxu0 0.0
      %2569 = vmatprep.subr.mxu0 0.0
      %2570 = vmatpush2.msra.mxu0 0.0
      %2571 = vmatprep.subr.mxu0 0.0
      %2572 = vmatpush2.msra.mxu0 0.0
      %2573 = vmatprep.subr.mxu0 0.0
      %2574 = vmatpush2.msra.mxu0 0.0
      %2575 = vmatprep.subr.mxu0 0.0
      %2576 = vmatpush2.msra.mxu0 0.0
      %2577 = vmatprep.subr.mxu0 0.0
      %2578 = vmatpush2.msra.mxu0 0.0
      %2579 = vmatprep.mubr.f32.mxu0 0.0
      %2580 = vmatmul.mubr.f32.gmra.mxu0 %v2513
      %v2581 = vpop.f32.mrf.mxu0
      %v2582 = vadd.f32 0.0, %v2581
      %v2583 = vpop.f32.mrf.mxu0
      %2584 = vdwg.mxu0
      %v2585 = vadd.f32 %v2505, %v2582
      %s2586 = scalar_lea.vmem %s6, 832
      %v2587 = vld [vmem:[%s2586] sm:$0xff]
      %v2588 = vld [vmem:[%s2586 + $0x8] sm:$0xff]
      %v2589 = vld [vmem:[%s2586 + $0x10] sm:$0xff]
      %v2590 = vld [vmem:[%s2586 + $0x18] sm:$0xff]
      %2591 = vrot.lane.b32.xlu0 %v2432, 112
      %v2592 = vpop.permute.xlu0 %2591
      %v2593 = vsel %vm501, %v2592, 0
      %2595 = vmatprep.subr.mxu0 0.0
      %2596 = vmatpush1.msra.mxu0 0.0
      %2597 = vmatprep.subr.mxu0 0.0
      %2598 = vmatpush1.msra.mxu0 0.0
      %2599 = vmatprep.subr.mxu0 0.0
      %2600 = vmatpush1.msra.mxu0 0.0
      %2601 = vmatprep.subr.mxu0 0.0
      %2602 = vmatpush1.msra.mxu0 0.0
      %2603 = vmatprep.subr.mxu0 0.0
      %2604 = vmatpush1.msra.mxu0 0.0
      %2605 = vmatprep.subr.mxu0 0.0
      %2606 = vmatpush1.msra.mxu0 0.0
      %2607 = vmatprep.subr.mxu0 0.0
      %2608 = vmatpush1.msra.mxu0 0.0
      %2609 = vmatprep.subr.mxu0 0.0
      %2610 = vmatpush1.msra.mxu0 0.0
      %2611 = vmatprep.subr.mxu0 0.0
      %2612 = vmatpush1.msra.mxu0 0.0
      %2613 = vmatprep.subr.mxu0 0.0
      %2614 = vmatpush1.msra.mxu0 0.0
      %2615 = vmatprep.subr.mxu0 0.0
      %2616 = vmatpush1.msra.mxu0 0.0
      %2617 = vmatprep.subr.mxu0 0.0
      %2618 = vmatpush1.msra.mxu0 0.0
      %2619 = vmatprep.subr.mxu0 0.0
      %2620 = vmatpush1.msra.mxu0 %v2590
      %2621 = vmatprep.subr.mxu0 0.0
      %2622 = vmatpush1.msra.mxu0 %v2589
      %2623 = vmatprep.subr.mxu0 0.0
      %2624 = vmatpush1.msra.mxu0 %v2588
      %2625 = vmatprep.subr.mxu0 0.0
      %2626 = vmatpush1.msra.mxu0 %v2587
      %2627 = vmatprep.subr.mxu0 0.0
      %2628 = vmatpush2.msra.mxu0 0.0
      %2629 = vmatprep.subr.mxu0 0.0
      %2630 = vmatpush2.msra.mxu0 0.0
      %2631 = vmatprep.subr.mxu0 0.0
      %2632 = vmatpush2.msra.mxu0 0.0
      %2633 = vmatprep.subr.mxu0 0.0
      %2634 = vmatpush2.msra.mxu0 0.0
      %2635 = vmatprep.subr.mxu0 0.0
      %2636 = vmatpush2.msra.mxu0 0.0
      %2637 = vmatprep.subr.mxu0 0.0
      %2638 = vmatpush2.msra.mxu0 0.0
      %2639 = vmatprep.subr.mxu0 0.0
      %2640 = vmatpush2.msra.mxu0 0.0
      %2641 = vmatprep.subr.mxu0 0.0
      %2642 = vmatpush2.msra.mxu0 0.0
      %2643 = vmatprep.subr.mxu0 0.0
      %2644 = vmatpush2.msra.mxu0 0.0
      %2645 = vmatprep.subr.mxu0 0.0
      %2646 = vmatpush2.msra.mxu0 0.0
      %2647 = vmatprep.subr.mxu0 0.0
      %2648 = vmatpush2.msra.mxu0 0.0
      %2649 = vmatprep.subr.mxu0 0.0
      %2650 = vmatpush2.msra.mxu0 0.0
      %2651 = vmatprep.subr.mxu0 0.0
      %2652 = vmatpush2.msra.mxu0 0.0
      %2653 = vmatprep.subr.mxu0 0.0
      %2654 = vmatpush2.msra.mxu0 0.0
      %2655 = vmatprep.subr.mxu0 0.0
      %2656 = vmatpush2.msra.mxu0 0.0
      %2657 = vmatprep.subr.mxu0 0.0
      %2658 = vmatpush2.msra.mxu0 0.0
      %2659 = vmatprep.mubr.f32.mxu0 0.0
      %2660 = vmatmul.mubr.f32.gmra.mxu0 %v2593
      %v2661 = vpop.f32.mrf.mxu0
      %v2662 = vadd.f32 0.0, %v2661
      %v2663 = vpop.f32.mrf.mxu0
      %2664 = vdwg.mxu0
      %v2665 = vadd.f32 %v2585, %v2662
      %v2666 = vld [vmem:[%s7] sm:$0x1]
      %v2668 = vlaneseq
      %v2669 = vshrl.u32 %v2668, 7
      %v2670 = vsub.s32 0, %v2669
      %v2671 = vrot.slane %v2666, %v2670
      %v2673 = vadd.f32 %v2665, %v2671
      %vm2674 = vcmask 257024
      %2675 = vst.msk [vmem:[%s452] sm:$0xf] %vm2674, %v2673
      %v2676 = vadd.f32 %v2673, 0.0
      %v2677 = vmul.f32 %v2673, %v2673
      %v2678 = vadd.f32 %v2677, 0.0
      %2680 = vrot.lane.b32.xlu0 %v2673, 120
      %v2681 = vpop.permute.xlu0 %2680
      %v2683 = vadd.f32 %v2676, %v2681
      %2685 = vrot.lane.b32.xlu0 %v2677, 120
      %v2686 = vpop.permute.xlu0 %2685
      %v2688 = vadd.f32 %v2678, %v2686
      %2689 = vrot.lane.b32.xlu0 %v2673, 112
      %v2690 = vpop.permute.xlu0 %2689
      %v2692 = vadd.f32 %v2683, %v2690
      %2693 = vrot.lane.b32.xlu0 %v2677, 112
      %v2694 = vpop.permute.xlu0 %2693
      %v2696 = vadd.f32 %v2688, %v2694
      %2697 = vrot.lane.b32.xlu0 %v2673, 104
      %v2698 = vpop.permute.xlu0 %2697
      %v2700 = vadd.f32 %v2692, %v2698
      %2701 = vrot.lane.b32.xlu0 %v2677, 104
      %v2702 = vpop.permute.xlu0 %2701
      %v2704 = vadd.f32 %v2696, %v2702
      %vm2705 = vcmask 60416
      %v2706 = vsel %vm2705, %v2700, 0.0
      %v2707 = vrot.slane %v2706, 4
      %v2708 = vadd.f32 %v2706, %v2707
      %v2709 = vrot.slane %v2708, 2
      %v2710 = vadd.f32 %v2708, %v2709
      %v2711 = vrot.slane %v2710, 1
      %v2712 = vadd.f32 %v2710, %v2711
      %v2713 = vsel %vm2705, %v2704, 0.0
      %v2714 = vrot.slane %v2713, 4
      %v2715 = vadd.f32 %v2713, %v2714
      %v2716 = vrot.slane %v2715, 2
      %v2717 = vadd.f32 %v2715, %v2716
      %v2718 = vrot.slane %v2717, 1
      %v2719 = vadd.f32 %v2717, %v2718
      %vm2720 = vcmask 1040384
      %v2721 = vsel %vm2720, %v2712, %v2719
      %vm2722 = vcmask 58368
      %2723 = vst.msk [vmem:[%s460] sm:$0x3] %vm2722, %v2721
      %p2724 = scmp.lt.s32.totalorder %s25, 1
      %s2725 = scalar_select %p2724, %s25, 1
      %p2726 = scmp.lt.s32.totalorder %s26, 3
      %s2727 = scalar_select %p2726, %s26, 3
      %s2728 = smul.addr %s2725, 4
      %s2729 = sadd.s32 %s2727, %s2728
      %s2730 = smul.addr %s2729, 4
      %s2731 = scalar_lea.vmem %s8, %s2730
      %p2732 = scmp.lt.s32.totalorder %s25, 1
      %s2733 = scalar_select %p2732, %s25, 1
      %p2734 = scmp.lt.s32.totalorder %s26, 3
      %s2735 = scalar_select %p2734, %s26, 3
      %s2736 = smul.addr %s2733, 4
      %s2737 = sadd.s32 %s2735, %s2736
      %s2738 = smul.addr %s2737, 2
      %s2739 = scalar_lea.vmem %s9, %s2738
      // Predicated region
      $region53: #{encoder_block.5} parent=51 // pred_check
        %p2740 = pneg %p246
      $region54: #{encoder_block.5} parent=51 // pred_check_branch
        %2742 = sbr.rel (%p2740) target = $region56
      $region55: #{encoder_block.5} parent=51 // pred_region
        _
      $region56: #{encoder_block.5} parent=51 // pred_fallthru
        _
      // Predicated region
      $region57: #{encoder_block.5} parent=51 // pred_check
        %p2743 = pneg %p274
      $region58: #{encoder_block.5} parent=51 // pred_check_branch
        %2745 = sbr.rel (%p2743) target = $region60
      $region59: #{encoder_block.5} parent=51 // pred_region
        _
      $region60: #{encoder_block.5} parent=51 // pred_fallthru
        _
    $region52: #{encoder_block.5} parent=5 // pred_fallthru
      _
    %p2746 = scmp.le.s32.totalorder 2, %s16
    // Predicated region
    $region61: #{encoder_block.5} parent=5 // pred_check
      %p2747 = pneg %p2746
    $region62: #{encoder_block.5} parent=5 // pred_check_branch
      %2749 = sbr.rel (%p2747) target = $region64
    $region63: #{encoder_block.5} parent=5 // pred_region
      %s2750 = ssub.s32 %s16, 2
      // Predicated region
      $region65: #{encoder_block.5} parent=63 // pred_check
        %p2751 = pneg %p252
      $region66: #{encoder_block.5} parent=63 // pred_check_branch
        %2753 = sbr.rel (%p2751) target = $region68
      $region67: #{encoder_block.5} parent=63 // pred_region
        %p2754 = scmp.lt.s32.totalorder %s27, 1
        %s2755 = scalar_select %p2754, %s27, 1
        %p2756 = scmp.lt.s32.totalorder %s28, 3
        %s2757 = scalar_select %p2756, %s28, 3
        %s2758 = smul.addr %s2755, 4
        %s2759 = sadd.s32 %s2757, %s2758
        %s2760 = smul.addr %s2759, 4
        %s2761 = scalar_lea.vmem %s8, %s2760
      $region68: #{encoder_block.5} parent=63 // pred_fallthru
        _
      // Predicated region
      $region69: #{encoder_block.5} parent=63 // pred_check
        %p2762 = pneg %p280
      $region70: #{encoder_block.5} parent=63 // pred_check_branch
        %2764 = sbr.rel (%p2762) target = $region72
      $region71: #{encoder_block.5} parent=63 // pred_region
        %p2765 = scmp.lt.s32.totalorder %s27, 1
        %s2766 = scalar_select %p2765, %s27, 1
        %p2767 = scmp.lt.s32.totalorder %s28, 3
        %s2768 = scalar_select %p2767, %s28, 3
        %s2769 = smul.addr %s2766, 4
        %s2770 = sadd.s32 %s2768, %s2769
        %s2771 = smul.addr %s2770, 2
        %s2772 = scalar_lea.vmem %s9, %s2771
      $region72: #{encoder_block.5} parent=63 // pred_fallthru
        _
    $region64: #{encoder_block.5} parent=5 // pred_fallthru
      _
  $region6: #{encoder_block.5} parent=0 // loop_footer
    %s20 = sadd.s32 1, %s16
  $region7: #{encoder_block.5} parent=0 // loop_footer_branch
    %15 = sbr.rel target = $region3
  $region8: #{encoder_block.5} parent=0 // loop_exit
    _

// kernel: encoder_block.7
$region0: #{encoder_block.7}
  #allocation0 [shape = 'u32[]', space=smem, size = 0x4, offset = 0x4, fixed_abs, tag = 'smem constant byte address 0x4 - core index']
  #allocation1 [shape = 'u32[144,128]{1,0:T(1,128)}', space=vmem, size = 0x12000, scoped, tag = 'internal scratch']
  %s0 = inlined_call_operand.vmem [shape: f32[8,128], index: 0, kind: input, shape index: {}]
  %s1 = inlined_call_operand.vmem [shape: f32[8,128], index: 1, kind: input, shape index: {}]
  %s2 = inlined_call_operand.vmem [shape: f32[1,128], index: 2, kind: input, shape index: {}]
  %s3 = inlined_call_operand.vmem [shape: f32[1,128], index: 3, kind: input, shape index: {}]
  %s4 = inlined_call_operand.vmem [shape: f32[1,128], index: 4, kind: input, shape index: {}]
  %s5 = inlined_call_operand.vmem [shape: f32[1,128], index: 5, kind: input, shape index: {}]
  %s6 = inlined_call_operand.vmem [shape: f32[8,128], index: 6, kind: output, shape index: {}]
  %s7 = sld [smem:[#allocation0]]
  $region34: #{encoder_block.7} parent=0
    _
  %s9 = ssub.s32 1, %s7
  %s10 = scalar_select 0, %s9, %s7
  // Predicated region
  $region2: #{encoder_block.7} parent=0 // pred_check
    _
  $region3: #{encoder_block.7} parent=0 // pred_check_branch
    %12 = sbr.rel (0) target = $region5
  $region4: #{encoder_block.7} parent=0 // pred_region
    _
  $region5: #{encoder_block.7} parent=0 // pred_fallthru
    _
  // Predicated region
  $region6: #{encoder_block.7} parent=0 // pred_check
    _
  $region7: #{encoder_block.7} parent=0 // pred_check_branch
    %14 = sbr.rel (0) target = $region9
  $region8: #{encoder_block.7} parent=0 // pred_region
    _
  $region9: #{encoder_block.7} parent=0 // pred_fallthru
    _
  // Predicated region
  $region10: #{encoder_block.7} parent=0 // pred_check
    _
  $region11: #{encoder_block.7} parent=0 // pred_check_branch
    %16 = sbr.rel (0) target = $region13
  $region12: #{encoder_block.7} parent=0 // pred_region
    _
  $region13: #{encoder_block.7} parent=0 // pred_fallthru
    _
  // Predicated region
  $region14: #{encoder_block.7} parent=0 // pred_check
    _
  $region15: #{encoder_block.7} parent=0 // pred_check_branch
    %18 = sbr.rel (0) target = $region17
  $region16: #{encoder_block.7} parent=0 // pred_region
    _
  $region17: #{encoder_block.7} parent=0 // pred_fallthru
    _
  // Predicated region
  $region18: #{encoder_block.7} parent=0 // pred_check
    _
  $region19: #{encoder_block.7} parent=0 // pred_check_branch
    %20 = sbr.rel (0) target = $region21
  $region20: #{encoder_block.7} parent=0 // pred_region
    _
  $region21: #{encoder_block.7} parent=0 // pred_fallthru
    _
  // Predicated region
  $region22: #{encoder_block.7} parent=0 // pred_check
    _
  $region23: #{encoder_block.7} parent=0 // pred_check_branch
    %22 = sbr.rel (0) target = $region25
  $region24: #{encoder_block.7} parent=0 // pred_region
    _
  $region25: #{encoder_block.7} parent=0 // pred_fallthru
    _
  %v23 = vld [vmem:[%s0] sm:$0xff]
  %v24 = vld [vmem:[%s2] sm:$0x1]
  %v26 = vlaneseq
  %v27 = vshrl.u32 %v26, 7
  %v28 = vsub.s32 0, %v27
  %v29 = vrot.slane %v24, %v28
  %v31 = vmul.f32 %v23, %v29
  %v32 = vld [vmem:[%s3] sm:$0x1]
  %v34 = vlaneseq
  %v35 = vshrl.u32 %v34, 7
  %v36 = vsub.s32 0, %v35
  %v37 = vrot.slane %v32, %v36
  %v39 = vadd.f32 %v31, %v37
  %v40 = vmax.f32 %v39, 0.0
  %v41 = vld [vmem:[%s1] sm:$0xff]
  %v42 = vld [vmem:[%s4] sm:$0x1]
  %v44 = vlaneseq
  %v45 = vshrl.u32 %v44, 7
  %v46 = vsub.s32 0, %v45
  %v47 = vrot.slane %v42, %v46
  %v49 = vmul.f32 %v41, %v47
  %v50 = vld [vmem:[%s5] sm:$0x1]
  %v52 = vlaneseq
  %v53 = vshrl.u32 %v52, 7
  %v54 = vsub.s32 0, %v53
  %v55 = vrot.slane %v50, %v54
  %v57 = vadd.f32 %v49, %v55
  %v58 = vmax.f32 %v57, 0.0
  %v59 = vadd.f32 %v40, %v58
  %60 = vst [vmem:[%s6] sm:$0xff] %v59
  // Predicated region
  $region26: #{encoder_block.7} parent=0 // pred_check
    _
  $region27: #{encoder_block.7} parent=0 // pred_check_branch
    %62 = sbr.rel (0) target = $region29
  $region28: #{encoder_block.7} parent=0 // pred_region
    _
  $region29: #{encoder_block.7} parent=0 // pred_fallthru
    _
  // Predicated region
  $region30: #{encoder_block.7} parent=0 // pred_check
    _
  $region31: #{encoder_block.7} parent=0 // pred_check_branch
    %64 = sbr.rel (0) target = $region33
  $region32: #{encoder_block.7} parent=0 // pred_region
    _
  $region33: #{encoder_block.7} parent=0 // pred_fallthru
    _

</llo_original>
